<compile_context>
chip_gen: v7x
topology: tpu7x:2x2x1
jax: 0.10.0
libtpu: 0.0.40
codegen_flags: <defaults>
</compile_context>

<pallas_src>
import functools

import jax
import jax.numpy as jnp
import numpy as np
from jax import lax
from jax.experimental import pallas as pl
from jax.experimental.pallas import tpu as pltpu


def _gelu_exact(y):
    """Exact (erf) GELU.  erf via Abramowitz & Stegun 7.1.26 (|err| < 1.5e-7),
    built only from mul/add/exp so it lowers cleanly (exp -> EUP slot)."""
    z = y * 0.7071067811865476                       # y / sqrt(2)
    za = jnp.abs(z)
    t = 1.0 / (1.0 + 0.3275911 * za)
    poly = t * (0.254829592 + t * (-0.284496736 + t * (1.421413741
               + t * (-1.453152027 + t * 1.061405429))))
    erf_abs = 1.0 - poly * jnp.exp(-za * za)
    erf = jnp.where(z < 0.0, -erf_abs, erf_abs)
    return 0.5 * y * (1.0 + erf)


def _mrconv_kernel(x_ref, wx_ref, wj_ref, b_ref, o_ref, *, K, D, H, W):
    """Fused per-batch MRConv4d: x -> GELU(BN(Conv1x1x1(cat([x, x_j]))))."""
    x = x_ref[0]                                     # (C, n), n = D*H*W
    C, n = x.shape
    HW = H * W

    # Lane-index maps for blocked rolls inside the flattened spatial axis
    # (hoisted: computed once per grid step).
    lane = lax.broadcasted_iota(jnp.int32, (1, n), 1)
    hw_idx = lane % HW                               # index inside an H*W block
    w_idx = lane % W                                 # index inside a W block

    def roll_d(a, s):
        # roll along D == plain roll of the whole flattened axis by s*H*W.
        t = (s % D) * HW
        return pltpu.roll(a, t, axis=1) if t else a

    def _blocked_roll(a, t, blk, ridx):
        # Roll each `blk`-lane block of the flattened axis by t (0 < t < blk):
        # lanes with (idx % blk) >= t come from roll(+t), the wrapped lanes
        # from roll(t - blk).  Two XLU rolls + one select; no VMEM copies.
        lo = pltpu.roll(a, t, axis=1)
        hi = pltpu.roll(a, (t - blk) % n, axis=1)
        return jnp.where(ridx >= t, lo, hi)

    def roll_h(a, s):
        t = (s % H) * W
        return _blocked_roll(a, t, HW, hw_idx) if t else a

    def roll_w(a, s):
        t = s % W
        return _blocked_roll(a, t, W, w_idx) if t else a

    # Threshold from the initial (ceil(D/2), ceil(H/2), ceil(W/2)) triple roll.
    xr0 = roll_w(roll_h(roll_d(x, -(-D // 2)), -(-H // 2)), -(-W // 2))
    norm0 = jnp.sum(jnp.abs(x - xr0), axis=0, keepdims=True)        # (1, n)
    mean = jnp.sum(norm0, keepdims=True) / n                        # (1, 1)
    var = jnp.sum((norm0 - mean) ** 2, keepdims=True) / (n - 1)     # unbiased (torch.std)
    thr = mean - jnp.sqrt(var)

    x_j = jnp.zeros_like(x)

    def step(x_j, xr):
        dist = jnp.sum(jnp.abs(x - xr), axis=0, keepdims=True)      # (1, n)
        return jnp.maximum(x_j, jnp.where(dist < thr, xr - x, 0.0))

    # s == 0 gives xr == x -> candidate is exactly 0 -> max(x_j, 0) == x_j
    # (x_j starts at 0), so the s == 0 term of the reference loops is skipped.
    # TODO(synk): for non-toy D/H/W/K switch these statically unrolled loops to
    # lax.fori_loop with dynamic roll shifts to bound vreg live ranges.
    for s in range(K, D, K):
        x_j = step(x_j, roll_d(x, s))
    for s in range(K, H, K):
        x_j = step(x_j, roll_h(x, s))
    for s in range(K, W, K):
        x_j = step(x_j, roll_w(x, s))

    # 1x1x1 Conv3d (+ folded inference-mode BatchNorm3d) as two MXU dots over
    # the channel halves of cat([x, x_j], C); output (Cout, n) is lane-dense.
    y = (jnp.dot(wx_ref[...], x, preferred_element_type=jnp.float32)
         + jnp.dot(wj_ref[...], x_j, preferred_element_type=jnp.float32)
         + b_ref[...])
    o_ref[0] = _gelu_exact(y)


@functools.partial(jax.jit, static_argnames=("K", "eps"))
def mrconv4d_forward(x, conv_w, conv_b, gamma, beta, run_mean, run_var, *,
                     K=1, eps=1e-5):
    B, C, D, H, W = x.shape
    Cout = conv_w.shape[0]
    n = D * H * W

    # Fold inference-mode BatchNorm3d into the 1x1x1 conv (tiny param prep).
    scale = gamma / jnp.sqrt(run_var + eps)                    # (Cout,)
    w_fold = conv_w * scale[:, None]                           # (Cout, 2C)
    w_x = w_fold[:, :C]                                        # (Cout, C)
    w_j = w_fold[:, C:]                                        # (Cout, C)
    b_fold = ((conv_b - run_mean) * scale + beta)[:, None]     # (Cout, 1)

    x_flat = x.reshape(B, C, n)        # row-major flatten: free, no transpose

    # Per-step VMEM: (1,C,n) in + (1,Cout,n) out, double-buffered: tens of KiB
    # here, far below v7x's 64 MiB.  TODO(synk): tile the grid over D as well
    # for large production volumes.
    y = pl.pallas_call(
        functools.partial(_mrconv_kernel, K=K, D=D, H=H, W=W),
        out_shape=jax.ShapeDtypeStruct((B, Cout, n), jnp.float32),
        grid_spec=pltpu.PrefetchScalarGridSpec(
            num_scalar_prefetch=0,
            grid=(B,),
            in_specs=[
                pl.BlockSpec((1, C, n), lambda b: (b, 0, 0)),
                pl.BlockSpec((Cout, C), lambda b: (0, 0)),
                pl.BlockSpec((Cout, C), lambda b: (0, 0)),
                pl.BlockSpec((Cout, 1), lambda b: (0, 0)),
            ],
            out_specs=pl.BlockSpec((1, Cout, n), lambda b: (b, 0, 0)),
        ),
        compiler_params=pltpu.CompilerParams(
            dimension_semantics=("parallel",)),       # v7x: 2 TCs split batch
    )(x_flat, w_x, w_j, b_fold)

    return y.reshape(B, Cout, D, H, W)                # free row-major reshape


def _mrconv4d_reference(x, conv_w, conv_b, gamma, beta, run_mean, run_var, *,
                        K=1, eps=1e-5):
    """Pure-JAX mirror of the PyTorch forward (inference-mode BatchNorm)."""
    B, C, D, H, W = x.shape
    xr = jnp.roll(x, (-(-D // 2), -(-H // 2), -(-W // 2)), axis=(2, 3, 4))
    norm = jnp.sum(jnp.abs(x - xr), axis=1, keepdims=True)
    mean = jnp.mean(norm, axis=(2, 3, 4), keepdims=True)
    std = jnp.std(norm, axis=(2, 3, 4), keepdims=True, ddof=1)
    thr = mean - std

    x_j = jnp.zeros_like(x)
    for axis, size in ((2, D), (3, H), (4, W)):
        for s in range(0, size, K):
            xr = jnp.roll(x, s, axis=axis)
            dist = jnp.sum(jnp.abs(x - xr), axis=1, keepdims=True)
            x_j = jnp.maximum(x_j, jnp.where(dist < thr, xr - x, 0.0))

    feat = jnp.concatenate([x, x_j], axis=1)                   # (B, 2C, D, H, W)
    y = (jnp.einsum("oc,bcdhw->bodhw", conv_w, feat)
         + conv_b[None, :, None, None, None])
    inv = (gamma / jnp.sqrt(run_var + eps))[None, :, None, None, None]
    y = (y - run_mean[None, :, None, None, None]) * inv \
        + beta[None, :, None, None, None]
    return jax.nn.gelu(y, approximate=False)


if __name__ == "__main__":
    key = jax.random.PRNGKey(0)
    kx, kw, kb, kg, kbt, km, kv = jax.random.split(key, 7)

    B, C, D, H, W = 2, 4, 8, 8, 8     # x: (B, C, D, H, W)
    Cout, K = 8, 1

    x = jax.random.normal(kx, (B, C, D, H, W), dtype=jnp.float32)

    # Conv3d(in_channels*2, out_channels, 1): weight (Cout, 2C, 1,1,1) -> (Cout, 2C)
    conv_w = 0.2 * jax.random.normal(kw, (Cout, 2 * C), dtype=jnp.float32)
    conv_b = 0.1 * jax.random.normal(kb, (Cout,), dtype=jnp.float32)

    # BatchNorm3d(out_channels): affine params + running stats (inference mode)
    gamma = 1.0 + 0.1 * jax.random.normal(kg, (Cout,), dtype=jnp.float32)
    beta = 0.1 * jax.random.normal(kbt, (Cout,), dtype=jnp.float32)
    run_mean = 0.1 * jax.random.normal(km, (Cout,), dtype=jnp.float32)
    run_var = 1.0 + 0.1 * jax.nn.softplus(
        jax.random.normal(kv, (Cout,), dtype=jnp.float32))

    out = mrconv4d_forward(x, conv_w, conv_b, gamma, beta, run_mean, run_var, K=K)
    jax.block_until_ready(out)
    assert out.shape == (B, Cout, D, H, W) and out.dtype == jnp.float32

    ref = _mrconv4d_reference(x, conv_w, conv_b, gamma, beta,
                              run_mean, run_var, K=K)
    np.testing.assert_allclose(np.asarray(out), np.asarray(ref),
                               atol=1e-3, rtol=1e-3)
    print("KERNEL_OK")
</pallas_src>

<mosaic_0001>
module attributes {stable_mosaic.version = 11 : i64} {
  func.func @_mrconv_kernel(%arg0: i32, %arg1: memref<1x4x512xf32, #tpu.memory_space<vmem>>, %arg2: memref<8x4xf32, #tpu.memory_space<vmem>>, %arg3: memref<8x4xf32, #tpu.memory_space<vmem>>, %arg4: memref<8x1xf32, #tpu.memory_space<vmem>>, %arg5: memref<1x8x512xf32, #tpu.memory_space<vmem>>) attributes {dimension_semantics = [#tpu.dimension_semantics<parallel>], iteration_bounds = array<i64: 2>, scalar_prefetch = 0 : i64, scratch_operands = 0 : i64, tpu.core_type = #tpu.core_type<tc>, window_params = [{transform_indices = @transform_0, window_bounds = array<i64: 1, 4, 512>}, {pipeline_mode = #tpu.pipeline_mode<synchronous>, transform_indices = @transform_1, window_bounds = array<i64: 8, 4>}, {pipeline_mode = #tpu.pipeline_mode<synchronous>, transform_indices = @transform_2, window_bounds = array<i64: 8, 4>}, {pipeline_mode = #tpu.pipeline_mode<synchronous>, transform_indices = @transform_3, window_bounds = array<i64: 8, 1>}, {transform_indices = @transform_4, window_bounds = array<i64: 1, 8, 512>}]} {
    %c0 = arith.constant 0 : index
    %c0_0 = arith.constant 0 : index
    %c0_1 = arith.constant 0 : index
    %0 = vector.load %arg1[%c0, %c0_0, %c0_1] : memref<1x4x512xf32, #tpu.memory_space<vmem>>, vector<1x4x512xf32>
    %1 = vector.shape_cast %0 : vector<1x4x512xf32> to vector<4x512xf32>
    %2 = tpu.iota {dimensions = array<i32: 1>} : vector<1x512xi32>
    %c64_i32 = arith.constant 64 : i32
    %c0_i32 = arith.constant 0 : i32
    %3 = arith.cmpi eq, %c64_i32, %c0_i32 : i32
    %c1_i32 = arith.constant 1 : i32
    %4 = arith.select %3, %c1_i32, %c64_i32 : i32
    %5 = vector.broadcast %4 : i32 to vector<1x512xi32>
    %6 = arith.remsi %2, %5 : vector<1x512xi32>
    %c0_i32_2 = arith.constant 0 : i32
    %7 = vector.broadcast %c0_i32_2 : i32 to vector<1x512xi32>
    %8 = arith.cmpi ne, %6, %7 : vector<1x512xi32>
    %c0_i32_3 = arith.constant 0 : i32
    %9 = vector.broadcast %c0_i32_3 : i32 to vector<1x512xi32>
    %10 = arith.cmpi slt, %6, %9 : vector<1x512xi32>
    %c0_i32_4 = arith.constant 0 : i32
    %11 = arith.cmpi slt, %4, %c0_i32_4 : i32
    %12 = vector.broadcast %11 : i1 to vector<1x512xi1>
    %13 = vector.broadcast %12 : vector<1x512xi1> to vector<1x512xi1>
    %14 = arith.xori %10, %13 : vector<1x512xi1>
    %15 = arith.andi %14, %8 : vector<1x512xi1>
    %16 = vector.broadcast %4 : i32 to vector<1x512xi32>
    %17 = arith.addi %6, %16 : vector<1x512xi32>
    %18 = arith.select %15, %17, %6 : vector<1x512xi1>, vector<1x512xi32>
    %c8_i32 = arith.constant 8 : i32
    %c0_i32_5 = arith.constant 0 : i32
    %19 = arith.cmpi eq, %c8_i32, %c0_i32_5 : i32
    %c1_i32_6 = arith.constant 1 : i32
    %20 = arith.select %19, %c1_i32_6, %c8_i32 : i32
    %21 = vector.broadcast %20 : i32 to vector<1x512xi32>
    %22 = arith.remsi %2, %21 : vector<1x512xi32>
    %c0_i32_7 = arith.constant 0 : i32
    %23 = vector.broadcast %c0_i32_7 : i32 to vector<1x512xi32>
    %24 = arith.cmpi ne, %22, %23 : vector<1x512xi32>
    %c0_i32_8 = arith.constant 0 : i32
    %25 = vector.broadcast %c0_i32_8 : i32 to vector<1x512xi32>
    %26 = arith.cmpi slt, %22, %25 : vector<1x512xi32>
    %c0_i32_9 = arith.constant 0 : i32
    %27 = arith.cmpi slt, %20, %c0_i32_9 : i32
    %28 = vector.broadcast %27 : i1 to vector<1x512xi1>
    %29 = vector.broadcast %28 : vector<1x512xi1> to vector<1x512xi1>
    %30 = arith.xori %26, %29 : vector<1x512xi1>
    %31 = arith.andi %30, %24 : vector<1x512xi1>
    %32 = vector.broadcast %20 : i32 to vector<1x512xi32>
    %33 = arith.addi %22, %32 : vector<1x512xi32>
    %34 = arith.select %31, %33, %22 : vector<1x512xi1>, vector<1x512xi32>
    %c256_i32 = arith.constant 256 : i32
    %35 = tpu.dynamic_rotate %1 by %c256_i32 dim 1 : vector<4x512xf32>, i32 -> vector<4x512xf32>
    %c32_i32 = arith.constant 32 : i32
    %36 = tpu.dynamic_rotate %35 by %c32_i32 dim 1 : vector<4x512xf32>, i32 -> vector<4x512xf32>
    %c480_i32 = arith.constant 480 : i32
    %37 = tpu.dynamic_rotate %35 by %c480_i32 dim 1 : vector<4x512xf32>, i32 -> vector<4x512xf32>
    %c32_i32_10 = arith.constant 32 : i32
    %38 = vector.broadcast %c32_i32_10 : i32 to vector<1x512xi32>
    %39 = arith.cmpi sge, %18, %38 : vector<1x512xi32>
    %40 = vector.shape_cast %39 : vector<1x512xi1> to vector<1x512xi1>
    %41 = vector.broadcast %40 : vector<1x512xi1> to vector<4x512xi1>
    %42 = arith.select %41, %36, %37 : vector<4x512xi1>, vector<4x512xf32>
    %c4_i32 = arith.constant 4 : i32
    %43 = tpu.dynamic_rotate %42 by %c4_i32 dim 1 : vector<4x512xf32>, i32 -> vector<4x512xf32>
    %c508_i32 = arith.constant 508 : i32
    %44 = tpu.dynamic_rotate %42 by %c508_i32 dim 1 : vector<4x512xf32>, i32 -> vector<4x512xf32>
    %c4_i32_11 = arith.constant 4 : i32
    %45 = vector.broadcast %c4_i32_11 : i32 to vector<1x512xi32>
    %46 = arith.cmpi sge, %34, %45 : vector<1x512xi32>
    %47 = vector.shape_cast %46 : vector<1x512xi1> to vector<1x512xi1>
    %48 = vector.broadcast %47 : vector<1x512xi1> to vector<4x512xi1>
    %49 = arith.select %48, %43, %44 : vector<4x512xi1>, vector<4x512xf32>
    %50 = arith.subf %1, %49 : vector<4x512xf32>
    %51 = math.absf %50 : vector<4x512xf32>
    %cst = arith.constant dense<0.000000e+00> : vector<512xf32>
    %52 = vector.multi_reduction <add>, %51, %cst [0] : vector<4x512xf32> to vector<512xf32>
    %53 = vector.shape_cast %52 : vector<512xf32> to vector<1x512xf32>
    %54 = vector.shape_cast %53 : vector<1x512xf32> to vector<1x1x512xf32>
    %cst_12 = arith.constant dense<0.000000e+00> : vector<1xf32>
    %55 = vector.multi_reduction <add>, %54, %cst_12 [1, 2] : vector<1x1x512xf32> to vector<1xf32>
    %56 = vector.shape_cast %55 : vector<1xf32> to vector<1x1x1xf32>
    %57 = vector.extract %56[0, 0, 0] : f32 from vector<1x1x1xf32>
    %58 = vector.broadcast %57 : f32 to vector<1x1xf32>
    %cst_13 = arith.constant 5.120000e+02 : f32
    %59 = vector.broadcast %cst_13 : f32 to vector<1x1xf32>
    %60 = arith.divf %58, %59 : vector<1x1xf32>
    %61 = vector.broadcast %60 : vector<1x1xf32> to vector<1x512xf32>
    %62 = arith.subf %53, %61 : vector<1x512xf32>
    %63 = arith.mulf %62, %62 : vector<1x512xf32>
    %64 = vector.shape_cast %63 : vector<1x512xf32> to vector<1x1x512xf32>
    %cst_14 = arith.constant dense<0.000000e+00> : vector<1xf32>
    %65 = vector.multi_reduction <add>, %64, %cst_14 [1, 2] : vector<1x1x512xf32> to vector<1xf32>
    %66 = vector.shape_cast %65 : vector<1xf32> to vector<1x1x1xf32>
    %67 = vector.extract %66[0, 0, 0] : f32 from vector<1x1x1xf32>
    %68 = vector.broadcast %67 : f32 to vector<1x1xf32>
    %cst_15 = arith.constant 5.110000e+02 : f32
    %69 = vector.broadcast %cst_15 : f32 to vector<1x1xf32>
    %70 = arith.divf %68, %69 : vector<1x1xf32>
    %71 = math.sqrt %70 : vector<1x1xf32>
    %72 = arith.subf %60, %71 : vector<1x1xf32>
    %cst_16 = arith.constant 0.000000e+00 : f32
    %73 = vector.broadcast %cst_16 : f32 to vector<4x512xf32>
    %c64_i32_17 = arith.constant 64 : i32
    %74 = tpu.dynamic_rotate %1 by %c64_i32_17 dim 1 : vector<4x512xf32>, i32 -> vector<4x512xf32>
    %75 = arith.subf %1, %74 : vector<4x512xf32>
    %76 = math.absf %75 : vector<4x512xf32>
    %cst_18 = arith.constant dense<0.000000e+00> : vector<512xf32>
    %77 = vector.multi_reduction <add>, %76, %cst_18 [0] : vector<4x512xf32> to vector<512xf32>
    %78 = vector.shape_cast %77 : vector<512xf32> to vector<1x512xf32>
    %79 = vector.broadcast %72 : vector<1x1xf32> to vector<1x512xf32>
    %80 = arith.cmpf olt, %78, %79 : vector<1x512xf32>
    %81 = arith.subf %74, %1 : vector<4x512xf32>
    %cst_19 = arith.constant 0.000000e+00 : f32
    %82 = vector.shape_cast %80 : vector<1x512xi1> to vector<1x512xi1>
    %83 = vector.broadcast %82 : vector<1x512xi1> to vector<4x512xi1>
    %84 = vector.broadcast %cst_19 : f32 to vector<4x512xf32>
    %85 = arith.select %83, %81, %84 : vector<4x512xi1>, vector<4x512xf32>
    %86 = arith.maximumf %73, %85 : vector<4x512xf32>
    %c128_i32 = arith.constant 128 : i32
    %87 = tpu.dynamic_rotate %1 by %c128_i32 dim 1 : vector<4x512xf32>, i32 -> vector<4x512xf32>
    %88 = arith.subf %1, %87 : vector<4x512xf32>
    %89 = math.absf %88 : vector<4x512xf32>
    %cst_20 = arith.constant dense<0.000000e+00> : vector<512xf32>
    %90 = vector.multi_reduction <add>, %89, %cst_20 [0] : vector<4x512xf32> to vector<512xf32>
    %91 = vector.shape_cast %90 : vector<512xf32> to vector<1x512xf32>
    %92 = vector.broadcast %72 : vector<1x1xf32> to vector<1x512xf32>
    %93 = arith.cmpf olt, %91, %92 : vector<1x512xf32>
    %94 = arith.subf %87, %1 : vector<4x512xf32>
    %cst_21 = arith.constant 0.000000e+00 : f32
    %95 = vector.shape_cast %93 : vector<1x512xi1> to vector<1x512xi1>
    %96 = vector.broadcast %95 : vector<1x512xi1> to vector<4x512xi1>
    %97 = vector.broadcast %cst_21 : f32 to vector<4x512xf32>
    %98 = arith.select %96, %94, %97 : vector<4x512xi1>, vector<4x512xf32>
    %99 = arith.maximumf %86, %98 : vector<4x512xf32>
    %c192_i32 = arith.constant 192 : i32
    %100 = tpu.dynamic_rotate %1 by %c192_i32 dim 1 : vector<4x512xf32>, i32 -> vector<4x512xf32>
    %101 = arith.subf %1, %100 : vector<4x512xf32>
    %102 = math.absf %101 : vector<4x512xf32>
    %cst_22 = arith.constant dense<0.000000e+00> : vector<512xf32>
    %103 = vector.multi_reduction <add>, %102, %cst_22 [0] : vector<4x512xf32> to vector<512xf32>
    %104 = vector.shape_cast %103 : vector<512xf32> to vector<1x512xf32>
    %105 = vector.broadcast %72 : vector<1x1xf32> to vector<1x512xf32>
    %106 = arith.cmpf olt, %104, %105 : vector<1x512xf32>
    %107 = arith.subf %100, %1 : vector<4x512xf32>
    %cst_23 = arith.constant 0.000000e+00 : f32
    %108 = vector.shape_cast %106 : vector<1x512xi1> to vector<1x512xi1>
    %109 = vector.broadcast %108 : vector<1x512xi1> to vector<4x512xi1>
    %110 = vector.broadcast %cst_23 : f32 to vector<4x512xf32>
    %111 = arith.select %109, %107, %110 : vector<4x512xi1>, vector<4x512xf32>
    %112 = arith.maximumf %99, %111 : vector<4x512xf32>
    %c256_i32_24 = arith.constant 256 : i32
    %113 = tpu.dynamic_rotate %1 by %c256_i32_24 dim 1 : vector<4x512xf32>, i32 -> vector<4x512xf32>
    %114 = arith.subf %1, %113 : vector<4x512xf32>
    %115 = math.absf %114 : vector<4x512xf32>
    %cst_25 = arith.constant dense<0.000000e+00> : vector<512xf32>
    %116 = vector.multi_reduction <add>, %115, %cst_25 [0] : vector<4x512xf32> to vector<512xf32>
    %117 = vector.shape_cast %116 : vector<512xf32> to vector<1x512xf32>
    %118 = vector.broadcast %72 : vector<1x1xf32> to vector<1x512xf32>
    %119 = arith.cmpf olt, %117, %118 : vector<1x512xf32>
    %120 = arith.subf %113, %1 : vector<4x512xf32>
    %cst_26 = arith.constant 0.000000e+00 : f32
    %121 = vector.shape_cast %119 : vector<1x512xi1> to vector<1x512xi1>
    %122 = vector.broadcast %121 : vector<1x512xi1> to vector<4x512xi1>
    %123 = vector.broadcast %cst_26 : f32 to vector<4x512xf32>
    %124 = arith.select %122, %120, %123 : vector<4x512xi1>, vector<4x512xf32>
    %125 = arith.maximumf %112, %124 : vector<4x512xf32>
    %c320_i32 = arith.constant 320 : i32
    %126 = tpu.dynamic_rotate %1 by %c320_i32 dim 1 : vector<4x512xf32>, i32 -> vector<4x512xf32>
    %127 = arith.subf %1, %126 : vector<4x512xf32>
    %128 = math.absf %127 : vector<4x512xf32>
    %cst_27 = arith.constant dense<0.000000e+00> : vector<512xf32>
    %129 = vector.multi_reduction <add>, %128, %cst_27 [0] : vector<4x512xf32> to vector<512xf32>
    %130 = vector.shape_cast %129 : vector<512xf32> to vector<1x512xf32>
    %131 = vector.broadcast %72 : vector<1x1xf32> to vector<1x512xf32>
    %132 = arith.cmpf olt, %130, %131 : vector<1x512xf32>
    %133 = arith.subf %126, %1 : vector<4x512xf32>
    %cst_28 = arith.constant 0.000000e+00 : f32
    %134 = vector.shape_cast %132 : vector<1x512xi1> to vector<1x512xi1>
    %135 = vector.broadcast %134 : vector<1x512xi1> to vector<4x512xi1>
    %136 = vector.broadcast %cst_28 : f32 to vector<4x512xf32>
    %137 = arith.select %135, %133, %136 : vector<4x512xi1>, vector<4x512xf32>
    %138 = arith.maximumf %125, %137 : vector<4x512xf32>
    %c384_i32 = arith.constant 384 : i32
    %139 = tpu.dynamic_rotate %1 by %c384_i32 dim 1 : vector<4x512xf32>, i32 -> vector<4x512xf32>
    %140 = arith.subf %1, %139 : vector<4x512xf32>
    %141 = math.absf %140 : vector<4x512xf32>
    %cst_29 = arith.constant dense<0.000000e+00> : vector<512xf32>
    %142 = vector.multi_reduction <add>, %141, %cst_29 [0] : vector<4x512xf32> to vector<512xf32>
    %143 = vector.shape_cast %142 : vector<512xf32> to vector<1x512xf32>
    %144 = vector.broadcast %72 : vector<1x1xf32> to vector<1x512xf32>
    %145 = arith.cmpf olt, %143, %144 : vector<1x512xf32>
    %146 = arith.subf %139, %1 : vector<4x512xf32>
    %cst_30 = arith.constant 0.000000e+00 : f32
    %147 = vector.shape_cast %145 : vector<1x512xi1> to vector<1x512xi1>
    %148 = vector.broadcast %147 : vector<1x512xi1> to vector<4x512xi1>
    %149 = vector.broadcast %cst_30 : f32 to vector<4x512xf32>
    %150 = arith.select %148, %146, %149 : vector<4x512xi1>, vector<4x512xf32>
    %151 = arith.maximumf %138, %150 : vector<4x512xf32>
    %c448_i32 = arith.constant 448 : i32
    %152 = tpu.dynamic_rotate %1 by %c448_i32 dim 1 : vector<4x512xf32>, i32 -> vector<4x512xf32>
    %153 = arith.subf %1, %152 : vector<4x512xf32>
    %154 = math.absf %153 : vector<4x512xf32>
    %cst_31 = arith.constant dense<0.000000e+00> : vector<512xf32>
    %155 = vector.multi_reduction <add>, %154, %cst_31 [0] : vector<4x512xf32> to vector<512xf32>
    %156 = vector.shape_cast %155 : vector<512xf32> to vector<1x512xf32>
    %157 = vector.broadcast %72 : vector<1x1xf32> to vector<1x512xf32>
    %158 = arith.cmpf olt, %156, %157 : vector<1x512xf32>
    %159 = arith.subf %152, %1 : vector<4x512xf32>
    %cst_32 = arith.constant 0.000000e+00 : f32
    %160 = vector.shape_cast %158 : vector<1x512xi1> to vector<1x512xi1>
    %161 = vector.broadcast %160 : vector<1x512xi1> to vector<4x512xi1>
    %162 = vector.broadcast %cst_32 : f32 to vector<4x512xf32>
    %163 = arith.select %161, %159, %162 : vector<4x512xi1>, vector<4x512xf32>
    %164 = arith.maximumf %151, %163 : vector<4x512xf32>
    %c8_i32_33 = arith.constant 8 : i32
    %165 = tpu.dynamic_rotate %1 by %c8_i32_33 dim 1 : vector<4x512xf32>, i32 -> vector<4x512xf32>
    %c456_i32 = arith.constant 456 : i32
    %166 = tpu.dynamic_rotate %1 by %c456_i32 dim 1 : vector<4x512xf32>, i32 -> vector<4x512xf32>
    %c8_i32_34 = arith.constant 8 : i32
    %167 = vector.broadcast %c8_i32_34 : i32 to vector<1x512xi32>
    %168 = arith.cmpi sge, %18, %167 : vector<1x512xi32>
    %169 = vector.shape_cast %168 : vector<1x512xi1> to vector<1x512xi1>
    %170 = vector.broadcast %169 : vector<1x512xi1> to vector<4x512xi1>
    %171 = arith.select %170, %165, %166 : vector<4x512xi1>, vector<4x512xf32>
    %172 = arith.subf %1, %171 : vector<4x512xf32>
    %173 = math.absf %172 : vector<4x512xf32>
    %cst_35 = arith.constant dense<0.000000e+00> : vector<512xf32>
    %174 = vector.multi_reduction <add>, %173, %cst_35 [0] : vector<4x512xf32> to vector<512xf32>
    %175 = vector.shape_cast %174 : vector<512xf32> to vector<1x512xf32>
    %176 = vector.broadcast %72 : vector<1x1xf32> to vector<1x512xf32>
    %177 = arith.cmpf olt, %175, %176 : vector<1x512xf32>
    %178 = arith.subf %171, %1 : vector<4x512xf32>
    %cst_36 = arith.constant 0.000000e+00 : f32
    %179 = vector.shape_cast %177 : vector<1x512xi1> to vector<1x512xi1>
    %180 = vector.broadcast %179 : vector<1x512xi1> to vector<4x512xi1>
    %181 = vector.broadcast %cst_36 : f32 to vector<4x512xf32>
    %182 = arith.select %180, %178, %181 : vector<4x512xi1>, vector<4x512xf32>
    %183 = arith.maximumf %164, %182 : vector<4x512xf32>
    %c16_i32 = arith.constant 16 : i32
    %184 = tpu.dynamic_rotate %1 by %c16_i32 dim 1 : vector<4x512xf32>, i32 -> vector<4x512xf32>
    %c464_i32 = arith.constant 464 : i32
    %185 = tpu.dynamic_rotate %1 by %c464_i32 dim 1 : vector<4x512xf32>, i32 -> vector<4x512xf32>
    %c16_i32_37 = arith.constant 16 : i32
    %186 = vector.broadcast %c16_i32_37 : i32 to vector<1x512xi32>
    %187 = arith.cmpi sge, %18, %186 : vector<1x512xi32>
    %188 = vector.shape_cast %187 : vector<1x512xi1> to vector<1x512xi1>
    %189 = vector.broadcast %188 : vector<1x512xi1> to vector<4x512xi1>
    %190 = arith.select %189, %184, %185 : vector<4x512xi1>, vector<4x512xf32>
    %191 = arith.subf %1, %190 : vector<4x512xf32>
    %192 = math.absf %191 : vector<4x512xf32>
    %cst_38 = arith.constant dense<0.000000e+00> : vector<512xf32>
    %193 = vector.multi_reduction <add>, %192, %cst_38 [0] : vector<4x512xf32> to vector<512xf32>
    %194 = vector.shape_cast %193 : vector<512xf32> to vector<1x512xf32>
    %195 = vector.broadcast %72 : vector<1x1xf32> to vector<1x512xf32>
    %196 = arith.cmpf olt, %194, %195 : vector<1x512xf32>
    %197 = arith.subf %190, %1 : vector<4x512xf32>
    %cst_39 = arith.constant 0.000000e+00 : f32
    %198 = vector.shape_cast %196 : vector<1x512xi1> to vector<1x512xi1>
    %199 = vector.broadcast %198 : vector<1x512xi1> to vector<4x512xi1>
    %200 = vector.broadcast %cst_39 : f32 to vector<4x512xf32>
    %201 = arith.select %199, %197, %200 : vector<4x512xi1>, vector<4x512xf32>
    %202 = arith.maximumf %183, %201 : vector<4x512xf32>
    %c24_i32 = arith.constant 24 : i32
    %203 = tpu.dynamic_rotate %1 by %c24_i32 dim 1 : vector<4x512xf32>, i32 -> vector<4x512xf32>
    %c472_i32 = arith.constant 472 : i32
    %204 = tpu.dynamic_rotate %1 by %c472_i32 dim 1 : vector<4x512xf32>, i32 -> vector<4x512xf32>
    %c24_i32_40 = arith.constant 24 : i32
    %205 = vector.broadcast %c24_i32_40 : i32 to vector<1x512xi32>
    %206 = arith.cmpi sge, %18, %205 : vector<1x512xi32>
    %207 = vector.shape_cast %206 : vector<1x512xi1> to vector<1x512xi1>
    %208 = vector.broadcast %207 : vector<1x512xi1> to vector<4x512xi1>
    %209 = arith.select %208, %203, %204 : vector<4x512xi1>, vector<4x512xf32>
    %210 = arith.subf %1, %209 : vector<4x512xf32>
    %211 = math.absf %210 : vector<4x512xf32>
    %cst_41 = arith.constant dense<0.000000e+00> : vector<512xf32>
    %212 = vector.multi_reduction <add>, %211, %cst_41 [0] : vector<4x512xf32> to vector<512xf32>
    %213 = vector.shape_cast %212 : vector<512xf32> to vector<1x512xf32>
    %214 = vector.broadcast %72 : vector<1x1xf32> to vector<1x512xf32>
    %215 = arith.cmpf olt, %213, %214 : vector<1x512xf32>
    %216 = arith.subf %209, %1 : vector<4x512xf32>
    %cst_42 = arith.constant 0.000000e+00 : f32
    %217 = vector.shape_cast %215 : vector<1x512xi1> to vector<1x512xi1>
    %218 = vector.broadcast %217 : vector<1x512xi1> to vector<4x512xi1>
    %219 = vector.broadcast %cst_42 : f32 to vector<4x512xf32>
    %220 = arith.select %218, %216, %219 : vector<4x512xi1>, vector<4x512xf32>
    %221 = arith.maximumf %202, %220 : vector<4x512xf32>
    %c32_i32_43 = arith.constant 32 : i32
    %222 = tpu.dynamic_rotate %1 by %c32_i32_43 dim 1 : vector<4x512xf32>, i32 -> vector<4x512xf32>
    %c480_i32_44 = arith.constant 480 : i32
    %223 = tpu.dynamic_rotate %1 by %c480_i32_44 dim 1 : vector<4x512xf32>, i32 -> vector<4x512xf32>
    %c32_i32_45 = arith.constant 32 : i32
    %224 = vector.broadcast %c32_i32_45 : i32 to vector<1x512xi32>
    %225 = arith.cmpi sge, %18, %224 : vector<1x512xi32>
    %226 = vector.shape_cast %225 : vector<1x512xi1> to vector<1x512xi1>
    %227 = vector.broadcast %226 : vector<1x512xi1> to vector<4x512xi1>
    %228 = arith.select %227, %222, %223 : vector<4x512xi1>, vector<4x512xf32>
    %229 = arith.subf %1, %228 : vector<4x512xf32>
    %230 = math.absf %229 : vector<4x512xf32>
    %cst_46 = arith.constant dense<0.000000e+00> : vector<512xf32>
    %231 = vector.multi_reduction <add>, %230, %cst_46 [0] : vector<4x512xf32> to vector<512xf32>
    %232 = vector.shape_cast %231 : vector<512xf32> to vector<1x512xf32>
    %233 = vector.broadcast %72 : vector<1x1xf32> to vector<1x512xf32>
    %234 = arith.cmpf olt, %232, %233 : vector<1x512xf32>
    %235 = arith.subf %228, %1 : vector<4x512xf32>
    %cst_47 = arith.constant 0.000000e+00 : f32
    %236 = vector.shape_cast %234 : vector<1x512xi1> to vector<1x512xi1>
    %237 = vector.broadcast %236 : vector<1x512xi1> to vector<4x512xi1>
    %238 = vector.broadcast %cst_47 : f32 to vector<4x512xf32>
    %239 = arith.select %237, %235, %238 : vector<4x512xi1>, vector<4x512xf32>
    %240 = arith.maximumf %221, %239 : vector<4x512xf32>
    %c40_i32 = arith.constant 40 : i32
    %241 = tpu.dynamic_rotate %1 by %c40_i32 dim 1 : vector<4x512xf32>, i32 -> vector<4x512xf32>
    %c488_i32 = arith.constant 488 : i32
    %242 = tpu.dynamic_rotate %1 by %c488_i32 dim 1 : vector<4x512xf32>, i32 -> vector<4x512xf32>
    %c40_i32_48 = arith.constant 40 : i32
    %243 = vector.broadcast %c40_i32_48 : i32 to vector<1x512xi32>
    %244 = arith.cmpi sge, %18, %243 : vector<1x512xi32>
    %245 = vector.shape_cast %244 : vector<1x512xi1> to vector<1x512xi1>
    %246 = vector.broadcast %245 : vector<1x512xi1> to vector<4x512xi1>
    %247 = arith.select %246, %241, %242 : vector<4x512xi1>, vector<4x512xf32>
    %248 = arith.subf %1, %247 : vector<4x512xf32>
    %249 = math.absf %248 : vector<4x512xf32>
    %cst_49 = arith.constant dense<0.000000e+00> : vector<512xf32>
    %250 = vector.multi_reduction <add>, %249, %cst_49 [0] : vector<4x512xf32> to vector<512xf32>
    %251 = vector.shape_cast %250 : vector<512xf32> to vector<1x512xf32>
    %252 = vector.broadcast %72 : vector<1x1xf32> to vector<1x512xf32>
    %253 = arith.cmpf olt, %251, %252 : vector<1x512xf32>
    %254 = arith.subf %247, %1 : vector<4x512xf32>
    %cst_50 = arith.constant 0.000000e+00 : f32
    %255 = vector.shape_cast %253 : vector<1x512xi1> to vector<1x512xi1>
    %256 = vector.broadcast %255 : vector<1x512xi1> to vector<4x512xi1>
    %257 = vector.broadcast %cst_50 : f32 to vector<4x512xf32>
    %258 = arith.select %256, %254, %257 : vector<4x512xi1>, vector<4x512xf32>
    %259 = arith.maximumf %240, %258 : vector<4x512xf32>
    %c48_i32 = arith.constant 48 : i32
    %260 = tpu.dynamic_rotate %1 by %c48_i32 dim 1 : vector<4x512xf32>, i32 -> vector<4x512xf32>
    %c496_i32 = arith.constant 496 : i32
    %261 = tpu.dynamic_rotate %1 by %c496_i32 dim 1 : vector<4x512xf32>, i32 -> vector<4x512xf32>
    %c48_i32_51 = arith.constant 48 : i32
    %262 = vector.broadcast %c48_i32_51 : i32 to vector<1x512xi32>
    %263 = arith.cmpi sge, %18, %262 : vector<1x512xi32>
    %264 = vector.shape_cast %263 : vector<1x512xi1> to vector<1x512xi1>
    %265 = vector.broadcast %264 : vector<1x512xi1> to vector<4x512xi1>
    %266 = arith.select %265, %260, %261 : vector<4x512xi1>, vector<4x512xf32>
    %267 = arith.subf %1, %266 : vector<4x512xf32>
    %268 = math.absf %267 : vector<4x512xf32>
    %cst_52 = arith.constant dense<0.000000e+00> : vector<512xf32>
    %269 = vector.multi_reduction <add>, %268, %cst_52 [0] : vector<4x512xf32> to vector<512xf32>
    %270 = vector.shape_cast %269 : vector<512xf32> to vector<1x512xf32>
    %271 = vector.broadcast %72 : vector<1x1xf32> to vector<1x512xf32>
    %272 = arith.cmpf olt, %270, %271 : vector<1x512xf32>
    %273 = arith.subf %266, %1 : vector<4x512xf32>
    %cst_53 = arith.constant 0.000000e+00 : f32
    %274 = vector.shape_cast %272 : vector<1x512xi1> to vector<1x512xi1>
    %275 = vector.broadcast %274 : vector<1x512xi1> to vector<4x512xi1>
    %276 = vector.broadcast %cst_53 : f32 to vector<4x512xf32>
    %277 = arith.select %275, %273, %276 : vector<4x512xi1>, vector<4x512xf32>
    %278 = arith.maximumf %259, %277 : vector<4x512xf32>
    %c56_i32 = arith.constant 56 : i32
    %279 = tpu.dynamic_rotate %1 by %c56_i32 dim 1 : vector<4x512xf32>, i32 -> vector<4x512xf32>
    %c504_i32 = arith.constant 504 : i32
    %280 = tpu.dynamic_rotate %1 by %c504_i32 dim 1 : vector<4x512xf32>, i32 -> vector<4x512xf32>
    %c56_i32_54 = arith.constant 56 : i32
    %281 = vector.broadcast %c56_i32_54 : i32 to vector<1x512xi32>
    %282 = arith.cmpi sge, %18, %281 : vector<1x512xi32>
    %283 = vector.shape_cast %282 : vector<1x512xi1> to vector<1x512xi1>
    %284 = vector.broadcast %283 : vector<1x512xi1> to vector<4x512xi1>
    %285 = arith.select %284, %279, %280 : vector<4x512xi1>, vector<4x512xf32>
    %286 = arith.subf %1, %285 : vector<4x512xf32>
    %287 = math.absf %286 : vector<4x512xf32>
    %cst_55 = arith.constant dense<0.000000e+00> : vector<512xf32>
    %288 = vector.multi_reduction <add>, %287, %cst_55 [0] : vector<4x512xf32> to vector<512xf32>
    %289 = vector.shape_cast %288 : vector<512xf32> to vector<1x512xf32>
    %290 = vector.broadcast %72 : vector<1x1xf32> to vector<1x512xf32>
    %291 = arith.cmpf olt, %289, %290 : vector<1x512xf32>
    %292 = arith.subf %285, %1 : vector<4x512xf32>
    %cst_56 = arith.constant 0.000000e+00 : f32
    %293 = vector.shape_cast %291 : vector<1x512xi1> to vector<1x512xi1>
    %294 = vector.broadcast %293 : vector<1x512xi1> to vector<4x512xi1>
    %295 = vector.broadcast %cst_56 : f32 to vector<4x512xf32>
    %296 = arith.select %294, %292, %295 : vector<4x512xi1>, vector<4x512xf32>
    %297 = arith.maximumf %278, %296 : vector<4x512xf32>
    %c1_i32_57 = arith.constant 1 : i32
    %298 = tpu.dynamic_rotate %1 by %c1_i32_57 dim 1 : vector<4x512xf32>, i32 -> vector<4x512xf32>
    %c505_i32 = arith.constant 505 : i32
    %299 = tpu.dynamic_rotate %1 by %c505_i32 dim 1 : vector<4x512xf32>, i32 -> vector<4x512xf32>
    %c1_i32_58 = arith.constant 1 : i32
    %300 = vector.broadcast %c1_i32_58 : i32 to vector<1x512xi32>
    %301 = arith.cmpi sge, %34, %300 : vector<1x512xi32>
    %302 = vector.shape_cast %301 : vector<1x512xi1> to vector<1x512xi1>
    %303 = vector.broadcast %302 : vector<1x512xi1> to vector<4x512xi1>
    %304 = arith.select %303, %298, %299 : vector<4x512xi1>, vector<4x512xf32>
    %305 = arith.subf %1, %304 : vector<4x512xf32>
    %306 = math.absf %305 : vector<4x512xf32>
    %cst_59 = arith.constant dense<0.000000e+00> : vector<512xf32>
    %307 = vector.multi_reduction <add>, %306, %cst_59 [0] : vector<4x512xf32> to vector<512xf32>
    %308 = vector.shape_cast %307 : vector<512xf32> to vector<1x512xf32>
    %309 = vector.broadcast %72 : vector<1x1xf32> to vector<1x512xf32>
    %310 = arith.cmpf olt, %308, %309 : vector<1x512xf32>
    %311 = arith.subf %304, %1 : vector<4x512xf32>
    %cst_60 = arith.constant 0.000000e+00 : f32
    %312 = vector.shape_cast %310 : vector<1x512xi1> to vector<1x512xi1>
    %313 = vector.broadcast %312 : vector<1x512xi1> to vector<4x512xi1>
    %314 = vector.broadcast %cst_60 : f32 to vector<4x512xf32>
    %315 = arith.select %313, %311, %314 : vector<4x512xi1>, vector<4x512xf32>
    %316 = arith.maximumf %297, %315 : vector<4x512xf32>
    %c2_i32 = arith.constant 2 : i32
    %317 = tpu.dynamic_rotate %1 by %c2_i32 dim 1 : vector<4x512xf32>, i32 -> vector<4x512xf32>
    %c506_i32 = arith.constant 506 : i32
    %318 = tpu.dynamic_rotate %1 by %c506_i32 dim 1 : vector<4x512xf32>, i32 -> vector<4x512xf32>
    %c2_i32_61 = arith.constant 2 : i32
    %319 = vector.broadcast %c2_i32_61 : i32 to vector<1x512xi32>
    %320 = arith.cmpi sge, %34, %319 : vector<1x512xi32>
    %321 = vector.shape_cast %320 : vector<1x512xi1> to vector<1x512xi1>
    %322 = vector.broadcast %321 : vector<1x512xi1> to vector<4x512xi1>
    %323 = arith.select %322, %317, %318 : vector<4x512xi1>, vector<4x512xf32>
    %324 = arith.subf %1, %323 : vector<4x512xf32>
    %325 = math.absf %324 : vector<4x512xf32>
    %cst_62 = arith.constant dense<0.000000e+00> : vector<512xf32>
    %326 = vector.multi_reduction <add>, %325, %cst_62 [0] : vector<4x512xf32> to vector<512xf32>
    %327 = vector.shape_cast %326 : vector<512xf32> to vector<1x512xf32>
    %328 = vector.broadcast %72 : vector<1x1xf32> to vector<1x512xf32>
    %329 = arith.cmpf olt, %327, %328 : vector<1x512xf32>
    %330 = arith.subf %323, %1 : vector<4x512xf32>
    %cst_63 = arith.constant 0.000000e+00 : f32
    %331 = vector.shape_cast %329 : vector<1x512xi1> to vector<1x512xi1>
    %332 = vector.broadcast %331 : vector<1x512xi1> to vector<4x512xi1>
    %333 = vector.broadcast %cst_63 : f32 to vector<4x512xf32>
    %334 = arith.select %332, %330, %333 : vector<4x512xi1>, vector<4x512xf32>
    %335 = arith.maximumf %316, %334 : vector<4x512xf32>
    %c3_i32 = arith.constant 3 : i32
    %336 = tpu.dynamic_rotate %1 by %c3_i32 dim 1 : vector<4x512xf32>, i32 -> vector<4x512xf32>
    %c507_i32 = arith.constant 507 : i32
    %337 = tpu.dynamic_rotate %1 by %c507_i32 dim 1 : vector<4x512xf32>, i32 -> vector<4x512xf32>
    %c3_i32_64 = arith.constant 3 : i32
    %338 = vector.broadcast %c3_i32_64 : i32 to vector<1x512xi32>
    %339 = arith.cmpi sge, %34, %338 : vector<1x512xi32>
    %340 = vector.shape_cast %339 : vector<1x512xi1> to vector<1x512xi1>
    %341 = vector.broadcast %340 : vector<1x512xi1> to vector<4x512xi1>
    %342 = arith.select %341, %336, %337 : vector<4x512xi1>, vector<4x512xf32>
    %343 = arith.subf %1, %342 : vector<4x512xf32>
    %344 = math.absf %343 : vector<4x512xf32>
    %cst_65 = arith.constant dense<0.000000e+00> : vector<512xf32>
    %345 = vector.multi_reduction <add>, %344, %cst_65 [0] : vector<4x512xf32> to vector<512xf32>
    %346 = vector.shape_cast %345 : vector<512xf32> to vector<1x512xf32>
    %347 = vector.broadcast %72 : vector<1x1xf32> to vector<1x512xf32>
    %348 = arith.cmpf olt, %346, %347 : vector<1x512xf32>
    %349 = arith.subf %342, %1 : vector<4x512xf32>
    %cst_66 = arith.constant 0.000000e+00 : f32
    %350 = vector.shape_cast %348 : vector<1x512xi1> to vector<1x512xi1>
    %351 = vector.broadcast %350 : vector<1x512xi1> to vector<4x512xi1>
    %352 = vector.broadcast %cst_66 : f32 to vector<4x512xf32>
    %353 = arith.select %351, %349, %352 : vector<4x512xi1>, vector<4x512xf32>
    %354 = arith.maximumf %335, %353 : vector<4x512xf32>
    %c4_i32_67 = arith.constant 4 : i32
    %355 = tpu.dynamic_rotate %1 by %c4_i32_67 dim 1 : vector<4x512xf32>, i32 -> vector<4x512xf32>
    %c508_i32_68 = arith.constant 508 : i32
    %356 = tpu.dynamic_rotate %1 by %c508_i32_68 dim 1 : vector<4x512xf32>, i32 -> vector<4x512xf32>
    %c4_i32_69 = arith.constant 4 : i32
    %357 = vector.broadcast %c4_i32_69 : i32 to vector<1x512xi32>
    %358 = arith.cmpi sge, %34, %357 : vector<1x512xi32>
    %359 = vector.shape_cast %358 : vector<1x512xi1> to vector<1x512xi1>
    %360 = vector.broadcast %359 : vector<1x512xi1> to vector<4x512xi1>
    %361 = arith.select %360, %355, %356 : vector<4x512xi1>, vector<4x512xf32>
    %362 = arith.subf %1, %361 : vector<4x512xf32>
    %363 = math.absf %362 : vector<4x512xf32>
    %cst_70 = arith.constant dense<0.000000e+00> : vector<512xf32>
    %364 = vector.multi_reduction <add>, %363, %cst_70 [0] : vector<4x512xf32> to vector<512xf32>
    %365 = vector.shape_cast %364 : vector<512xf32> to vector<1x512xf32>
    %366 = vector.broadcast %72 : vector<1x1xf32> to vector<1x512xf32>
    %367 = arith.cmpf olt, %365, %366 : vector<1x512xf32>
    %368 = arith.subf %361, %1 : vector<4x512xf32>
    %cst_71 = arith.constant 0.000000e+00 : f32
    %369 = vector.shape_cast %367 : vector<1x512xi1> to vector<1x512xi1>
    %370 = vector.broadcast %369 : vector<1x512xi1> to vector<4x512xi1>
    %371 = vector.broadcast %cst_71 : f32 to vector<4x512xf32>
    %372 = arith.select %370, %368, %371 : vector<4x512xi1>, vector<4x512xf32>
    %373 = arith.maximumf %354, %372 : vector<4x512xf32>
    %c5_i32 = arith.constant 5 : i32
    %374 = tpu.dynamic_rotate %1 by %c5_i32 dim 1 : vector<4x512xf32>, i32 -> vector<4x512xf32>
    %c509_i32 = arith.constant 509 : i32
    %375 = tpu.dynamic_rotate %1 by %c509_i32 dim 1 : vector<4x512xf32>, i32 -> vector<4x512xf32>
    %c5_i32_72 = arith.constant 5 : i32
    %376 = vector.broadcast %c5_i32_72 : i32 to vector<1x512xi32>
    %377 = arith.cmpi sge, %34, %376 : vector<1x512xi32>
    %378 = vector.shape_cast %377 : vector<1x512xi1> to vector<1x512xi1>
    %379 = vector.broadcast %378 : vector<1x512xi1> to vector<4x512xi1>
    %380 = arith.select %379, %374, %375 : vector<4x512xi1>, vector<4x512xf32>
    %381 = arith.subf %1, %380 : vector<4x512xf32>
    %382 = math.absf %381 : vector<4x512xf32>
    %cst_73 = arith.constant dense<0.000000e+00> : vector<512xf32>
    %383 = vector.multi_reduction <add>, %382, %cst_73 [0] : vector<4x512xf32> to vector<512xf32>
    %384 = vector.shape_cast %383 : vector<512xf32> to vector<1x512xf32>
    %385 = vector.broadcast %72 : vector<1x1xf32> to vector<1x512xf32>
    %386 = arith.cmpf olt, %384, %385 : vector<1x512xf32>
    %387 = arith.subf %380, %1 : vector<4x512xf32>
    %cst_74 = arith.constant 0.000000e+00 : f32
    %388 = vector.shape_cast %386 : vector<1x512xi1> to vector<1x512xi1>
    %389 = vector.broadcast %388 : vector<1x512xi1> to vector<4x512xi1>
    %390 = vector.broadcast %cst_74 : f32 to vector<4x512xf32>
    %391 = arith.select %389, %387, %390 : vector<4x512xi1>, vector<4x512xf32>
    %392 = arith.maximumf %373, %391 : vector<4x512xf32>
    %c6_i32 = arith.constant 6 : i32
    %393 = tpu.dynamic_rotate %1 by %c6_i32 dim 1 : vector<4x512xf32>, i32 -> vector<4x512xf32>
    %c510_i32 = arith.constant 510 : i32
    %394 = tpu.dynamic_rotate %1 by %c510_i32 dim 1 : vector<4x512xf32>, i32 -> vector<4x512xf32>
    %c6_i32_75 = arith.constant 6 : i32
    %395 = vector.broadcast %c6_i32_75 : i32 to vector<1x512xi32>
    %396 = arith.cmpi sge, %34, %395 : vector<1x512xi32>
    %397 = vector.shape_cast %396 : vector<1x512xi1> to vector<1x512xi1>
    %398 = vector.broadcast %397 : vector<1x512xi1> to vector<4x512xi1>
    %399 = arith.select %398, %393, %394 : vector<4x512xi1>, vector<4x512xf32>
    %400 = arith.subf %1, %399 : vector<4x512xf32>
    %401 = math.absf %400 : vector<4x512xf32>
    %cst_76 = arith.constant dense<0.000000e+00> : vector<512xf32>
    %402 = vector.multi_reduction <add>, %401, %cst_76 [0] : vector<4x512xf32> to vector<512xf32>
    %403 = vector.shape_cast %402 : vector<512xf32> to vector<1x512xf32>
    %404 = vector.broadcast %72 : vector<1x1xf32> to vector<1x512xf32>
    %405 = arith.cmpf olt, %403, %404 : vector<1x512xf32>
    %406 = arith.subf %399, %1 : vector<4x512xf32>
    %cst_77 = arith.constant 0.000000e+00 : f32
    %407 = vector.shape_cast %405 : vector<1x512xi1> to vector<1x512xi1>
    %408 = vector.broadcast %407 : vector<1x512xi1> to vector<4x512xi1>
    %409 = vector.broadcast %cst_77 : f32 to vector<4x512xf32>
    %410 = arith.select %408, %406, %409 : vector<4x512xi1>, vector<4x512xf32>
    %411 = arith.maximumf %392, %410 : vector<4x512xf32>
    %c7_i32 = arith.constant 7 : i32
    %412 = tpu.dynamic_rotate %1 by %c7_i32 dim 1 : vector<4x512xf32>, i32 -> vector<4x512xf32>
    %c511_i32 = arith.constant 511 : i32
    %413 = tpu.dynamic_rotate %1 by %c511_i32 dim 1 : vector<4x512xf32>, i32 -> vector<4x512xf32>
    %c7_i32_78 = arith.constant 7 : i32
    %414 = vector.broadcast %c7_i32_78 : i32 to vector<1x512xi32>
    %415 = arith.cmpi sge, %34, %414 : vector<1x512xi32>
    %416 = vector.shape_cast %415 : vector<1x512xi1> to vector<1x512xi1>
    %417 = vector.broadcast %416 : vector<1x512xi1> to vector<4x512xi1>
    %418 = arith.select %417, %412, %413 : vector<4x512xi1>, vector<4x512xf32>
    %419 = arith.subf %1, %418 : vector<4x512xf32>
    %420 = math.absf %419 : vector<4x512xf32>
    %cst_79 = arith.constant dense<0.000000e+00> : vector<512xf32>
    %421 = vector.multi_reduction <add>, %420, %cst_79 [0] : vector<4x512xf32> to vector<512xf32>
    %422 = vector.shape_cast %421 : vector<512xf32> to vector<1x512xf32>
    %423 = vector.broadcast %72 : vector<1x1xf32> to vector<1x512xf32>
    %424 = arith.cmpf olt, %422, %423 : vector<1x512xf32>
    %425 = arith.subf %418, %1 : vector<4x512xf32>
    %cst_80 = arith.constant 0.000000e+00 : f32
    %426 = vector.shape_cast %424 : vector<1x512xi1> to vector<1x512xi1>
    %427 = vector.broadcast %426 : vector<1x512xi1> to vector<4x512xi1>
    %428 = vector.broadcast %cst_80 : f32 to vector<4x512xf32>
    %429 = arith.select %427, %425, %428 : vector<4x512xi1>, vector<4x512xf32>
    %430 = arith.maximumf %411, %429 : vector<4x512xf32>
    %c0_81 = arith.constant 0 : index
    %c0_82 = arith.constant 0 : index
    %431 = vector.load %arg2[%c0_81, %c0_82] : memref<8x4xf32, #tpu.memory_space<vmem>>, vector<8x4xf32>
    %cst_83 = arith.constant dense<0.000000e+00> : vector<8x512xf32>
    %432 = tpu.matmul %431, %1, %cst_83 {dimension_numbers = #tpu.dot_dimension_numbers<[1], [0], [0], [1], [0, 0, 1, 1], [], []>} : vector<8x4xf32>, vector<4x512xf32>, vector<8x512xf32> -> vector<8x512xf32>
    %c0_84 = arith.constant 0 : index
    %c0_85 = arith.constant 0 : index
    %433 = vector.load %arg3[%c0_84, %c0_85] : memref<8x4xf32, #tpu.memory_space<vmem>>, vector<8x4xf32>
    %cst_86 = arith.constant dense<0.000000e+00> : vector<8x512xf32>
    %434 = tpu.matmul %433, %430, %cst_86 {dimension_numbers = #tpu.dot_dimension_numbers<[1], [0], [0], [1], [0, 0, 1, 1], [], []>} : vector<8x4xf32>, vector<4x512xf32>, vector<8x512xf32> -> vector<8x512xf32>
    %435 = arith.addf %432, %434 : vector<8x512xf32>
    %c0_87 = arith.constant 0 : index
    %c0_88 = arith.constant 0 : index
    %436 = vector.load %arg4[%c0_87, %c0_88] : memref<8x1xf32, #tpu.memory_space<vmem>>, vector<8x1xf32>
    %437 = vector.broadcast %436 : vector<8x1xf32> to vector<8x512xf32>
    %438 = arith.addf %435, %437 : vector<8x512xf32>
    %cst_89 = arith.constant 0.707106769 : f32
    %439 = vector.broadcast %cst_89 : f32 to vector<8x512xf32>
    %440 = arith.mulf %438, %439 : vector<8x512xf32>
    %441 = math.absf %440 : vector<8x512xf32>
    %cst_90 = arith.constant 0.327591091 : f32
    %442 = vector.broadcast %cst_90 : f32 to vector<8x512xf32>
    %443 = arith.mulf %442, %441 : vector<8x512xf32>
    %cst_91 = arith.constant 1.000000e+00 : f32
    %444 = vector.broadcast %cst_91 : f32 to vector<8x512xf32>
    %445 = arith.addf %444, %443 : vector<8x512xf32>
    %cst_92 = arith.constant 1.000000e+00 : f32
    %446 = vector.broadcast %cst_92 : f32 to vector<8x512xf32>
    %447 = arith.divf %446, %445 : vector<8x512xf32>
    %cst_93 = arith.constant 1.06140542 : f32
    %448 = vector.broadcast %cst_93 : f32 to vector<8x512xf32>
    %449 = arith.mulf %447, %448 : vector<8x512xf32>
    %cst_94 = arith.constant -1.45315206 : f32
    %450 = vector.broadcast %cst_94 : f32 to vector<8x512xf32>
    %451 = arith.addf %450, %449 : vector<8x512xf32>
    %452 = arith.mulf %447, %451 : vector<8x512xf32>
    %cst_95 = arith.constant 1.42141378 : f32
    %453 = vector.broadcast %cst_95 : f32 to vector<8x512xf32>
    %454 = arith.addf %453, %452 : vector<8x512xf32>
    %455 = arith.mulf %447, %454 : vector<8x512xf32>
    %cst_96 = arith.constant -0.284496725 : f32
    %456 = vector.broadcast %cst_96 : f32 to vector<8x512xf32>
    %457 = arith.addf %456, %455 : vector<8x512xf32>
    %458 = arith.mulf %447, %457 : vector<8x512xf32>
    %cst_97 = arith.constant 0.254829586 : f32
    %459 = vector.broadcast %cst_97 : f32 to vector<8x512xf32>
    %460 = arith.addf %459, %458 : vector<8x512xf32>
    %461 = arith.mulf %447, %460 : vector<8x512xf32>
    %cst_98 = arith.constant 0.000000e+00 : f32
    %462 = vector.broadcast %cst_98 : f32 to vector<8x512xf32>
    %463 = arith.subf %462, %441 : vector<8x512xf32>
    %464 = arith.mulf %463, %441 : vector<8x512xf32>
    %465 = math.exp %464 : vector<8x512xf32>
    %466 = arith.mulf %461, %465 : vector<8x512xf32>
    %cst_99 = arith.constant 1.000000e+00 : f32
    %467 = vector.broadcast %cst_99 : f32 to vector<8x512xf32>
    %468 = arith.subf %467, %466 : vector<8x512xf32>
    %cst_100 = arith.constant 0.000000e+00 : f32
    %469 = vector.broadcast %cst_100 : f32 to vector<8x512xf32>
    %470 = arith.cmpf olt, %440, %469 : vector<8x512xf32>
    %cst_101 = arith.constant 0.000000e+00 : f32
    %471 = vector.broadcast %cst_101 : f32 to vector<8x512xf32>
    %472 = arith.subf %471, %468 : vector<8x512xf32>
    %473 = arith.select %470, %472, %468 : vector<8x512xi1>, vector<8x512xf32>
    %cst_102 = arith.constant 5.000000e-01 : f32
    %474 = vector.broadcast %cst_102 : f32 to vector<8x512xf32>
    %475 = arith.mulf %474, %438 : vector<8x512xf32>
    %cst_103 = arith.constant 1.000000e+00 : f32
    %476 = vector.broadcast %cst_103 : f32 to vector<8x512xf32>
    %477 = arith.addf %476, %473 : vector<8x512xf32>
    %478 = arith.mulf %475, %477 : vector<8x512xf32>
    %c0_104 = arith.constant 0 : index
    %c0_105 = arith.constant 0 : index
    %c0_106 = arith.constant 0 : index
    %479 = vector.load %arg5[%c0_104, %c0_105, %c0_106] : memref<1x8x512xf32, #tpu.memory_space<vmem>>, vector<1x8x512xf32>
    %480 = vector.shape_cast %479 : vector<1x8x512xf32> to vector<8x512xf32>
    %481 = vector.shape_cast %478 : vector<8x512xf32> to vector<1x8x512xf32>
    tpu.vector_store %arg5[%c0_104, %c0_105, %c0_106], %481 {strides = array<i32>} : memref<1x8x512xf32, #tpu.memory_space<vmem>>, vector<1x8x512xf32>,
    return
  }
  func.func @transform_0(%arg0: i32) -> (i32, i32, i32) {
    %c0_i32 = arith.constant 0 : i32
    %c0_i32_0 = arith.constant 0 : i32
    %c0_i32_1 = arith.constant 0 : i32
    return %arg0, %c0_i32, %c0_i32_0 : i32, i32, i32
  }
  func.func @transform_1(%arg0: i32) -> (i32, i32) {
    %c0_i32 = arith.constant 0 : i32
    %c0_i32_0 = arith.constant 0 : i32
    %c0_i32_1 = arith.constant 0 : i32
    return %c0_i32, %c0_i32_0 : i32, i32
  }
  func.func @transform_2(%arg0: i32) -> (i32, i32) {
    %c0_i32 = arith.constant 0 : i32
    %c0_i32_0 = arith.constant 0 : i32
    %c0_i32_1 = arith.constant 0 : i32
    return %c0_i32, %c0_i32_0 : i32, i32
  }
  func.func @transform_3(%arg0: i32) -> (i32, i32) {
    %c0_i32 = arith.constant 0 : i32
    %c0_i32_0 = arith.constant 0 : i32
    %c0_i32_1 = arith.constant 0 : i32
    return %c0_i32, %c0_i32_0 : i32, i32
  }
  func.func @transform_4(%arg0: i32) -> (i32, i32, i32) {
    %c0_i32 = arith.constant 0 : i32
    %c0_i32_0 = arith.constant 0 : i32
    %c0_i32_1 = arith.constant 0 : i32
    return %arg0, %c0_i32, %c0_i32_0 : i32, i32, i32
  }
}

</mosaic_0001>

<llo_original>
// kernel: mrconv4d_forward.1
$region0: #{mrconv4d_forward.1}
  #allocation0 [shape = 'u32[]', space=smem, size = 0x4, offset = 0x4, fixed_abs, tag = 'smem constant byte address 0x4 - core index']
  #allocation1 [shape = 'u32[144,128]{1,0:T(1,128)}', space=vmem, size = 0x12000, scoped, tag = 'internal scratch']
  %s0 = inlined_call_operand.vmem [shape: f32[2,4,512], index: 0, kind: input, shape index: {}]
  %s1 = inlined_call_operand.vmem [shape: f32[8,4], index: 1, kind: input, shape index: {}]
  %s2 = inlined_call_operand.vmem [shape: f32[8,4], index: 2, kind: input, shape index: {}]
  %s3 = inlined_call_operand.vmem [shape: f32[8,1], index: 3, kind: input, shape index: {}]
  %s4 = inlined_call_operand.vmem [shape: f32[2,8,512], index: 4, kind: output, shape index: {}]
  %s5 = sld [smem:[#allocation0]]
  $region49: #{mrconv4d_forward.1} parent=0
    _
  %s7 = ssub.s32 1, %s5
  %s8 = scalar_select 0, %s7, %s5
  loop: start=0, step=1, limit=4
  $region2: #{mrconv4d_forward.1} parent=0 // loop_pre_header
    _
  $region3: #{mrconv4d_forward.1} parent=0 // loop_header
    %s10 = sphi 0, %s14
    %p11 = scmp.ge.s32.totalorder %s10, 4
    %s20 = sphi 0, %s22
    %s23 = sphi 0, %s20
    %s24 = sphi 0, %s23
    %s40 = sphi 0, %s24
    %s44 = sphi 0, %s44
    %s46 = sphi 0, %s44
    %s47 = sphi 0, %s46
    %s61 = sphi 0, %s47
    %s65 = sphi 0, %s65
    %s67 = sphi 0, %s65
    %s68 = sphi 0, %s67
    %s82 = sphi 0, %s68
    %s86 = sphi 0, %s86
    %s88 = sphi 0, %s86
    %s89 = sphi 0, %s88
    %s103 = sphi 0, %s89
    %s109 = sphi 0, %s111
    %s112 = sphi 0, %s109
    %s113 = sphi 0, %s112
    %s129 = sphi 0, %s113
  $region4: #{mrconv4d_forward.1} parent=0 // loop_header_branch
    %13 = sbr.rel (%p11) target = $region8
  $region5: #{mrconv4d_forward.1} parent=0 // loop_body
    %s15 = ssub.s32 %s10, 1
    %s16 = ssub.s32 %s10, 2
    %s17 = sadd.s32 %s10, 1
    %s18 = ssub.s32 %s10, %s17
    %p19 = scmp.eq.s32.totalorder %s18, 0
    %s21 = sadd.s32 %s20, 1
    %s22 = scalar_select %p19, %s20, %s21
    %p25 = pneg %p19
    %p26 = scmp.eq.s32.totalorder %s10, 1
    %p27 = por %p25, %p26
    %p28 = scmp.ne.s32.totalorder %s20, %s23
    %p29 = scmp.eq.s32.totalorder %s10, 0
    %p30 = por %p28, %p29
    %p31 = scmp.ne.s32.totalorder %s20, %s23
    %p32 = scmp.eq.s32.totalorder %s15, 1
    %p33 = por %p31, %p32
    %p34 = scmp.ne.s32.totalorder %s23, %s24
    %p35 = scmp.eq.s32.totalorder %s15, 0
    %p36 = por %p34, %p35
    %p37 = scmp.ne.s32.totalorder %s23, %s24
    %p38 = scmp.eq.s32.totalorder %s16, 1
    %p39 = por %p37, %p38
    %p41 = scmp.ne.s32.totalorder %s24, %s40
    %p42 = scmp.eq.s32.totalorder %s16, 0
    %p43 = por %p41, %p42
    %s45 = sadd.s32 %s44, 1
    %p48 = scmp.eq.s32.totalorder %s10, 1
    %p49 = scmp.ne.s32.totalorder %s44, %s46
    %p50 = scmp.eq.s32.totalorder %s10, 0
    %p51 = por %p49, %p50
    %p52 = scmp.ne.s32.totalorder %s44, %s46
    %p53 = scmp.eq.s32.totalorder %s15, 1
    %p54 = por %p52, %p53
    %p55 = scmp.ne.s32.totalorder %s46, %s47
    %p56 = scmp.eq.s32.totalorder %s15, 0
    %p57 = por %p55, %p56
    %p58 = scmp.ne.s32.totalorder %s46, %s47
    %p59 = scmp.eq.s32.totalorder %s16, 1
    %p60 = por %p58, %p59
    %p62 = scmp.ne.s32.totalorder %s47, %s61
    %p63 = scmp.eq.s32.totalorder %s16, 0
    %p64 = por %p62, %p63
    %s66 = sadd.s32 %s65, 1
    %p69 = scmp.eq.s32.totalorder %s10, 1
    %p70 = scmp.ne.s32.totalorder %s65, %s67
    %p71 = scmp.eq.s32.totalorder %s10, 0
    %p72 = por %p70, %p71
    %p73 = scmp.ne.s32.totalorder %s65, %s67
    %p74 = scmp.eq.s32.totalorder %s15, 1
    %p75 = por %p73, %p74
    %p76 = scmp.ne.s32.totalorder %s67, %s68
    %p77 = scmp.eq.s32.totalorder %s15, 0
    %p78 = por %p76, %p77
    %p79 = scmp.ne.s32.totalorder %s67, %s68
    %p80 = scmp.eq.s32.totalorder %s16, 1
    %p81 = por %p79, %p80
    %p83 = scmp.ne.s32.totalorder %s68, %s82
    %p84 = scmp.eq.s32.totalorder %s16, 0
    %p85 = por %p83, %p84
    %s87 = sadd.s32 %s86, 1
    %p90 = scmp.eq.s32.totalorder %s10, 1
    %p91 = scmp.ne.s32.totalorder %s86, %s88
    %p92 = scmp.eq.s32.totalorder %s10, 0
    %p93 = por %p91, %p92
    %p94 = scmp.ne.s32.totalorder %s86, %s88
    %p95 = scmp.eq.s32.totalorder %s15, 1
    %p96 = por %p94, %p95
    %p97 = scmp.ne.s32.totalorder %s88, %s89
    %p98 = scmp.eq.s32.totalorder %s15, 0
    %p99 = por %p97, %p98
    %p100 = scmp.ne.s32.totalorder %s88, %s89
    %p101 = scmp.eq.s32.totalorder %s16, 1
    %p102 = por %p100, %p101
    %p104 = scmp.ne.s32.totalorder %s89, %s103
    %p105 = scmp.eq.s32.totalorder %s16, 0
    %p106 = por %p104, %p105
    %s107 = ssub.s32 %s10, %s17
    %p108 = scmp.eq.s32.totalorder %s107, 0
    %s110 = sadd.s32 %s109, 1
    %s111 = scalar_select %p108, %s109, %s110
    %p114 = pneg %p108
    %p115 = scmp.eq.s32.totalorder %s10, 1
    %p116 = por %p114, %p115
    %p117 = scmp.ne.s32.totalorder %s109, %s112
    %p118 = scmp.eq.s32.totalorder %s10, 0
    %p119 = por %p117, %p118
    %p120 = scmp.ne.s32.totalorder %s109, %s112
    %p121 = scmp.eq.s32.totalorder %s15, 1
    %p122 = por %p120, %p121
    %p123 = scmp.ne.s32.totalorder %s112, %s113
    %p124 = scmp.eq.s32.totalorder %s15, 0
    %p125 = por %p123, %p124
    %p126 = scmp.ne.s32.totalorder %s112, %s113
    %p127 = scmp.eq.s32.totalorder %s16, 1
    %p128 = por %p126, %p127
    %p130 = scmp.ne.s32.totalorder %s113, %s129
    %p131 = scmp.eq.s32.totalorder %s16, 0
    %p132 = por %p130, %p131
    %p133 = scmp.le.s32.totalorder 1, %s10
    %p134 = scmp.lt.s32.totalorder %s10, 3
    %p135 = pnand %p133, %p134
    %p136 = pneg %p135
    // Predicated region
    $region9: #{mrconv4d_forward.1} parent=5 // pred_check
      _
    $region10: #{mrconv4d_forward.1} parent=5 // pred_check_branch
      %138 = sbr.rel (%p135) target = $region12
    $region11: #{mrconv4d_forward.1} parent=5 // pred_region
      %s139 = ssub.s32 %s10, 1
      // Predicated region
      $region13: #{mrconv4d_forward.1} parent=11 // pred_check
        %p140 = pneg %p57
      $region14: #{mrconv4d_forward.1} parent=11 // pred_check_branch
        %142 = sbr.rel (%p140) target = $region16
      $region15: #{mrconv4d_forward.1} parent=11 // pred_region
        _
      $region16: #{mrconv4d_forward.1} parent=11 // pred_fallthru
        _
      // Predicated region
      $region17: #{mrconv4d_forward.1} parent=11 // pred_check
        %p143 = pneg %p78
      $region18: #{mrconv4d_forward.1} parent=11 // pred_check_branch
        %145 = sbr.rel (%p143) target = $region20
      $region19: #{mrconv4d_forward.1} parent=11 // pred_region
        _
      $region20: #{mrconv4d_forward.1} parent=11 // pred_fallthru
        _
      // Predicated region
      $region21: #{mrconv4d_forward.1} parent=11 // pred_check
        %p146 = pneg %p99
      $region22: #{mrconv4d_forward.1} parent=11 // pred_check_branch
        %148 = sbr.rel (%p146) target = $region24
      $region23: #{mrconv4d_forward.1} parent=11 // pred_region
        _
      $region24: #{mrconv4d_forward.1} parent=11 // pred_fallthru
        _
    $region12: #{mrconv4d_forward.1} parent=5 // pred_fallthru
      _
    %p149 = scmp.lt.s32.totalorder %s10, 2
    // Predicated region
    $region25: #{mrconv4d_forward.1} parent=5 // pred_check
      %p150 = pneg %p149
    $region26: #{mrconv4d_forward.1} parent=5 // pred_check_branch
      %152 = sbr.rel (%p150) target = $region28
    $region27: #{mrconv4d_forward.1} parent=5 // pred_region
      // Predicated region
      $region29: #{mrconv4d_forward.1} parent=27 // pred_check
        %p153 = pneg %p30
      $region30: #{mrconv4d_forward.1} parent=27 // pred_check_branch
        %155 = sbr.rel (%p153) target = $region32
      $region31: #{mrconv4d_forward.1} parent=27 // pred_region
        %p156 = scmp.lt.s32.totalorder %s10, 1
        %s157 = scalar_select %p156, %s10, 1
        %s158 = smul.addr %s157, 4
        %s159 = smul.addr %s158, 4
        %s160 = scalar_lea.vmem %s0, %s159
      $region32: #{mrconv4d_forward.1} parent=27 // pred_fallthru
        _
    $region28: #{mrconv4d_forward.1} parent=5 // pred_fallthru
      _
    %p161 = scmp.le.s32.totalorder 1, %s10
    %p162 = scmp.lt.s32.totalorder %s10, 3
    %p163 = pnand %p161, %p162
    %p164 = pneg %p163
    // Predicated region
    $region33: #{mrconv4d_forward.1} parent=5 // pred_check
      _
    $region34: #{mrconv4d_forward.1} parent=5 // pred_check_branch
      %166 = sbr.rel (%p163) target = $region36
    $region35: #{mrconv4d_forward.1} parent=5 // pred_region
      %s167 = ssub.s32 %s10, 1
      %p168 = scmp.lt.s32.totalorder %s15, 1
      %s169 = scalar_select %p168, %s15, 1
      %s170 = smul.addr %s169, 4
      %s171 = smul.addr %s170, 4
      %s172 = scalar_lea.vmem %s0, %s171
      %p173 = pneg %p36
      %p174 = pneg %p33
      %p175 = pneg %p57
      %p176 = pneg %p54
      %p177 = pneg %p78
      %p178 = pneg %p75
      %p179 = pneg %p99
      %p180 = pneg %p96
      %p181 = pneg %p125
      %p182 = pneg %p122
      %p183 = scmp.lt.s32.totalorder %s15, 1
      %s184 = scalar_select %p183, %s15, 1
      %s185 = smul.addr %s184, 4
      %s186 = smul.addr %s185, 8
      %s187 = scalar_lea.vmem %s4, %s186
      %p188 = scmp.lt.s32.totalorder %s15, 1
      %s189 = scalar_select %p188, %s15, 1
      %s190 = smul.addr %s189, 4
      %s191 = smul.addr %s190, 4
      %s192 = scalar_lea.vmem %s0, %s191
      %p193 = scmp.lt.s32.totalorder %s15, 1
      %s194 = scalar_select %p193, %s15, 1
      %s195 = smul.addr %s194, 4
      %s196 = smul.addr %s195, 8
      %s197 = scalar_lea.vmem %s4, %s196
      %v198 = vld [vmem:[%s192] sm:$0xff]
      %v199 = vld [vmem:[%s192 + $0x8] sm:$0xff]
      %v200 = vlaneseq
      %v201 = vand.u32 %v200, 127
      %v202 = vadd.s32 %v201, 128
      %v203 = vadd.s32 %v201, 256
      %v204 = vadd.s32 %v201, 384
      %vm205 = vcmp.lt.s32.totalorder %v201, 0
      %v206 = vsub.s32 0, %v201
      %v207 = vsel %vm205, %v206, %v201
      %v208 = vshrl.u32 %v207, 6
      %v209 = vand.u32 %v207, 63
      %v210 = vsub.s32 0, %v209
      %v211 = vsel %vm205, %v210, %v209
      %vm212 = vcmp.lt.s32.totalorder %v202, 0
      %v213 = vsub.s32 0, %v202
      %v214 = vsel %vm212, %v213, %v202
      %v215 = vshrl.u32 %v214, 6
      %v216 = vand.u32 %v214, 63
      %v217 = vsub.s32 0, %v216
      %v218 = vsel %vm212, %v217, %v216
      %vm219 = vcmp.lt.s32.totalorder %v203, 0
      %v220 = vsub.s32 0, %v203
      %v221 = vsel %vm219, %v220, %v203
      %v222 = vshrl.u32 %v221, 6
      %v223 = vand.u32 %v221, 63
      %v224 = vsub.s32 0, %v223
      %v225 = vsel %vm219, %v224, %v223
      %vm226 = vcmp.lt.s32.totalorder %v204, 0
      %v227 = vsub.s32 0, %v204
      %v228 = vsel %vm226, %v227, %v204
      %v229 = vshrl.u32 %v228, 6
      %v230 = vand.u32 %v228, 63
      %v231 = vsub.s32 0, %v230
      %v232 = vsel %vm226, %v231, %v230
      %vm233 = vcmp.ne.s32.totalorder %v211, 0
      %vm234 = vcmp.ne.s32.totalorder %v218, 0
      %vm235 = vcmp.ne.s32.totalorder %v225, 0
      %vm236 = vcmp.ne.s32.totalorder %v232, 0
      %vm237 = vcmp.lt.s32.totalorder %v211, 0
      %vm238 = vcmp.lt.s32.totalorder %v218, 0
      %vm239 = vcmp.lt.s32.totalorder %v225, 0
      %vm240 = vcmp.lt.s32.totalorder %v232, 0
      %vm241 = vmand %vm237, %vm233
      %vm242 = vmand %vm238, %vm234
      %vm243 = vmand %vm239, %vm235
      %vm244 = vmand %vm240, %vm236
      %v245 = vadd.s32 %v211, 64
      %v246 = vadd.s32 %v218, 64
      %v247 = vadd.s32 %v225, 64
      %v248 = vadd.s32 %v232, 64
      %v249 = vsel %vm241, %v245, %v211
      %v250 = vsel %vm242, %v246, %v218
      %v251 = vsel %vm243, %v247, %v225
      %v252 = vsel %vm244, %v248, %v232
      %vm253 = vcmp.lt.s32.totalorder %v201, 0
      %v254 = vsub.s32 0, %v201
      %v255 = vsel %vm253, %v254, %v201
      %v256 = vshrl.u32 %v255, 3
      %v257 = vand.u32 %v255, 7
      %v258 = vsub.s32 0, %v257
      %v259 = vsel %vm253, %v258, %v257
      %vm260 = vcmp.lt.s32.totalorder %v202, 0
      %v261 = vsub.s32 0, %v202
      %v262 = vsel %vm260, %v261, %v202
      %v263 = vshrl.u32 %v262, 3
      %v264 = vand.u32 %v262, 7
      %v265 = vsub.s32 0, %v264
      %v266 = vsel %vm260, %v265, %v264
      %vm267 = vcmp.lt.s32.totalorder %v203, 0
      %v268 = vsub.s32 0, %v203
      %v269 = vsel %vm267, %v268, %v203
      %v270 = vshrl.u32 %v269, 3
      %v271 = vand.u32 %v269, 7
      %v272 = vsub.s32 0, %v271
      %v273 = vsel %vm267, %v272, %v271
      %vm274 = vcmp.lt.s32.totalorder %v204, 0
      %v275 = vsub.s32 0, %v204
      %v276 = vsel %vm274, %v275, %v204
      %v277 = vshrl.u32 %v276, 3
      %v278 = vand.u32 %v276, 7
      %v279 = vsub.s32 0, %v278
      %v280 = vsel %vm274, %v279, %v278
      %vm281 = vcmp.ne.s32.totalorder %v259, 0
      %vm282 = vcmp.ne.s32.totalorder %v266, 0
      %vm283 = vcmp.ne.s32.totalorder %v273, 0
      %vm284 = vcmp.ne.s32.totalorder %v280, 0
      %vm285 = vcmp.lt.s32.totalorder %v259, 0
      %vm286 = vcmp.lt.s32.totalorder %v266, 0
      %vm287 = vcmp.lt.s32.totalorder %v273, 0
      %vm288 = vcmp.lt.s32.totalorder %v280, 0
      %vm289 = vmand %vm285, %vm281
      %vm290 = vmand %vm286, %vm282
      %vm291 = vmand %vm287, %vm283
      %vm292 = vmand %vm288, %vm284
      %v293 = vadd.s32 %v259, 8
      %v294 = vadd.s32 %v266, 8
      %v295 = vadd.s32 %v273, 8
      %v296 = vadd.s32 %v280, 8
      %v297 = vsel %vm289, %v293, %v259
      %v298 = vsel %vm290, %v294, %v266
      %v299 = vsel %vm291, %v295, %v273
      %v300 = vsel %vm292, %v296, %v280
      %v303 = vcombine.high %v198, %v198
      %v304 = vcombine.high %v199, %v199
      %307 = vrot.lane.b32.xlu0 %v199, 32
      %v308 = vpop.permute.xlu0 %307
      %309 = vrot.lane.b32.xlu0 %v304, 32
      %v310 = vpop.permute.xlu0 %309
      %311 = vrot.lane.b32.xlu0 %v198, 32
      %v312 = vpop.permute.xlu0 %311
      %313 = vrot.lane.b32.xlu0 %v303, 32
      %v314 = vpop.permute.xlu0 %313
      %vm315 = vcmp.lt.s32.totalorder %v201, 32
      %v316 = vsel %vm315, %v312, %v314
      %v317 = vsel %vm315, %v310, %v312
      %v318 = vsel %vm315, %v308, %v310
      %v319 = vsel %vm315, %v314, %v308
      %320 = vrot.lane.b32.xlu0 %v199, 96
      %v321 = vpop.permute.xlu0 %320
      %322 = vrot.lane.b32.xlu0 %v304, 96
      %v323 = vpop.permute.xlu0 %322
      %324 = vrot.lane.b32.xlu0 %v198, 96
      %v325 = vpop.permute.xlu0 %324
      %326 = vrot.lane.b32.xlu0 %v303, 96
      %v327 = vpop.permute.xlu0 %326
      %vm328 = vcmp.lt.s32.totalorder %v201, 96
      %v329 = vsel %vm328, %v325, %v327
      %v330 = vsel %vm328, %v323, %v325
      %v331 = vsel %vm328, %v321, %v323
      %v332 = vsel %vm328, %v327, %v321
      %vm333 = vcmp.ge.s32.totalorder %v249, 32
      %vm334 = vcmp.ge.s32.totalorder %v250, 32
      %vm335 = vcmp.ge.s32.totalorder %v251, 32
      %vm336 = vcmp.ge.s32.totalorder %v252, 32
      %v337 = vsel %vm333, 1, 0
      %v338 = vsel %vm334, 1, 0
      %v339 = vsel %vm335, 1, 0
      %v340 = vsel %vm336, 1, 0
      %vm341 = vcmp.eq.s32.totalorder %v337, 1
      %vm342 = vcmp.eq.s32.totalorder %v338, 1
      %vm343 = vcmp.eq.s32.totalorder %v339, 1
      %vm344 = vcmp.eq.s32.totalorder %v340, 1
      %v345 = vsel %vm341, %v319, %v331
      %v346 = vsel %vm342, %v318, %v330
      %v347 = vsel %vm343, %v317, %v329
      %v348 = vsel %vm344, %v316, %v332
      %349 = vrot.lane.b32.xlu0 %v345, 4
      %v350 = vpop.permute.xlu0 %349
      %351 = vrot.lane.b32.xlu0 %v346, 4
      %v352 = vpop.permute.xlu0 %351
      %353 = vrot.lane.b32.xlu0 %v347, 4
      %v354 = vpop.permute.xlu0 %353
      %355 = vrot.lane.b32.xlu0 %v348, 4
      %v356 = vpop.permute.xlu0 %355
      %vm357 = vcmp.lt.s32.totalorder %v201, 4
      %v358 = vsel %vm357, %v354, %v356
      %v359 = vsel %vm357, %v352, %v354
      %v360 = vsel %vm357, %v350, %v352
      %v361 = vsel %vm357, %v356, %v350
      %362 = vrot.lane.b32.xlu0 %v345, 124
      %v363 = vpop.permute.xlu0 %362
      %364 = vrot.lane.b32.xlu0 %v346, 124
      %v365 = vpop.permute.xlu0 %364
      %366 = vrot.lane.b32.xlu0 %v347, 124
      %v367 = vpop.permute.xlu0 %366
      %368 = vrot.lane.b32.xlu0 %v348, 124
      %v369 = vpop.permute.xlu0 %368
      %vm370 = vcmp.lt.s32.totalorder %v201, 124
      %v371 = vsel %vm370, %v367, %v369
      %v372 = vsel %vm370, %v365, %v367
      %v373 = vsel %vm370, %v363, %v365
      %v374 = vsel %vm370, %v369, %v363
      %vm375 = vcmp.ge.s32.totalorder %v297, 4
      %vm376 = vcmp.ge.s32.totalorder %v298, 4
      %vm377 = vcmp.ge.s32.totalorder %v299, 4
      %vm378 = vcmp.ge.s32.totalorder %v300, 4
      %v379 = vsel %vm375, 1, 0
      %v380 = vsel %vm376, 1, 0
      %v381 = vsel %vm377, 1, 0
      %v382 = vsel %vm378, 1, 0
      %vm383 = vcmp.eq.s32.totalorder %v379, 1
      %vm384 = vcmp.eq.s32.totalorder %v380, 1
      %vm385 = vcmp.eq.s32.totalorder %v381, 1
      %vm386 = vcmp.eq.s32.totalorder %v382, 1
      %v387 = vsel %vm383, %v361, %v373
      %v388 = vsel %vm384, %v360, %v372
      %v389 = vsel %vm385, %v359, %v371
      %v390 = vsel %vm386, %v358, %v374
      %v395 = vcombine.low %v387, %v388
      %v396 = vcombine.low %v389, %v390
      %v399 = vsub.f32 %v198, %v395
      %v400 = vsub.f32 %v199, %v396
      %v401 = vand.u32 2147483647, %v399
      %v402 = vand.u32 2147483647, %v400
      %v405 = vcombine.high %v401, %v401
      %v406 = vcombine.high %v402, %v402
      %vm409 = vcmask 1043456
      %v410 = vsel %vm409, %v401, 0.0
      %v411 = vrot.slane %v410, 4
      %v412 = vadd.f32 %v410, %v411
      %v413 = vrot.slane %v412, 2
      %v414 = vadd.f32 %v412, %v413
      %v415 = vrot.slane %v414, 1
      %v416 = vadd.f32 %v414, %v415
      %v417 = vsel %vm409, %v405, 0.0
      %v418 = vrot.slane %v417, 4
      %v419 = vadd.f32 %v417, %v418
      %v420 = vrot.slane %v419, 2
      %v421 = vadd.f32 %v419, %v420
      %v422 = vrot.slane %v421, 1
      %v423 = vadd.f32 %v421, %v422
      %v424 = vsel %vm409, %v402, 0.0
      %v425 = vrot.slane %v424, 4
      %v426 = vadd.f32 %v424, %v425
      %v427 = vrot.slane %v426, 2
      %v428 = vadd.f32 %v426, %v427
      %v429 = vrot.slane %v428, 1
      %v430 = vadd.f32 %v428, %v429
      %v431 = vsel %vm409, %v406, 0.0
      %v432 = vrot.slane %v431, 4
      %v433 = vadd.f32 %v431, %v432
      %v434 = vrot.slane %v433, 2
      %v435 = vadd.f32 %v433, %v434
      %v436 = vrot.slane %v435, 1
      %v437 = vadd.f32 %v435, %v436
      %vm438 = vcmask 1040384
      %v439 = vsel %vm438, %v416, 0.0
      %v440 = vsel %vm438, %v423, 0.0
      %v441 = vadd.f32 %v439, %v440
      %v442 = vsel %vm438, %v430, 0.0
      %v443 = vadd.f32 %v441, %v442
      %v444 = vsel %vm438, %v437, 0.0
      %v445 = vadd.f32 %v443, %v444
      %446 = vadd.xlane.f32.xlu0 %v445
      %v447 = vpop.xlane.xlu0 %446
      %v448 = vrot.slane %v447, 4
      %v449 = vadd.f32 %v447, %v448
      %v450 = vrot.slane %v449, 2
      %v451 = vadd.f32 %v449, %v450
      %v452 = vrot.slane %v451, 1
      %v453 = vadd.f32 %v451, %v452
      %s454 = vtos %v453
      %v455 = vstv %s454
      %v456 = vrcp.pop 512.0
      %v457 = vmul.f32 %v455, %v456
      %v458 = vsub.f32 %v416, %v457
      %v459 = vsub.f32 %v423, %v457
      %v460 = vsub.f32 %v430, %v457
      %v461 = vsub.f32 %v437, %v457
      %v462 = vmul.f32 %v458, %v458
      %v463 = vmul.f32 %v459, %v459
      %v464 = vmul.f32 %v460, %v460
      %v465 = vmul.f32 %v461, %v461
      %v466 = vsel %vm438, %v462, 0.0
      %v467 = vsel %vm438, %v463, 0.0
      %v468 = vadd.f32 %v466, %v467
      %v469 = vsel %vm438, %v464, 0.0
      %v470 = vadd.f32 %v468, %v469
      %v471 = vsel %vm438, %v465, 0.0
      %v472 = vadd.f32 %v470, %v471
      %473 = vadd.xlane.f32.xlu0 %v472
      %v474 = vpop.xlane.xlu0 %473
      %v475 = vrot.slane %v474, 4
      %v476 = vadd.f32 %v474, %v475
      %v477 = vrot.slane %v476, 2
      %v478 = vadd.f32 %v476, %v477
      %v479 = vrot.slane %v478, 1
      %v480 = vadd.f32 %v478, %v479
      %s481 = vtos %v480
      %v482 = vstv %s481
      %v483 = vrcp.pop 511.0
      %v484 = vmul.f32 %v482, %v483
      %v485 = vrsqrt.pop %v484
      %v486 = vmul.f32 %v484, %v485
      %vm487 = vcmp.eq.f32.partialorder %v484, inf
      %v488 = vsel %vm487, %v484, %v486
      %vm489 = vcmp.eq.f32.partialorder %v484, 0.0
      %v490 = vand.u32 %v484, 2147483648
      %v491 = vsel %vm489, %v490, %v488
      %v492 = vsub.f32 %v457, %v491
      %493 = vrot.lane.b32.xlu0 %v198, 64
      %v494 = vpop.permute.xlu0 %493
      %495 = vrot.lane.b32.xlu0 %v303, 64
      %v496 = vpop.permute.xlu0 %495
      %497 = vrot.lane.b32.xlu0 %v199, 64
      %v498 = vpop.permute.xlu0 %497
      %499 = vrot.lane.b32.xlu0 %v304, 64
      %v500 = vpop.permute.xlu0 %499
      %vm501 = vcmp.lt.s32.totalorder %v201, 64
      %v502 = vsel %vm501, %v498, %v500
      %v503 = vsel %vm501, %v496, %v498
      %v504 = vsel %vm501, %v494, %v496
      %v505 = vsel %vm501, %v500, %v494
      %v510 = vcombine.low %v505, %v504
      %v511 = vcombine.low %v503, %v502
      %v514 = vsub.f32 %v198, %v510
      %v515 = vsub.f32 %v199, %v511
      %v516 = vand.u32 2147483647, %v514
      %v517 = vand.u32 2147483647, %v515
      %v520 = vcombine.high %v516, %v516
      %v521 = vcombine.high %v517, %v517
      %v524 = vsel %vm409, %v516, 0.0
      %v525 = vrot.slane %v524, 4
      %v526 = vadd.f32 %v524, %v525
      %v527 = vrot.slane %v526, 2
      %v528 = vadd.f32 %v526, %v527
      %v529 = vrot.slane %v528, 1
      %v530 = vadd.f32 %v528, %v529
      %v531 = vsel %vm409, %v520, 0.0
      %v532 = vrot.slane %v531, 4
      %v533 = vadd.f32 %v531, %v532
      %v534 = vrot.slane %v533, 2
      %v535 = vadd.f32 %v533, %v534
      %v536 = vrot.slane %v535, 1
      %v537 = vadd.f32 %v535, %v536
      %v538 = vsel %vm409, %v517, 0.0
      %v539 = vrot.slane %v538, 4
      %v540 = vadd.f32 %v538, %v539
      %v541 = vrot.slane %v540, 2
      %v542 = vadd.f32 %v540, %v541
      %v543 = vrot.slane %v542, 1
      %v544 = vadd.f32 %v542, %v543
      %v545 = vsel %vm409, %v521, 0.0
      %v546 = vrot.slane %v545, 4
      %v547 = vadd.f32 %v545, %v546
      %v548 = vrot.slane %v547, 2
      %v549 = vadd.f32 %v547, %v548
      %v550 = vrot.slane %v549, 1
      %v551 = vadd.f32 %v549, %v550
      %vm552 = vcmp.lt.f32.partialorder %v530, %v492
      %vm553 = vcmp.lt.f32.partialorder %v537, %v492
      %vm554 = vcmp.lt.f32.partialorder %v544, %v492
      %vm555 = vcmp.lt.f32.partialorder %v551, %v492
      %v556 = vsub.f32 %v505, %v198
      %v557 = vsub.f32 %v504, %v303
      %v558 = vsub.f32 %v503, %v199
      %v559 = vsub.f32 %v502, %v304
      %v560 = vsel %vm552, 1, 0
      %v561 = vsel %vm553, 1, 0
      %v562 = vsel %vm554, 1, 0
      %v563 = vsel %vm555, 1, 0
      %vm564 = vcmp.eq.s32.totalorder %v560, 1
      %vm565 = vcmp.eq.s32.totalorder %v561, 1
      %vm566 = vcmp.eq.s32.totalorder %v562, 1
      %vm567 = vcmp.eq.s32.totalorder %v563, 1
      %v568 = vsel %vm564, %v556, 0.0
      %v569 = vsel %vm565, %v557, 0.0
      %v570 = vsel %vm566, %v558, 0.0
      %v571 = vsel %vm567, %v559, 0.0
      %v572 = vmax.f32 %v568, 0.0
      %v573 = vmax.f32 %v569, 0.0
      %v574 = vmax.f32 %v570, 0.0
      %v575 = vmax.f32 %v571, 0.0
      %v576 = vcombine.low %v304, %v198
      %v577 = vcombine.low %v303, %v199
      %v580 = vsub.f32 %v198, %v576
      %v581 = vsub.f32 %v199, %v577
      %v582 = vand.u32 2147483647, %v580
      %v583 = vand.u32 2147483647, %v581
      %v586 = vcombine.high %v582, %v582
      %v587 = vcombine.high %v583, %v583
      %v590 = vsel %vm409, %v582, 0.0
      %v591 = vrot.slane %v590, 4
      %v592 = vadd.f32 %v590, %v591
      %v593 = vrot.slane %v592, 2
      %v594 = vadd.f32 %v592, %v593
      %v595 = vrot.slane %v594, 1
      %v596 = vadd.f32 %v594, %v595
      %v597 = vsel %vm409, %v586, 0.0
      %v598 = vrot.slane %v597, 4
      %v599 = vadd.f32 %v597, %v598
      %v600 = vrot.slane %v599, 2
      %v601 = vadd.f32 %v599, %v600
      %v602 = vrot.slane %v601, 1
      %v603 = vadd.f32 %v601, %v602
      %v604 = vsel %vm409, %v583, 0.0
      %v605 = vrot.slane %v604, 4
      %v606 = vadd.f32 %v604, %v605
      %v607 = vrot.slane %v606, 2
      %v608 = vadd.f32 %v606, %v607
      %v609 = vrot.slane %v608, 1
      %v610 = vadd.f32 %v608, %v609
      %v611 = vsel %vm409, %v587, 0.0
      %v612 = vrot.slane %v611, 4
      %v613 = vadd.f32 %v611, %v612
      %v614 = vrot.slane %v613, 2
      %v615 = vadd.f32 %v613, %v614
      %v616 = vrot.slane %v615, 1
      %v617 = vadd.f32 %v615, %v616
      %vm618 = vcmp.lt.f32.partialorder %v596, %v492
      %vm619 = vcmp.lt.f32.partialorder %v603, %v492
      %vm620 = vcmp.lt.f32.partialorder %v610, %v492
      %vm621 = vcmp.lt.f32.partialorder %v617, %v492
      %v622 = vsub.f32 %v304, %v198
      %v623 = vsub.f32 %v198, %v303
      %v624 = vsub.f32 %v303, %v199
      %v625 = vsub.f32 %v199, %v304
      %v626 = vsel %vm618, 1, 0
      %v627 = vsel %vm619, 1, 0
      %v628 = vsel %vm620, 1, 0
      %v629 = vsel %vm621, 1, 0
      %vm630 = vcmp.eq.s32.totalorder %v626, 1
      %vm631 = vcmp.eq.s32.totalorder %v627, 1
      %vm632 = vcmp.eq.s32.totalorder %v628, 1
      %vm633 = vcmp.eq.s32.totalorder %v629, 1
      %v634 = vsel %vm630, %v622, 0.0
      %v635 = vsel %vm631, %v623, 0.0
      %v636 = vsel %vm632, %v624, 0.0
      %v637 = vsel %vm633, %v625, 0.0
      %v638 = vmax.f32 %v572, %v634
      %v639 = vmax.f32 %v573, %v635
      %v640 = vmax.f32 %v574, %v636
      %v641 = vmax.f32 %v575, %v637
      %v642 = vcombine.low %v502, %v505
      %v643 = vcombine.low %v504, %v503
      %v646 = vsub.f32 %v198, %v642
      %v647 = vsub.f32 %v199, %v643
      %v648 = vand.u32 2147483647, %v646
      %v649 = vand.u32 2147483647, %v647
      %v652 = vcombine.high %v648, %v648
      %v653 = vcombine.high %v649, %v649
      %v656 = vsel %vm409, %v648, 0.0
      %v657 = vrot.slane %v656, 4
      %v658 = vadd.f32 %v656, %v657
      %v659 = vrot.slane %v658, 2
      %v660 = vadd.f32 %v658, %v659
      %v661 = vrot.slane %v660, 1
      %v662 = vadd.f32 %v660, %v661
      %v663 = vsel %vm409, %v652, 0.0
      %v664 = vrot.slane %v663, 4
      %v665 = vadd.f32 %v663, %v664
      %v666 = vrot.slane %v665, 2
      %v667 = vadd.f32 %v665, %v666
      %v668 = vrot.slane %v667, 1
      %v669 = vadd.f32 %v667, %v668
      %v670 = vsel %vm409, %v649, 0.0
      %v671 = vrot.slane %v670, 4
      %v672 = vadd.f32 %v670, %v671
      %v673 = vrot.slane %v672, 2
      %v674 = vadd.f32 %v672, %v673
      %v675 = vrot.slane %v674, 1
      %v676 = vadd.f32 %v674, %v675
      %v677 = vsel %vm409, %v653, 0.0
      %v678 = vrot.slane %v677, 4
      %v679 = vadd.f32 %v677, %v678
      %v680 = vrot.slane %v679, 2
      %v681 = vadd.f32 %v679, %v680
      %v682 = vrot.slane %v681, 1
      %v683 = vadd.f32 %v681, %v682
      %vm684 = vcmp.lt.f32.partialorder %v662, %v492
      %vm685 = vcmp.lt.f32.partialorder %v669, %v492
      %vm686 = vcmp.lt.f32.partialorder %v676, %v492
      %vm687 = vcmp.lt.f32.partialorder %v683, %v492
      %v688 = vsub.f32 %v502, %v198
      %v689 = vsub.f32 %v505, %v303
      %v690 = vsub.f32 %v504, %v199
      %v691 = vsub.f32 %v503, %v304
      %v692 = vsel %vm684, 1, 0
      %v693 = vsel %vm685, 1, 0
      %v694 = vsel %vm686, 1, 0
      %v695 = vsel %vm687, 1, 0
      %vm696 = vcmp.eq.s32.totalorder %v692, 1
      %vm697 = vcmp.eq.s32.totalorder %v693, 1
      %vm698 = vcmp.eq.s32.totalorder %v694, 1
      %vm699 = vcmp.eq.s32.totalorder %v695, 1
      %v700 = vsel %vm696, %v688, 0.0
      %v701 = vsel %vm697, %v689, 0.0
      %v702 = vsel %vm698, %v690, 0.0
      %v703 = vsel %vm699, %v691, 0.0
      %v704 = vmax.f32 %v638, %v700
      %v705 = vmax.f32 %v639, %v701
      %v706 = vmax.f32 %v640, %v702
      %v707 = vmax.f32 %v641, %v703
      %v708 = vcombine.low %v199, %v304
      %v709 = vcombine.low %v198, %v303
      %v712 = vsub.f32 %v198, %v708
      %v713 = vsub.f32 %v199, %v709
      %v714 = vand.u32 2147483647, %v712
      %v715 = vand.u32 2147483647, %v713
      %v718 = vcombine.high %v714, %v714
      %v719 = vcombine.high %v715, %v715
      %v722 = vsel %vm409, %v714, 0.0
      %v723 = vrot.slane %v722, 4
      %v724 = vadd.f32 %v722, %v723
      %v725 = vrot.slane %v724, 2
      %v726 = vadd.f32 %v724, %v725
      %v727 = vrot.slane %v726, 1
      %v728 = vadd.f32 %v726, %v727
      %v729 = vsel %vm409, %v718, 0.0
      %v730 = vrot.slane %v729, 4
      %v731 = vadd.f32 %v729, %v730
      %v732 = vrot.slane %v731, 2
      %v733 = vadd.f32 %v731, %v732
      %v734 = vrot.slane %v733, 1
      %v735 = vadd.f32 %v733, %v734
      %v736 = vsel %vm409, %v715, 0.0
      %v737 = vrot.slane %v736, 4
      %v738 = vadd.f32 %v736, %v737
      %v739 = vrot.slane %v738, 2
      %v740 = vadd.f32 %v738, %v739
      %v741 = vrot.slane %v740, 1
      %v742 = vadd.f32 %v740, %v741
      %v743 = vsel %vm409, %v719, 0.0
      %v744 = vrot.slane %v743, 4
      %v745 = vadd.f32 %v743, %v744
      %v746 = vrot.slane %v745, 2
      %v747 = vadd.f32 %v745, %v746
      %v748 = vrot.slane %v747, 1
      %v749 = vadd.f32 %v747, %v748
      %vm750 = vcmp.lt.f32.partialorder %v728, %v492
      %vm751 = vcmp.lt.f32.partialorder %v735, %v492
      %vm752 = vcmp.lt.f32.partialorder %v742, %v492
      %vm753 = vcmp.lt.f32.partialorder %v749, %v492
      %v754 = vsub.f32 %v199, %v198
      %v755 = vsub.f32 %v304, %v303
      %v756 = vsub.f32 %v198, %v199
      %v757 = vsub.f32 %v303, %v304
      %v758 = vsel %vm750, 1, 0
      %v759 = vsel %vm751, 1, 0
      %v760 = vsel %vm752, 1, 0
      %v761 = vsel %vm753, 1, 0
      %vm762 = vcmp.eq.s32.totalorder %v758, 1
      %vm763 = vcmp.eq.s32.totalorder %v759, 1
      %vm764 = vcmp.eq.s32.totalorder %v760, 1
      %vm765 = vcmp.eq.s32.totalorder %v761, 1
      %v766 = vsel %vm762, %v754, 0.0
      %v767 = vsel %vm763, %v755, 0.0
      %v768 = vsel %vm764, %v756, 0.0
      %v769 = vsel %vm765, %v757, 0.0
      %v770 = vmax.f32 %v704, %v766
      %v771 = vmax.f32 %v705, %v767
      %v772 = vmax.f32 %v706, %v768
      %v773 = vmax.f32 %v707, %v769
      %v774 = vsub.f32 %v198, %v511
      %v775 = vsub.f32 %v199, %v510
      %v776 = vand.u32 2147483647, %v774
      %v777 = vand.u32 2147483647, %v775
      %v780 = vcombine.high %v776, %v776
      %v781 = vcombine.high %v777, %v777
      %v784 = vsel %vm409, %v776, 0.0
      %v785 = vrot.slane %v784, 4
      %v786 = vadd.f32 %v784, %v785
      %v787 = vrot.slane %v786, 2
      %v788 = vadd.f32 %v786, %v787
      %v789 = vrot.slane %v788, 1
      %v790 = vadd.f32 %v788, %v789
      %v791 = vsel %vm409, %v780, 0.0
      %v792 = vrot.slane %v791, 4
      %v793 = vadd.f32 %v791, %v792
      %v794 = vrot.slane %v793, 2
      %v795 = vadd.f32 %v793, %v794
      %v796 = vrot.slane %v795, 1
      %v797 = vadd.f32 %v795, %v796
      %v798 = vsel %vm409, %v777, 0.0
      %v799 = vrot.slane %v798, 4
      %v800 = vadd.f32 %v798, %v799
      %v801 = vrot.slane %v800, 2
      %v802 = vadd.f32 %v800, %v801
      %v803 = vrot.slane %v802, 1
      %v804 = vadd.f32 %v802, %v803
      %v805 = vsel %vm409, %v781, 0.0
      %v806 = vrot.slane %v805, 4
      %v807 = vadd.f32 %v805, %v806
      %v808 = vrot.slane %v807, 2
      %v809 = vadd.f32 %v807, %v808
      %v810 = vrot.slane %v809, 1
      %v811 = vadd.f32 %v809, %v810
      %vm812 = vcmp.lt.f32.partialorder %v790, %v492
      %vm813 = vcmp.lt.f32.partialorder %v797, %v492
      %vm814 = vcmp.lt.f32.partialorder %v804, %v492
      %vm815 = vcmp.lt.f32.partialorder %v811, %v492
      %v816 = vsub.f32 %v503, %v198
      %v817 = vsub.f32 %v502, %v303
      %v818 = vsub.f32 %v505, %v199
      %v819 = vsub.f32 %v504, %v304
      %v820 = vsel %vm812, 1, 0
      %v821 = vsel %vm813, 1, 0
      %v822 = vsel %vm814, 1, 0
      %v823 = vsel %vm815, 1, 0
      %vm824 = vcmp.eq.s32.totalorder %v820, 1
      %vm825 = vcmp.eq.s32.totalorder %v821, 1
      %vm826 = vcmp.eq.s32.totalorder %v822, 1
      %vm827 = vcmp.eq.s32.totalorder %v823, 1
      %v828 = vsel %vm824, %v816, 0.0
      %v829 = vsel %vm825, %v817, 0.0
      %v830 = vsel %vm826, %v818, 0.0
      %v831 = vsel %vm827, %v819, 0.0
      %v832 = vmax.f32 %v770, %v828
      %v833 = vmax.f32 %v771, %v829
      %v834 = vmax.f32 %v772, %v830
      %v835 = vmax.f32 %v773, %v831
      %v836 = vsub.f32 %v198, %v577
      %v837 = vsub.f32 %v199, %v576
      %v838 = vand.u32 2147483647, %v836
      %v839 = vand.u32 2147483647, %v837
      %v842 = vcombine.high %v838, %v838
      %v843 = vcombine.high %v839, %v839
      %v846 = vsel %vm409, %v838, 0.0
      %v847 = vrot.slane %v846, 4
      %v848 = vadd.f32 %v846, %v847
      %v849 = vrot.slane %v848, 2
      %v850 = vadd.f32 %v848, %v849
      %v851 = vrot.slane %v850, 1
      %v852 = vadd.f32 %v850, %v851
      %v853 = vsel %vm409, %v842, 0.0
      %v854 = vrot.slane %v853, 4
      %v855 = vadd.f32 %v853, %v854
      %v856 = vrot.slane %v855, 2
      %v857 = vadd.f32 %v855, %v856
      %v858 = vrot.slane %v857, 1
      %v859 = vadd.f32 %v857, %v858
      %v860 = vsel %vm409, %v839, 0.0
      %v861 = vrot.slane %v860, 4
      %v862 = vadd.f32 %v860, %v861
      %v863 = vrot.slane %v862, 2
      %v864 = vadd.f32 %v862, %v863
      %v865 = vrot.slane %v864, 1
      %v866 = vadd.f32 %v864, %v865
      %v867 = vsel %vm409, %v843, 0.0
      %v868 = vrot.slane %v867, 4
      %v869 = vadd.f32 %v867, %v868
      %v870 = vrot.slane %v869, 2
      %v871 = vadd.f32 %v869, %v870
      %v872 = vrot.slane %v871, 1
      %v873 = vadd.f32 %v871, %v872
      %vm874 = vcmp.lt.f32.partialorder %v852, %v492
      %vm875 = vcmp.lt.f32.partialorder %v859, %v492
      %vm876 = vcmp.lt.f32.partialorder %v866, %v492
      %vm877 = vcmp.lt.f32.partialorder %v873, %v492
      %v878 = vsub.f32 %v303, %v198
      %v879 = vsub.f32 %v199, %v303
      %v880 = vsub.f32 %v304, %v199
      %v881 = vsub.f32 %v198, %v304
      %v882 = vsel %vm874, 1, 0
      %v883 = vsel %vm875, 1, 0
      %v884 = vsel %vm876, 1, 0
      %v885 = vsel %vm877, 1, 0
      %vm886 = vcmp.eq.s32.totalorder %v882, 1
      %vm887 = vcmp.eq.s32.totalorder %v883, 1
      %vm888 = vcmp.eq.s32.totalorder %v884, 1
      %vm889 = vcmp.eq.s32.totalorder %v885, 1
      %v890 = vsel %vm886, %v878, 0.0
      %v891 = vsel %vm887, %v879, 0.0
      %v892 = vsel %vm888, %v880, 0.0
      %v893 = vsel %vm889, %v881, 0.0
      %v894 = vmax.f32 %v832, %v890
      %v895 = vmax.f32 %v833, %v891
      %v896 = vmax.f32 %v834, %v892
      %v897 = vmax.f32 %v835, %v893
      %v898 = vsub.f32 %v198, %v643
      %v899 = vsub.f32 %v199, %v642
      %v900 = vand.u32 2147483647, %v898
      %v901 = vand.u32 2147483647, %v899
      %v904 = vcombine.high %v900, %v900
      %v905 = vcombine.high %v901, %v901
      %v908 = vsel %vm409, %v900, 0.0
      %v909 = vrot.slane %v908, 4
      %v910 = vadd.f32 %v908, %v909
      %v911 = vrot.slane %v910, 2
      %v912 = vadd.f32 %v910, %v911
      %v913 = vrot.slane %v912, 1
      %v914 = vadd.f32 %v912, %v913
      %v915 = vsel %vm409, %v904, 0.0
      %v916 = vrot.slane %v915, 4
      %v917 = vadd.f32 %v915, %v916
      %v918 = vrot.slane %v917, 2
      %v919 = vadd.f32 %v917, %v918
      %v920 = vrot.slane %v919, 1
      %v921 = vadd.f32 %v919, %v920
      %v922 = vsel %vm409, %v901, 0.0
      %v923 = vrot.slane %v922, 4
      %v924 = vadd.f32 %v922, %v923
      %v925 = vrot.slane %v924, 2
      %v926 = vadd.f32 %v924, %v925
      %v927 = vrot.slane %v926, 1
      %v928 = vadd.f32 %v926, %v927
      %v929 = vsel %vm409, %v905, 0.0
      %v930 = vrot.slane %v929, 4
      %v931 = vadd.f32 %v929, %v930
      %v932 = vrot.slane %v931, 2
      %v933 = vadd.f32 %v931, %v932
      %v934 = vrot.slane %v933, 1
      %v935 = vadd.f32 %v933, %v934
      %vm936 = vcmp.lt.f32.partialorder %v914, %v492
      %vm937 = vcmp.lt.f32.partialorder %v921, %v492
      %vm938 = vcmp.lt.f32.partialorder %v928, %v492
      %vm939 = vcmp.lt.f32.partialorder %v935, %v492
      %v940 = vsub.f32 %v504, %v198
      %v941 = vsub.f32 %v503, %v303
      %v942 = vsub.f32 %v502, %v199
      %v943 = vsub.f32 %v505, %v304
      %v944 = vsel %vm936, 1, 0
      %v945 = vsel %vm937, 1, 0
      %v946 = vsel %vm938, 1, 0
      %v947 = vsel %vm939, 1, 0
      %vm948 = vcmp.eq.s32.totalorder %v944, 1
      %vm949 = vcmp.eq.s32.totalorder %v945, 1
      %vm950 = vcmp.eq.s32.totalorder %v946, 1
      %vm951 = vcmp.eq.s32.totalorder %v947, 1
      %v952 = vsel %vm948, %v940, 0.0
      %v953 = vsel %vm949, %v941, 0.0
      %v954 = vsel %vm950, %v942, 0.0
      %v955 = vsel %vm951, %v943, 0.0
      %v956 = vmax.f32 %v894, %v952
      %v957 = vmax.f32 %v895, %v953
      %v958 = vmax.f32 %v896, %v954
      %v959 = vmax.f32 %v897, %v955
      %960 = vrot.lane.b32.xlu0 %v198, 8
      %v961 = vpop.permute.xlu0 %960
      %962 = vrot.lane.b32.xlu0 %v303, 8
      %v963 = vpop.permute.xlu0 %962
      %964 = vrot.lane.b32.xlu0 %v199, 8
      %v965 = vpop.permute.xlu0 %964
      %966 = vrot.lane.b32.xlu0 %v304, 8
      %v967 = vpop.permute.xlu0 %966
      %vm968 = vcmp.lt.s32.totalorder %v201, 8
      %v969 = vsel %vm968, %v965, %v967
      %v970 = vsel %vm968, %v963, %v965
      %v971 = vsel %vm968, %v961, %v963
      %v972 = vsel %vm968, %v967, %v961
      %973 = vrot.lane.b32.xlu0 %v198, 72
      %v974 = vpop.permute.xlu0 %973
      %975 = vrot.lane.b32.xlu0 %v303, 72
      %v976 = vpop.permute.xlu0 %975
      %977 = vrot.lane.b32.xlu0 %v199, 72
      %v978 = vpop.permute.xlu0 %977
      %979 = vrot.lane.b32.xlu0 %v304, 72
      %v980 = vpop.permute.xlu0 %979
      %vm981 = vcmp.lt.s32.totalorder %v201, 72
      %v982 = vsel %vm981, %v978, %v980
      %v983 = vsel %vm981, %v976, %v978
      %v984 = vsel %vm981, %v974, %v976
      %v985 = vsel %vm981, %v980, %v974
      %vm986 = vcmp.ge.s32.totalorder %v249, 8
      %vm987 = vcmp.ge.s32.totalorder %v250, 8
      %vm988 = vcmp.ge.s32.totalorder %v251, 8
      %vm989 = vcmp.ge.s32.totalorder %v252, 8
      %v990 = vsel %vm986, 1, 0
      %v991 = vsel %vm987, 1, 0
      %v992 = vsel %vm988, 1, 0
      %v993 = vsel %vm989, 1, 0
      %vm994 = vcmp.eq.s32.totalorder %v990, 1
      %vm995 = vcmp.eq.s32.totalorder %v991, 1
      %vm996 = vcmp.eq.s32.totalorder %v992, 1
      %vm997 = vcmp.eq.s32.totalorder %v993, 1
      %v998 = vsel %vm994, %v972, %v984
      %v999 = vsel %vm995, %v971, %v983
      %v1000 = vsel %vm996, %v970, %v982
      %v1001 = vsel %vm997, %v969, %v985
      %v1006 = vcombine.low %v998, %v999
      %v1007 = vcombine.low %v1000, %v1001
      %v1010 = vsub.f32 %v198, %v1006
      %v1011 = vsub.f32 %v199, %v1007
      %v1012 = vand.u32 2147483647, %v1010
      %v1013 = vand.u32 2147483647, %v1011
      %v1016 = vcombine.high %v1012, %v1012
      %v1017 = vcombine.high %v1013, %v1013
      %v1020 = vsel %vm409, %v1012, 0.0
      %v1021 = vrot.slane %v1020, 4
      %v1022 = vadd.f32 %v1020, %v1021
      %v1023 = vrot.slane %v1022, 2
      %v1024 = vadd.f32 %v1022, %v1023
      %v1025 = vrot.slane %v1024, 1
      %v1026 = vadd.f32 %v1024, %v1025
      %v1027 = vsel %vm409, %v1016, 0.0
      %v1028 = vrot.slane %v1027, 4
      %v1029 = vadd.f32 %v1027, %v1028
      %v1030 = vrot.slane %v1029, 2
      %v1031 = vadd.f32 %v1029, %v1030
      %v1032 = vrot.slane %v1031, 1
      %v1033 = vadd.f32 %v1031, %v1032
      %v1034 = vsel %vm409, %v1013, 0.0
      %v1035 = vrot.slane %v1034, 4
      %v1036 = vadd.f32 %v1034, %v1035
      %v1037 = vrot.slane %v1036, 2
      %v1038 = vadd.f32 %v1036, %v1037
      %v1039 = vrot.slane %v1038, 1
      %v1040 = vadd.f32 %v1038, %v1039
      %v1041 = vsel %vm409, %v1017, 0.0
      %v1042 = vrot.slane %v1041, 4
      %v1043 = vadd.f32 %v1041, %v1042
      %v1044 = vrot.slane %v1043, 2
      %v1045 = vadd.f32 %v1043, %v1044
      %v1046 = vrot.slane %v1045, 1
      %v1047 = vadd.f32 %v1045, %v1046
      %vm1048 = vcmp.lt.f32.partialorder %v1026, %v492
      %vm1049 = vcmp.lt.f32.partialorder %v1033, %v492
      %vm1050 = vcmp.lt.f32.partialorder %v1040, %v492
      %vm1051 = vcmp.lt.f32.partialorder %v1047, %v492
      %v1052 = vsub.f32 %v998, %v198
      %v1053 = vsub.f32 %v999, %v303
      %v1054 = vsub.f32 %v1000, %v199
      %v1055 = vsub.f32 %v1001, %v304
      %v1056 = vsel %vm1048, 1, 0
      %v1057 = vsel %vm1049, 1, 0
      %v1058 = vsel %vm1050, 1, 0
      %v1059 = vsel %vm1051, 1, 0
      %vm1060 = vcmp.eq.s32.totalorder %v1056, 1
      %vm1061 = vcmp.eq.s32.totalorder %v1057, 1
      %vm1062 = vcmp.eq.s32.totalorder %v1058, 1
      %vm1063 = vcmp.eq.s32.totalorder %v1059, 1
      %v1064 = vsel %vm1060, %v1052, 0.0
      %v1065 = vsel %vm1061, %v1053, 0.0
      %v1066 = vsel %vm1062, %v1054, 0.0
      %v1067 = vsel %vm1063, %v1055, 0.0
      %v1068 = vmax.f32 %v956, %v1064
      %v1069 = vmax.f32 %v957, %v1065
      %v1070 = vmax.f32 %v958, %v1066
      %v1071 = vmax.f32 %v959, %v1067
      %1072 = vrot.lane.b32.xlu0 %v198, 16
      %v1073 = vpop.permute.xlu0 %1072
      %1074 = vrot.lane.b32.xlu0 %v303, 16
      %v1075 = vpop.permute.xlu0 %1074
      %1076 = vrot.lane.b32.xlu0 %v199, 16
      %v1077 = vpop.permute.xlu0 %1076
      %1078 = vrot.lane.b32.xlu0 %v304, 16
      %v1079 = vpop.permute.xlu0 %1078
      %vm1080 = vcmp.lt.s32.totalorder %v201, 16
      %v1081 = vsel %vm1080, %v1077, %v1079
      %v1082 = vsel %vm1080, %v1075, %v1077
      %v1083 = vsel %vm1080, %v1073, %v1075
      %v1084 = vsel %vm1080, %v1079, %v1073
      %1085 = vrot.lane.b32.xlu0 %v198, 80
      %v1086 = vpop.permute.xlu0 %1085
      %1087 = vrot.lane.b32.xlu0 %v303, 80
      %v1088 = vpop.permute.xlu0 %1087
      %1089 = vrot.lane.b32.xlu0 %v199, 80
      %v1090 = vpop.permute.xlu0 %1089
      %1091 = vrot.lane.b32.xlu0 %v304, 80
      %v1092 = vpop.permute.xlu0 %1091
      %vm1093 = vcmp.lt.s32.totalorder %v201, 80
      %v1094 = vsel %vm1093, %v1090, %v1092
      %v1095 = vsel %vm1093, %v1088, %v1090
      %v1096 = vsel %vm1093, %v1086, %v1088
      %v1097 = vsel %vm1093, %v1092, %v1086
      %vm1098 = vcmp.ge.s32.totalorder %v249, 16
      %vm1099 = vcmp.ge.s32.totalorder %v250, 16
      %vm1100 = vcmp.ge.s32.totalorder %v251, 16
      %vm1101 = vcmp.ge.s32.totalorder %v252, 16
      %v1102 = vsel %vm1098, 1, 0
      %v1103 = vsel %vm1099, 1, 0
      %v1104 = vsel %vm1100, 1, 0
      %v1105 = vsel %vm1101, 1, 0
      %vm1106 = vcmp.eq.s32.totalorder %v1102, 1
      %vm1107 = vcmp.eq.s32.totalorder %v1103, 1
      %vm1108 = vcmp.eq.s32.totalorder %v1104, 1
      %vm1109 = vcmp.eq.s32.totalorder %v1105, 1
      %v1110 = vsel %vm1106, %v1084, %v1096
      %v1111 = vsel %vm1107, %v1083, %v1095
      %v1112 = vsel %vm1108, %v1082, %v1094
      %v1113 = vsel %vm1109, %v1081, %v1097
      %v1118 = vcombine.low %v1110, %v1111
      %v1119 = vcombine.low %v1112, %v1113
      %v1122 = vsub.f32 %v198, %v1118
      %v1123 = vsub.f32 %v199, %v1119
      %v1124 = vand.u32 2147483647, %v1122
      %v1125 = vand.u32 2147483647, %v1123
      %v1128 = vcombine.high %v1124, %v1124
      %v1129 = vcombine.high %v1125, %v1125
      %v1132 = vsel %vm409, %v1124, 0.0
      %v1133 = vrot.slane %v1132, 4
      %v1134 = vadd.f32 %v1132, %v1133
      %v1135 = vrot.slane %v1134, 2
      %v1136 = vadd.f32 %v1134, %v1135
      %v1137 = vrot.slane %v1136, 1
      %v1138 = vadd.f32 %v1136, %v1137
      %v1139 = vsel %vm409, %v1128, 0.0
      %v1140 = vrot.slane %v1139, 4
      %v1141 = vadd.f32 %v1139, %v1140
      %v1142 = vrot.slane %v1141, 2
      %v1143 = vadd.f32 %v1141, %v1142
      %v1144 = vrot.slane %v1143, 1
      %v1145 = vadd.f32 %v1143, %v1144
      %v1146 = vsel %vm409, %v1125, 0.0
      %v1147 = vrot.slane %v1146, 4
      %v1148 = vadd.f32 %v1146, %v1147
      %v1149 = vrot.slane %v1148, 2
      %v1150 = vadd.f32 %v1148, %v1149
      %v1151 = vrot.slane %v1150, 1
      %v1152 = vadd.f32 %v1150, %v1151
      %v1153 = vsel %vm409, %v1129, 0.0
      %v1154 = vrot.slane %v1153, 4
      %v1155 = vadd.f32 %v1153, %v1154
      %v1156 = vrot.slane %v1155, 2
      %v1157 = vadd.f32 %v1155, %v1156
      %v1158 = vrot.slane %v1157, 1
      %v1159 = vadd.f32 %v1157, %v1158
      %vm1160 = vcmp.lt.f32.partialorder %v1138, %v492
      %vm1161 = vcmp.lt.f32.partialorder %v1145, %v492
      %vm1162 = vcmp.lt.f32.partialorder %v1152, %v492
      %vm1163 = vcmp.lt.f32.partialorder %v1159, %v492
      %v1164 = vsub.f32 %v1110, %v198
      %v1165 = vsub.f32 %v1111, %v303
      %v1166 = vsub.f32 %v1112, %v199
      %v1167 = vsub.f32 %v1113, %v304
      %v1168 = vsel %vm1160, 1, 0
      %v1169 = vsel %vm1161, 1, 0
      %v1170 = vsel %vm1162, 1, 0
      %v1171 = vsel %vm1163, 1, 0
      %vm1172 = vcmp.eq.s32.totalorder %v1168, 1
      %vm1173 = vcmp.eq.s32.totalorder %v1169, 1
      %vm1174 = vcmp.eq.s32.totalorder %v1170, 1
      %vm1175 = vcmp.eq.s32.totalorder %v1171, 1
      %v1176 = vsel %vm1172, %v1164, 0.0
      %v1177 = vsel %vm1173, %v1165, 0.0
      %v1178 = vsel %vm1174, %v1166, 0.0
      %v1179 = vsel %vm1175, %v1167, 0.0
      %v1180 = vmax.f32 %v1068, %v1176
      %v1181 = vmax.f32 %v1069, %v1177
      %v1182 = vmax.f32 %v1070, %v1178
      %v1183 = vmax.f32 %v1071, %v1179
      %1184 = vrot.lane.b32.xlu0 %v198, 24
      %v1185 = vpop.permute.xlu0 %1184
      %1186 = vrot.lane.b32.xlu0 %v303, 24
      %v1187 = vpop.permute.xlu0 %1186
      %1188 = vrot.lane.b32.xlu0 %v199, 24
      %v1189 = vpop.permute.xlu0 %1188
      %1190 = vrot.lane.b32.xlu0 %v304, 24
      %v1191 = vpop.permute.xlu0 %1190
      %vm1192 = vcmp.lt.s32.totalorder %v201, 24
      %v1193 = vsel %vm1192, %v1189, %v1191
      %v1194 = vsel %vm1192, %v1187, %v1189
      %v1195 = vsel %vm1192, %v1185, %v1187
      %v1196 = vsel %vm1192, %v1191, %v1185
      %1197 = vrot.lane.b32.xlu0 %v198, 88
      %v1198 = vpop.permute.xlu0 %1197
      %1199 = vrot.lane.b32.xlu0 %v303, 88
      %v1200 = vpop.permute.xlu0 %1199
      %1201 = vrot.lane.b32.xlu0 %v199, 88
      %v1202 = vpop.permute.xlu0 %1201
      %1203 = vrot.lane.b32.xlu0 %v304, 88
      %v1204 = vpop.permute.xlu0 %1203
      %vm1205 = vcmp.lt.s32.totalorder %v201, 88
      %v1206 = vsel %vm1205, %v1202, %v1204
      %v1207 = vsel %vm1205, %v1200, %v1202
      %v1208 = vsel %vm1205, %v1198, %v1200
      %v1209 = vsel %vm1205, %v1204, %v1198
      %vm1210 = vcmp.ge.s32.totalorder %v249, 24
      %vm1211 = vcmp.ge.s32.totalorder %v250, 24
      %vm1212 = vcmp.ge.s32.totalorder %v251, 24
      %vm1213 = vcmp.ge.s32.totalorder %v252, 24
      %v1214 = vsel %vm1210, 1, 0
      %v1215 = vsel %vm1211, 1, 0
      %v1216 = vsel %vm1212, 1, 0
      %v1217 = vsel %vm1213, 1, 0
      %vm1218 = vcmp.eq.s32.totalorder %v1214, 1
      %vm1219 = vcmp.eq.s32.totalorder %v1215, 1
      %vm1220 = vcmp.eq.s32.totalorder %v1216, 1
      %vm1221 = vcmp.eq.s32.totalorder %v1217, 1
      %v1222 = vsel %vm1218, %v1196, %v1208
      %v1223 = vsel %vm1219, %v1195, %v1207
      %v1224 = vsel %vm1220, %v1194, %v1206
      %v1225 = vsel %vm1221, %v1193, %v1209
      %v1230 = vcombine.low %v1222, %v1223
      %v1231 = vcombine.low %v1224, %v1225
      %v1234 = vsub.f32 %v198, %v1230
      %v1235 = vsub.f32 %v199, %v1231
      %v1236 = vand.u32 2147483647, %v1234
      %v1237 = vand.u32 2147483647, %v1235
      %v1240 = vcombine.high %v1236, %v1236
      %v1241 = vcombine.high %v1237, %v1237
      %v1244 = vsel %vm409, %v1236, 0.0
      %v1245 = vrot.slane %v1244, 4
      %v1246 = vadd.f32 %v1244, %v1245
      %v1247 = vrot.slane %v1246, 2
      %v1248 = vadd.f32 %v1246, %v1247
      %v1249 = vrot.slane %v1248, 1
      %v1250 = vadd.f32 %v1248, %v1249
      %v1251 = vsel %vm409, %v1240, 0.0
      %v1252 = vrot.slane %v1251, 4
      %v1253 = vadd.f32 %v1251, %v1252
      %v1254 = vrot.slane %v1253, 2
      %v1255 = vadd.f32 %v1253, %v1254
      %v1256 = vrot.slane %v1255, 1
      %v1257 = vadd.f32 %v1255, %v1256
      %v1258 = vsel %vm409, %v1237, 0.0
      %v1259 = vrot.slane %v1258, 4
      %v1260 = vadd.f32 %v1258, %v1259
      %v1261 = vrot.slane %v1260, 2
      %v1262 = vadd.f32 %v1260, %v1261
      %v1263 = vrot.slane %v1262, 1
      %v1264 = vadd.f32 %v1262, %v1263
      %v1265 = vsel %vm409, %v1241, 0.0
      %v1266 = vrot.slane %v1265, 4
      %v1267 = vadd.f32 %v1265, %v1266
      %v1268 = vrot.slane %v1267, 2
      %v1269 = vadd.f32 %v1267, %v1268
      %v1270 = vrot.slane %v1269, 1
      %v1271 = vadd.f32 %v1269, %v1270
      %vm1272 = vcmp.lt.f32.partialorder %v1250, %v492
      %vm1273 = vcmp.lt.f32.partialorder %v1257, %v492
      %vm1274 = vcmp.lt.f32.partialorder %v1264, %v492
      %vm1275 = vcmp.lt.f32.partialorder %v1271, %v492
      %v1276 = vsub.f32 %v1222, %v198
      %v1277 = vsub.f32 %v1223, %v303
      %v1278 = vsub.f32 %v1224, %v199
      %v1279 = vsub.f32 %v1225, %v304
      %v1280 = vsel %vm1272, 1, 0
      %v1281 = vsel %vm1273, 1, 0
      %v1282 = vsel %vm1274, 1, 0
      %v1283 = vsel %vm1275, 1, 0
      %vm1284 = vcmp.eq.s32.totalorder %v1280, 1
      %vm1285 = vcmp.eq.s32.totalorder %v1281, 1
      %vm1286 = vcmp.eq.s32.totalorder %v1282, 1
      %vm1287 = vcmp.eq.s32.totalorder %v1283, 1
      %v1288 = vsel %vm1284, %v1276, 0.0
      %v1289 = vsel %vm1285, %v1277, 0.0
      %v1290 = vsel %vm1286, %v1278, 0.0
      %v1291 = vsel %vm1287, %v1279, 0.0
      %v1292 = vmax.f32 %v1180, %v1288
      %v1293 = vmax.f32 %v1181, %v1289
      %v1294 = vmax.f32 %v1182, %v1290
      %v1295 = vmax.f32 %v1183, %v1291
      %v1296 = vsel %vm341, %v317, %v329
      %v1297 = vsel %vm342, %v316, %v332
      %v1298 = vsel %vm343, %v319, %v331
      %v1299 = vsel %vm344, %v318, %v330
      %v1304 = vcombine.low %v1296, %v1297
      %v1305 = vcombine.low %v1298, %v1299
      %v1308 = vsub.f32 %v198, %v1304
      %v1309 = vsub.f32 %v199, %v1305
      %v1310 = vand.u32 2147483647, %v1308
      %v1311 = vand.u32 2147483647, %v1309
      %v1314 = vcombine.high %v1310, %v1310
      %v1315 = vcombine.high %v1311, %v1311
      %v1318 = vsel %vm409, %v1310, 0.0
      %v1319 = vrot.slane %v1318, 4
      %v1320 = vadd.f32 %v1318, %v1319
      %v1321 = vrot.slane %v1320, 2
      %v1322 = vadd.f32 %v1320, %v1321
      %v1323 = vrot.slane %v1322, 1
      %v1324 = vadd.f32 %v1322, %v1323
      %v1325 = vsel %vm409, %v1314, 0.0
      %v1326 = vrot.slane %v1325, 4
      %v1327 = vadd.f32 %v1325, %v1326
      %v1328 = vrot.slane %v1327, 2
      %v1329 = vadd.f32 %v1327, %v1328
      %v1330 = vrot.slane %v1329, 1
      %v1331 = vadd.f32 %v1329, %v1330
      %v1332 = vsel %vm409, %v1311, 0.0
      %v1333 = vrot.slane %v1332, 4
      %v1334 = vadd.f32 %v1332, %v1333
      %v1335 = vrot.slane %v1334, 2
      %v1336 = vadd.f32 %v1334, %v1335
      %v1337 = vrot.slane %v1336, 1
      %v1338 = vadd.f32 %v1336, %v1337
      %v1339 = vsel %vm409, %v1315, 0.0
      %v1340 = vrot.slane %v1339, 4
      %v1341 = vadd.f32 %v1339, %v1340
      %v1342 = vrot.slane %v1341, 2
      %v1343 = vadd.f32 %v1341, %v1342
      %v1344 = vrot.slane %v1343, 1
      %v1345 = vadd.f32 %v1343, %v1344
      %vm1346 = vcmp.lt.f32.partialorder %v1324, %v492
      %vm1347 = vcmp.lt.f32.partialorder %v1331, %v492
      %vm1348 = vcmp.lt.f32.partialorder %v1338, %v492
      %vm1349 = vcmp.lt.f32.partialorder %v1345, %v492
      %v1350 = vsub.f32 %v1296, %v198
      %v1351 = vsub.f32 %v1297, %v303
      %v1352 = vsub.f32 %v1298, %v199
      %v1353 = vsub.f32 %v1299, %v304
      %v1354 = vsel %vm1346, 1, 0
      %v1355 = vsel %vm1347, 1, 0
      %v1356 = vsel %vm1348, 1, 0
      %v1357 = vsel %vm1349, 1, 0
      %vm1358 = vcmp.eq.s32.totalorder %v1354, 1
      %vm1359 = vcmp.eq.s32.totalorder %v1355, 1
      %vm1360 = vcmp.eq.s32.totalorder %v1356, 1
      %vm1361 = vcmp.eq.s32.totalorder %v1357, 1
      %v1362 = vsel %vm1358, %v1350, 0.0
      %v1363 = vsel %vm1359, %v1351, 0.0
      %v1364 = vsel %vm1360, %v1352, 0.0
      %v1365 = vsel %vm1361, %v1353, 0.0
      %v1366 = vmax.f32 %v1292, %v1362
      %v1367 = vmax.f32 %v1293, %v1363
      %v1368 = vmax.f32 %v1294, %v1364
      %v1369 = vmax.f32 %v1295, %v1365
      %1370 = vrot.lane.b32.xlu0 %v198, 40
      %v1371 = vpop.permute.xlu0 %1370
      %1372 = vrot.lane.b32.xlu0 %v303, 40
      %v1373 = vpop.permute.xlu0 %1372
      %1374 = vrot.lane.b32.xlu0 %v199, 40
      %v1375 = vpop.permute.xlu0 %1374
      %1376 = vrot.lane.b32.xlu0 %v304, 40
      %v1377 = vpop.permute.xlu0 %1376
      %vm1378 = vcmp.lt.s32.totalorder %v201, 40
      %v1379 = vsel %vm1378, %v1375, %v1377
      %v1380 = vsel %vm1378, %v1373, %v1375
      %v1381 = vsel %vm1378, %v1371, %v1373
      %v1382 = vsel %vm1378, %v1377, %v1371
      %1383 = vrot.lane.b32.xlu0 %v198, 104
      %v1384 = vpop.permute.xlu0 %1383
      %1385 = vrot.lane.b32.xlu0 %v303, 104
      %v1386 = vpop.permute.xlu0 %1385
      %1387 = vrot.lane.b32.xlu0 %v199, 104
      %v1388 = vpop.permute.xlu0 %1387
      %1389 = vrot.lane.b32.xlu0 %v304, 104
      %v1390 = vpop.permute.xlu0 %1389
      %vm1391 = vcmp.lt.s32.totalorder %v201, 104
      %v1392 = vsel %vm1391, %v1388, %v1390
      %v1393 = vsel %vm1391, %v1386, %v1388
      %v1394 = vsel %vm1391, %v1384, %v1386
      %v1395 = vsel %vm1391, %v1390, %v1384
      %vm1396 = vcmp.ge.s32.totalorder %v249, 40
      %vm1397 = vcmp.ge.s32.totalorder %v250, 40
      %vm1398 = vcmp.ge.s32.totalorder %v251, 40
      %vm1399 = vcmp.ge.s32.totalorder %v252, 40
      %v1400 = vsel %vm1396, 1, 0
      %v1401 = vsel %vm1397, 1, 0
      %v1402 = vsel %vm1398, 1, 0
      %v1403 = vsel %vm1399, 1, 0
      %vm1404 = vcmp.eq.s32.totalorder %v1400, 1
      %vm1405 = vcmp.eq.s32.totalorder %v1401, 1
      %vm1406 = vcmp.eq.s32.totalorder %v1402, 1
      %vm1407 = vcmp.eq.s32.totalorder %v1403, 1
      %v1408 = vsel %vm1404, %v1382, %v1394
      %v1409 = vsel %vm1405, %v1381, %v1393
      %v1410 = vsel %vm1406, %v1380, %v1392
      %v1411 = vsel %vm1407, %v1379, %v1395
      %v1416 = vcombine.low %v1408, %v1409
      %v1417 = vcombine.low %v1410, %v1411
      %v1420 = vsub.f32 %v198, %v1416
      %v1421 = vsub.f32 %v199, %v1417
      %v1422 = vand.u32 2147483647, %v1420
      %v1423 = vand.u32 2147483647, %v1421
      %v1426 = vcombine.high %v1422, %v1422
      %v1427 = vcombine.high %v1423, %v1423
      %v1430 = vsel %vm409, %v1422, 0.0
      %v1431 = vrot.slane %v1430, 4
      %v1432 = vadd.f32 %v1430, %v1431
      %v1433 = vrot.slane %v1432, 2
      %v1434 = vadd.f32 %v1432, %v1433
      %v1435 = vrot.slane %v1434, 1
      %v1436 = vadd.f32 %v1434, %v1435
      %v1437 = vsel %vm409, %v1426, 0.0
      %v1438 = vrot.slane %v1437, 4
      %v1439 = vadd.f32 %v1437, %v1438
      %v1440 = vrot.slane %v1439, 2
      %v1441 = vadd.f32 %v1439, %v1440
      %v1442 = vrot.slane %v1441, 1
      %v1443 = vadd.f32 %v1441, %v1442
      %v1444 = vsel %vm409, %v1423, 0.0
      %v1445 = vrot.slane %v1444, 4
      %v1446 = vadd.f32 %v1444, %v1445
      %v1447 = vrot.slane %v1446, 2
      %v1448 = vadd.f32 %v1446, %v1447
      %v1449 = vrot.slane %v1448, 1
      %v1450 = vadd.f32 %v1448, %v1449
      %v1451 = vsel %vm409, %v1427, 0.0
      %v1452 = vrot.slane %v1451, 4
      %v1453 = vadd.f32 %v1451, %v1452
      %v1454 = vrot.slane %v1453, 2
      %v1455 = vadd.f32 %v1453, %v1454
      %v1456 = vrot.slane %v1455, 1
      %v1457 = vadd.f32 %v1455, %v1456
      %vm1458 = vcmp.lt.f32.partialorder %v1436, %v492
      %vm1459 = vcmp.lt.f32.partialorder %v1443, %v492
      %vm1460 = vcmp.lt.f32.partialorder %v1450, %v492
      %vm1461 = vcmp.lt.f32.partialorder %v1457, %v492
      %v1462 = vsub.f32 %v1408, %v198
      %v1463 = vsub.f32 %v1409, %v303
      %v1464 = vsub.f32 %v1410, %v199
      %v1465 = vsub.f32 %v1411, %v304
      %v1466 = vsel %vm1458, 1, 0
      %v1467 = vsel %vm1459, 1, 0
      %v1468 = vsel %vm1460, 1, 0
      %v1469 = vsel %vm1461, 1, 0
      %vm1470 = vcmp.eq.s32.totalorder %v1466, 1
      %vm1471 = vcmp.eq.s32.totalorder %v1467, 1
      %vm1472 = vcmp.eq.s32.totalorder %v1468, 1
      %vm1473 = vcmp.eq.s32.totalorder %v1469, 1
      %v1474 = vsel %vm1470, %v1462, 0.0
      %v1475 = vsel %vm1471, %v1463, 0.0
      %v1476 = vsel %vm1472, %v1464, 0.0
      %v1477 = vsel %vm1473, %v1465, 0.0
      %v1478 = vmax.f32 %v1366, %v1474
      %v1479 = vmax.f32 %v1367, %v1475
      %v1480 = vmax.f32 %v1368, %v1476
      %v1481 = vmax.f32 %v1369, %v1477
      %1482 = vrot.lane.b32.xlu0 %v198, 48
      %v1483 = vpop.permute.xlu0 %1482
      %1484 = vrot.lane.b32.xlu0 %v303, 48
      %v1485 = vpop.permute.xlu0 %1484
      %1486 = vrot.lane.b32.xlu0 %v199, 48
      %v1487 = vpop.permute.xlu0 %1486
      %1488 = vrot.lane.b32.xlu0 %v304, 48
      %v1489 = vpop.permute.xlu0 %1488
      %vm1490 = vcmp.lt.s32.totalorder %v201, 48
      %v1491 = vsel %vm1490, %v1487, %v1489
      %v1492 = vsel %vm1490, %v1485, %v1487
      %v1493 = vsel %vm1490, %v1483, %v1485
      %v1494 = vsel %vm1490, %v1489, %v1483
      %1495 = vrot.lane.b32.xlu0 %v198, 112
      %v1496 = vpop.permute.xlu0 %1495
      %1497 = vrot.lane.b32.xlu0 %v303, 112
      %v1498 = vpop.permute.xlu0 %1497
      %1499 = vrot.lane.b32.xlu0 %v199, 112
      %v1500 = vpop.permute.xlu0 %1499
      %1501 = vrot.lane.b32.xlu0 %v304, 112
      %v1502 = vpop.permute.xlu0 %1501
      %vm1503 = vcmp.lt.s32.totalorder %v201, 112
      %v1504 = vsel %vm1503, %v1500, %v1502
      %v1505 = vsel %vm1503, %v1498, %v1500
      %v1506 = vsel %vm1503, %v1496, %v1498
      %v1507 = vsel %vm1503, %v1502, %v1496
      %vm1508 = vcmp.ge.s32.totalorder %v249, 48
      %vm1509 = vcmp.ge.s32.totalorder %v250, 48
      %vm1510 = vcmp.ge.s32.totalorder %v251, 48
      %vm1511 = vcmp.ge.s32.totalorder %v252, 48
      %v1512 = vsel %vm1508, 1, 0
      %v1513 = vsel %vm1509, 1, 0
      %v1514 = vsel %vm1510, 1, 0
      %v1515 = vsel %vm1511, 1, 0
      %vm1516 = vcmp.eq.s32.totalorder %v1512, 1
      %vm1517 = vcmp.eq.s32.totalorder %v1513, 1
      %vm1518 = vcmp.eq.s32.totalorder %v1514, 1
      %vm1519 = vcmp.eq.s32.totalorder %v1515, 1
      %v1520 = vsel %vm1516, %v1494, %v1506
      %v1521 = vsel %vm1517, %v1493, %v1505
      %v1522 = vsel %vm1518, %v1492, %v1504
      %v1523 = vsel %vm1519, %v1491, %v1507
      %v1528 = vcombine.low %v1520, %v1521
      %v1529 = vcombine.low %v1522, %v1523
      %v1532 = vsub.f32 %v198, %v1528
      %v1533 = vsub.f32 %v199, %v1529
      %v1534 = vand.u32 2147483647, %v1532
      %v1535 = vand.u32 2147483647, %v1533
      %v1538 = vcombine.high %v1534, %v1534
      %v1539 = vcombine.high %v1535, %v1535
      %v1542 = vsel %vm409, %v1534, 0.0
      %v1543 = vrot.slane %v1542, 4
      %v1544 = vadd.f32 %v1542, %v1543
      %v1545 = vrot.slane %v1544, 2
      %v1546 = vadd.f32 %v1544, %v1545
      %v1547 = vrot.slane %v1546, 1
      %v1548 = vadd.f32 %v1546, %v1547
      %v1549 = vsel %vm409, %v1538, 0.0
      %v1550 = vrot.slane %v1549, 4
      %v1551 = vadd.f32 %v1549, %v1550
      %v1552 = vrot.slane %v1551, 2
      %v1553 = vadd.f32 %v1551, %v1552
      %v1554 = vrot.slane %v1553, 1
      %v1555 = vadd.f32 %v1553, %v1554
      %v1556 = vsel %vm409, %v1535, 0.0
      %v1557 = vrot.slane %v1556, 4
      %v1558 = vadd.f32 %v1556, %v1557
      %v1559 = vrot.slane %v1558, 2
      %v1560 = vadd.f32 %v1558, %v1559
      %v1561 = vrot.slane %v1560, 1
      %v1562 = vadd.f32 %v1560, %v1561
      %v1563 = vsel %vm409, %v1539, 0.0
      %v1564 = vrot.slane %v1563, 4
      %v1565 = vadd.f32 %v1563, %v1564
      %v1566 = vrot.slane %v1565, 2
      %v1567 = vadd.f32 %v1565, %v1566
      %v1568 = vrot.slane %v1567, 1
      %v1569 = vadd.f32 %v1567, %v1568
      %vm1570 = vcmp.lt.f32.partialorder %v1548, %v492
      %vm1571 = vcmp.lt.f32.partialorder %v1555, %v492
      %vm1572 = vcmp.lt.f32.partialorder %v1562, %v492
      %vm1573 = vcmp.lt.f32.partialorder %v1569, %v492
      %v1574 = vsub.f32 %v1520, %v198
      %v1575 = vsub.f32 %v1521, %v303
      %v1576 = vsub.f32 %v1522, %v199
      %v1577 = vsub.f32 %v1523, %v304
      %v1578 = vsel %vm1570, 1, 0
      %v1579 = vsel %vm1571, 1, 0
      %v1580 = vsel %vm1572, 1, 0
      %v1581 = vsel %vm1573, 1, 0
      %vm1582 = vcmp.eq.s32.totalorder %v1578, 1
      %vm1583 = vcmp.eq.s32.totalorder %v1579, 1
      %vm1584 = vcmp.eq.s32.totalorder %v1580, 1
      %vm1585 = vcmp.eq.s32.totalorder %v1581, 1
      %v1586 = vsel %vm1582, %v1574, 0.0
      %v1587 = vsel %vm1583, %v1575, 0.0
      %v1588 = vsel %vm1584, %v1576, 0.0
      %v1589 = vsel %vm1585, %v1577, 0.0
      %v1590 = vmax.f32 %v1478, %v1586
      %v1591 = vmax.f32 %v1479, %v1587
      %v1592 = vmax.f32 %v1480, %v1588
      %v1593 = vmax.f32 %v1481, %v1589
      %1594 = vrot.lane.b32.xlu0 %v198, 56
      %v1595 = vpop.permute.xlu0 %1594
      %1596 = vrot.lane.b32.xlu0 %v303, 56
      %v1597 = vpop.permute.xlu0 %1596
      %1598 = vrot.lane.b32.xlu0 %v199, 56
      %v1599 = vpop.permute.xlu0 %1598
      %1600 = vrot.lane.b32.xlu0 %v304, 56
      %v1601 = vpop.permute.xlu0 %1600
      %vm1602 = vcmp.lt.s32.totalorder %v201, 56
      %v1603 = vsel %vm1602, %v1599, %v1601
      %v1604 = vsel %vm1602, %v1597, %v1599
      %v1605 = vsel %vm1602, %v1595, %v1597
      %v1606 = vsel %vm1602, %v1601, %v1595
      %1607 = vrot.lane.b32.xlu0 %v198, 120
      %v1608 = vpop.permute.xlu0 %1607
      %1609 = vrot.lane.b32.xlu0 %v303, 120
      %v1610 = vpop.permute.xlu0 %1609
      %1611 = vrot.lane.b32.xlu0 %v199, 120
      %v1612 = vpop.permute.xlu0 %1611
      %1613 = vrot.lane.b32.xlu0 %v304, 120
      %v1614 = vpop.permute.xlu0 %1613
      %vm1615 = vcmp.lt.s32.totalorder %v201, 120
      %v1616 = vsel %vm1615, %v1612, %v1614
      %v1617 = vsel %vm1615, %v1610, %v1612
      %v1618 = vsel %vm1615, %v1608, %v1610
      %v1619 = vsel %vm1615, %v1614, %v1608
      %vm1620 = vcmp.ge.s32.totalorder %v249, 56
      %vm1621 = vcmp.ge.s32.totalorder %v250, 56
      %vm1622 = vcmp.ge.s32.totalorder %v251, 56
      %vm1623 = vcmp.ge.s32.totalorder %v252, 56
      %v1624 = vsel %vm1620, 1, 0
      %v1625 = vsel %vm1621, 1, 0
      %v1626 = vsel %vm1622, 1, 0
      %v1627 = vsel %vm1623, 1, 0
      %vm1628 = vcmp.eq.s32.totalorder %v1624, 1
      %vm1629 = vcmp.eq.s32.totalorder %v1625, 1
      %vm1630 = vcmp.eq.s32.totalorder %v1626, 1
      %vm1631 = vcmp.eq.s32.totalorder %v1627, 1
      %v1632 = vsel %vm1628, %v1606, %v1618
      %v1633 = vsel %vm1629, %v1605, %v1617
      %v1634 = vsel %vm1630, %v1604, %v1616
      %v1635 = vsel %vm1631, %v1603, %v1619
      %v1640 = vcombine.low %v1632, %v1633
      %v1641 = vcombine.low %v1634, %v1635
      %v1644 = vsub.f32 %v198, %v1640
      %v1645 = vsub.f32 %v199, %v1641
      %v1646 = vand.u32 2147483647, %v1644
      %v1647 = vand.u32 2147483647, %v1645
      %v1650 = vcombine.high %v1646, %v1646
      %v1651 = vcombine.high %v1647, %v1647
      %v1654 = vsel %vm409, %v1646, 0.0
      %v1655 = vrot.slane %v1654, 4
      %v1656 = vadd.f32 %v1654, %v1655
      %v1657 = vrot.slane %v1656, 2
      %v1658 = vadd.f32 %v1656, %v1657
      %v1659 = vrot.slane %v1658, 1
      %v1660 = vadd.f32 %v1658, %v1659
      %v1661 = vsel %vm409, %v1650, 0.0
      %v1662 = vrot.slane %v1661, 4
      %v1663 = vadd.f32 %v1661, %v1662
      %v1664 = vrot.slane %v1663, 2
      %v1665 = vadd.f32 %v1663, %v1664
      %v1666 = vrot.slane %v1665, 1
      %v1667 = vadd.f32 %v1665, %v1666
      %v1668 = vsel %vm409, %v1647, 0.0
      %v1669 = vrot.slane %v1668, 4
      %v1670 = vadd.f32 %v1668, %v1669
      %v1671 = vrot.slane %v1670, 2
      %v1672 = vadd.f32 %v1670, %v1671
      %v1673 = vrot.slane %v1672, 1
      %v1674 = vadd.f32 %v1672, %v1673
      %v1675 = vsel %vm409, %v1651, 0.0
      %v1676 = vrot.slane %v1675, 4
      %v1677 = vadd.f32 %v1675, %v1676
      %v1678 = vrot.slane %v1677, 2
      %v1679 = vadd.f32 %v1677, %v1678
      %v1680 = vrot.slane %v1679, 1
      %v1681 = vadd.f32 %v1679, %v1680
      %vm1682 = vcmp.lt.f32.partialorder %v1660, %v492
      %vm1683 = vcmp.lt.f32.partialorder %v1667, %v492
      %vm1684 = vcmp.lt.f32.partialorder %v1674, %v492
      %vm1685 = vcmp.lt.f32.partialorder %v1681, %v492
      %v1686 = vsub.f32 %v1632, %v198
      %v1687 = vsub.f32 %v1633, %v303
      %v1688 = vsub.f32 %v1634, %v199
      %v1689 = vsub.f32 %v1635, %v304
      %v1690 = vsel %vm1682, 1, 0
      %v1691 = vsel %vm1683, 1, 0
      %v1692 = vsel %vm1684, 1, 0
      %v1693 = vsel %vm1685, 1, 0
      %vm1694 = vcmp.eq.s32.totalorder %v1690, 1
      %vm1695 = vcmp.eq.s32.totalorder %v1691, 1
      %vm1696 = vcmp.eq.s32.totalorder %v1692, 1
      %vm1697 = vcmp.eq.s32.totalorder %v1693, 1
      %v1698 = vsel %vm1694, %v1686, 0.0
      %v1699 = vsel %vm1695, %v1687, 0.0
      %v1700 = vsel %vm1696, %v1688, 0.0
      %v1701 = vsel %vm1697, %v1689, 0.0
      %v1702 = vmax.f32 %v1590, %v1698
      %v1703 = vmax.f32 %v1591, %v1699
      %v1704 = vmax.f32 %v1592, %v1700
      %v1705 = vmax.f32 %v1593, %v1701
      %1706 = vrot.lane.b32.xlu0 %v198, 1
      %v1707 = vpop.permute.xlu0 %1706
      %1708 = vrot.lane.b32.xlu0 %v303, 1
      %v1709 = vpop.permute.xlu0 %1708
      %1710 = vrot.lane.b32.xlu0 %v199, 1
      %v1711 = vpop.permute.xlu0 %1710
      %1712 = vrot.lane.b32.xlu0 %v304, 1
      %v1713 = vpop.permute.xlu0 %1712
      %vm1714 = vcmp.lt.s32.totalorder %v201, 1
      %v1715 = vsel %vm1714, %v1711, %v1713
      %v1716 = vsel %vm1714, %v1709, %v1711
      %v1717 = vsel %vm1714, %v1707, %v1709
      %v1718 = vsel %vm1714, %v1713, %v1707
      %1719 = vrot.lane.b32.xlu0 %v198, 121
      %v1720 = vpop.permute.xlu0 %1719
      %1721 = vrot.lane.b32.xlu0 %v303, 121
      %v1722 = vpop.permute.xlu0 %1721
      %1723 = vrot.lane.b32.xlu0 %v199, 121
      %v1724 = vpop.permute.xlu0 %1723
      %1725 = vrot.lane.b32.xlu0 %v304, 121
      %v1726 = vpop.permute.xlu0 %1725
      %vm1727 = vcmp.lt.s32.totalorder %v201, 121
      %v1728 = vsel %vm1727, %v1724, %v1726
      %v1729 = vsel %vm1727, %v1722, %v1724
      %v1730 = vsel %vm1727, %v1720, %v1722
      %v1731 = vsel %vm1727, %v1726, %v1720
      %vm1732 = vcmp.ge.s32.totalorder %v297, 1
      %vm1733 = vcmp.ge.s32.totalorder %v298, 1
      %vm1734 = vcmp.ge.s32.totalorder %v299, 1
      %vm1735 = vcmp.ge.s32.totalorder %v300, 1
      %v1736 = vsel %vm1732, 1, 0
      %v1737 = vsel %vm1733, 1, 0
      %v1738 = vsel %vm1734, 1, 0
      %v1739 = vsel %vm1735, 1, 0
      %vm1740 = vcmp.eq.s32.totalorder %v1736, 1
      %vm1741 = vcmp.eq.s32.totalorder %v1737, 1
      %vm1742 = vcmp.eq.s32.totalorder %v1738, 1
      %vm1743 = vcmp.eq.s32.totalorder %v1739, 1
      %v1744 = vsel %vm1740, %v1718, %v1730
      %v1745 = vsel %vm1741, %v1717, %v1729
      %v1746 = vsel %vm1742, %v1716, %v1728
      %v1747 = vsel %vm1743, %v1715, %v1731
      %v1752 = vcombine.low %v1744, %v1745
      %v1753 = vcombine.low %v1746, %v1747
      %v1756 = vsub.f32 %v198, %v1752
      %v1757 = vsub.f32 %v199, %v1753
      %v1758 = vand.u32 2147483647, %v1756
      %v1759 = vand.u32 2147483647, %v1757
      %v1762 = vcombine.high %v1758, %v1758
      %v1763 = vcombine.high %v1759, %v1759
      %v1766 = vsel %vm409, %v1758, 0.0
      %v1767 = vrot.slane %v1766, 4
      %v1768 = vadd.f32 %v1766, %v1767
      %v1769 = vrot.slane %v1768, 2
      %v1770 = vadd.f32 %v1768, %v1769
      %v1771 = vrot.slane %v1770, 1
      %v1772 = vadd.f32 %v1770, %v1771
      %v1773 = vsel %vm409, %v1762, 0.0
      %v1774 = vrot.slane %v1773, 4
      %v1775 = vadd.f32 %v1773, %v1774
      %v1776 = vrot.slane %v1775, 2
      %v1777 = vadd.f32 %v1775, %v1776
      %v1778 = vrot.slane %v1777, 1
      %v1779 = vadd.f32 %v1777, %v1778
      %v1780 = vsel %vm409, %v1759, 0.0
      %v1781 = vrot.slane %v1780, 4
      %v1782 = vadd.f32 %v1780, %v1781
      %v1783 = vrot.slane %v1782, 2
      %v1784 = vadd.f32 %v1782, %v1783
      %v1785 = vrot.slane %v1784, 1
      %v1786 = vadd.f32 %v1784, %v1785
      %v1787 = vsel %vm409, %v1763, 0.0
      %v1788 = vrot.slane %v1787, 4
      %v1789 = vadd.f32 %v1787, %v1788
      %v1790 = vrot.slane %v1789, 2
      %v1791 = vadd.f32 %v1789, %v1790
      %v1792 = vrot.slane %v1791, 1
      %v1793 = vadd.f32 %v1791, %v1792
      %vm1794 = vcmp.lt.f32.partialorder %v1772, %v492
      %vm1795 = vcmp.lt.f32.partialorder %v1779, %v492
      %vm1796 = vcmp.lt.f32.partialorder %v1786, %v492
      %vm1797 = vcmp.lt.f32.partialorder %v1793, %v492
      %v1798 = vsub.f32 %v1744, %v198
      %v1799 = vsub.f32 %v1745, %v303
      %v1800 = vsub.f32 %v1746, %v199
      %v1801 = vsub.f32 %v1747, %v304
      %v1802 = vsel %vm1794, 1, 0
      %v1803 = vsel %vm1795, 1, 0
      %v1804 = vsel %vm1796, 1, 0
      %v1805 = vsel %vm1797, 1, 0
      %vm1806 = vcmp.eq.s32.totalorder %v1802, 1
      %vm1807 = vcmp.eq.s32.totalorder %v1803, 1
      %vm1808 = vcmp.eq.s32.totalorder %v1804, 1
      %vm1809 = vcmp.eq.s32.totalorder %v1805, 1
      %v1810 = vsel %vm1806, %v1798, 0.0
      %v1811 = vsel %vm1807, %v1799, 0.0
      %v1812 = vsel %vm1808, %v1800, 0.0
      %v1813 = vsel %vm1809, %v1801, 0.0
      %v1814 = vmax.f32 %v1702, %v1810
      %v1815 = vmax.f32 %v1703, %v1811
      %v1816 = vmax.f32 %v1704, %v1812
      %v1817 = vmax.f32 %v1705, %v1813
      %1818 = vrot.lane.b32.xlu0 %v198, 2
      %v1819 = vpop.permute.xlu0 %1818
      %1820 = vrot.lane.b32.xlu0 %v303, 2
      %v1821 = vpop.permute.xlu0 %1820
      %1822 = vrot.lane.b32.xlu0 %v199, 2
      %v1823 = vpop.permute.xlu0 %1822
      %1824 = vrot.lane.b32.xlu0 %v304, 2
      %v1825 = vpop.permute.xlu0 %1824
      %vm1826 = vcmp.lt.s32.totalorder %v201, 2
      %v1827 = vsel %vm1826, %v1823, %v1825
      %v1828 = vsel %vm1826, %v1821, %v1823
      %v1829 = vsel %vm1826, %v1819, %v1821
      %v1830 = vsel %vm1826, %v1825, %v1819
      %1831 = vrot.lane.b32.xlu0 %v198, 122
      %v1832 = vpop.permute.xlu0 %1831
      %1833 = vrot.lane.b32.xlu0 %v303, 122
      %v1834 = vpop.permute.xlu0 %1833
      %1835 = vrot.lane.b32.xlu0 %v199, 122
      %v1836 = vpop.permute.xlu0 %1835
      %1837 = vrot.lane.b32.xlu0 %v304, 122
      %v1838 = vpop.permute.xlu0 %1837
      %vm1839 = vcmp.lt.s32.totalorder %v201, 122
      %v1840 = vsel %vm1839, %v1836, %v1838
      %v1841 = vsel %vm1839, %v1834, %v1836
      %v1842 = vsel %vm1839, %v1832, %v1834
      %v1843 = vsel %vm1839, %v1838, %v1832
      %vm1844 = vcmp.ge.s32.totalorder %v297, 2
      %vm1845 = vcmp.ge.s32.totalorder %v298, 2
      %vm1846 = vcmp.ge.s32.totalorder %v299, 2
      %vm1847 = vcmp.ge.s32.totalorder %v300, 2
      %v1848 = vsel %vm1844, 1, 0
      %v1849 = vsel %vm1845, 1, 0
      %v1850 = vsel %vm1846, 1, 0
      %v1851 = vsel %vm1847, 1, 0
      %vm1852 = vcmp.eq.s32.totalorder %v1848, 1
      %vm1853 = vcmp.eq.s32.totalorder %v1849, 1
      %vm1854 = vcmp.eq.s32.totalorder %v1850, 1
      %vm1855 = vcmp.eq.s32.totalorder %v1851, 1
      %v1856 = vsel %vm1852, %v1830, %v1842
      %v1857 = vsel %vm1853, %v1829, %v1841
      %v1858 = vsel %vm1854, %v1828, %v1840
      %v1859 = vsel %vm1855, %v1827, %v1843
      %v1864 = vcombine.low %v1856, %v1857
      %v1865 = vcombine.low %v1858, %v1859
      %v1868 = vsub.f32 %v198, %v1864
      %v1869 = vsub.f32 %v199, %v1865
      %v1870 = vand.u32 2147483647, %v1868
      %v1871 = vand.u32 2147483647, %v1869
      %v1874 = vcombine.high %v1870, %v1870
      %v1875 = vcombine.high %v1871, %v1871
      %v1878 = vsel %vm409, %v1870, 0.0
      %v1879 = vrot.slane %v1878, 4
      %v1880 = vadd.f32 %v1878, %v1879
      %v1881 = vrot.slane %v1880, 2
      %v1882 = vadd.f32 %v1880, %v1881
      %v1883 = vrot.slane %v1882, 1
      %v1884 = vadd.f32 %v1882, %v1883
      %v1885 = vsel %vm409, %v1874, 0.0
      %v1886 = vrot.slane %v1885, 4
      %v1887 = vadd.f32 %v1885, %v1886
      %v1888 = vrot.slane %v1887, 2
      %v1889 = vadd.f32 %v1887, %v1888
      %v1890 = vrot.slane %v1889, 1
      %v1891 = vadd.f32 %v1889, %v1890
      %v1892 = vsel %vm409, %v1871, 0.0
      %v1893 = vrot.slane %v1892, 4
      %v1894 = vadd.f32 %v1892, %v1893
      %v1895 = vrot.slane %v1894, 2
      %v1896 = vadd.f32 %v1894, %v1895
      %v1897 = vrot.slane %v1896, 1
      %v1898 = vadd.f32 %v1896, %v1897
      %v1899 = vsel %vm409, %v1875, 0.0
      %v1900 = vrot.slane %v1899, 4
      %v1901 = vadd.f32 %v1899, %v1900
      %v1902 = vrot.slane %v1901, 2
      %v1903 = vadd.f32 %v1901, %v1902
      %v1904 = vrot.slane %v1903, 1
      %v1905 = vadd.f32 %v1903, %v1904
      %vm1906 = vcmp.lt.f32.partialorder %v1884, %v492
      %vm1907 = vcmp.lt.f32.partialorder %v1891, %v492
      %vm1908 = vcmp.lt.f32.partialorder %v1898, %v492
      %vm1909 = vcmp.lt.f32.partialorder %v1905, %v492
      %v1910 = vsub.f32 %v1856, %v198
      %v1911 = vsub.f32 %v1857, %v303
      %v1912 = vsub.f32 %v1858, %v199
      %v1913 = vsub.f32 %v1859, %v304
      %v1914 = vsel %vm1906, 1, 0
      %v1915 = vsel %vm1907, 1, 0
      %v1916 = vsel %vm1908, 1, 0
      %v1917 = vsel %vm1909, 1, 0
      %vm1918 = vcmp.eq.s32.totalorder %v1914, 1
      %vm1919 = vcmp.eq.s32.totalorder %v1915, 1
      %vm1920 = vcmp.eq.s32.totalorder %v1916, 1
      %vm1921 = vcmp.eq.s32.totalorder %v1917, 1
      %v1922 = vsel %vm1918, %v1910, 0.0
      %v1923 = vsel %vm1919, %v1911, 0.0
      %v1924 = vsel %vm1920, %v1912, 0.0
      %v1925 = vsel %vm1921, %v1913, 0.0
      %v1926 = vmax.f32 %v1814, %v1922
      %v1927 = vmax.f32 %v1815, %v1923
      %v1928 = vmax.f32 %v1816, %v1924
      %v1929 = vmax.f32 %v1817, %v1925
      %1930 = vrot.lane.b32.xlu0 %v198, 3
      %v1931 = vpop.permute.xlu0 %1930
      %1932 = vrot.lane.b32.xlu0 %v303, 3
      %v1933 = vpop.permute.xlu0 %1932
      %1934 = vrot.lane.b32.xlu0 %v199, 3
      %v1935 = vpop.permute.xlu0 %1934
      %1936 = vrot.lane.b32.xlu0 %v304, 3
      %v1937 = vpop.permute.xlu0 %1936
      %vm1938 = vcmp.lt.s32.totalorder %v201, 3
      %v1939 = vsel %vm1938, %v1935, %v1937
      %v1940 = vsel %vm1938, %v1933, %v1935
      %v1941 = vsel %vm1938, %v1931, %v1933
      %v1942 = vsel %vm1938, %v1937, %v1931
      %1943 = vrot.lane.b32.xlu0 %v198, 123
      %v1944 = vpop.permute.xlu0 %1943
      %1945 = vrot.lane.b32.xlu0 %v303, 123
      %v1946 = vpop.permute.xlu0 %1945
      %1947 = vrot.lane.b32.xlu0 %v199, 123
      %v1948 = vpop.permute.xlu0 %1947
      %1949 = vrot.lane.b32.xlu0 %v304, 123
      %v1950 = vpop.permute.xlu0 %1949
      %vm1951 = vcmp.lt.s32.totalorder %v201, 123
      %v1952 = vsel %vm1951, %v1948, %v1950
      %v1953 = vsel %vm1951, %v1946, %v1948
      %v1954 = vsel %vm1951, %v1944, %v1946
      %v1955 = vsel %vm1951, %v1950, %v1944
      %vm1956 = vcmp.ge.s32.totalorder %v297, 3
      %vm1957 = vcmp.ge.s32.totalorder %v298, 3
      %vm1958 = vcmp.ge.s32.totalorder %v299, 3
      %vm1959 = vcmp.ge.s32.totalorder %v300, 3
      %v1960 = vsel %vm1956, 1, 0
      %v1961 = vsel %vm1957, 1, 0
      %v1962 = vsel %vm1958, 1, 0
      %v1963 = vsel %vm1959, 1, 0
      %vm1964 = vcmp.eq.s32.totalorder %v1960, 1
      %vm1965 = vcmp.eq.s32.totalorder %v1961, 1
      %vm1966 = vcmp.eq.s32.totalorder %v1962, 1
      %vm1967 = vcmp.eq.s32.totalorder %v1963, 1
      %v1968 = vsel %vm1964, %v1942, %v1954
      %v1969 = vsel %vm1965, %v1941, %v1953
      %v1970 = vsel %vm1966, %v1940, %v1952
      %v1971 = vsel %vm1967, %v1939, %v1955
      %v1976 = vcombine.low %v1968, %v1969
      %v1977 = vcombine.low %v1970, %v1971
      %v1980 = vsub.f32 %v198, %v1976
      %v1981 = vsub.f32 %v199, %v1977
      %v1982 = vand.u32 2147483647, %v1980
      %v1983 = vand.u32 2147483647, %v1981
      %v1986 = vcombine.high %v1982, %v1982
      %v1987 = vcombine.high %v1983, %v1983
      %v1990 = vsel %vm409, %v1982, 0.0
      %v1991 = vrot.slane %v1990, 4
      %v1992 = vadd.f32 %v1990, %v1991
      %v1993 = vrot.slane %v1992, 2
      %v1994 = vadd.f32 %v1992, %v1993
      %v1995 = vrot.slane %v1994, 1
      %v1996 = vadd.f32 %v1994, %v1995
      %v1997 = vsel %vm409, %v1986, 0.0
      %v1998 = vrot.slane %v1997, 4
      %v1999 = vadd.f32 %v1997, %v1998
      %v2000 = vrot.slane %v1999, 2
      %v2001 = vadd.f32 %v1999, %v2000
      %v2002 = vrot.slane %v2001, 1
      %v2003 = vadd.f32 %v2001, %v2002
      %v2004 = vsel %vm409, %v1983, 0.0
      %v2005 = vrot.slane %v2004, 4
      %v2006 = vadd.f32 %v2004, %v2005
      %v2007 = vrot.slane %v2006, 2
      %v2008 = vadd.f32 %v2006, %v2007
      %v2009 = vrot.slane %v2008, 1
      %v2010 = vadd.f32 %v2008, %v2009
      %v2011 = vsel %vm409, %v1987, 0.0
      %v2012 = vrot.slane %v2011, 4
      %v2013 = vadd.f32 %v2011, %v2012
      %v2014 = vrot.slane %v2013, 2
      %v2015 = vadd.f32 %v2013, %v2014
      %v2016 = vrot.slane %v2015, 1
      %v2017 = vadd.f32 %v2015, %v2016
      %vm2018 = vcmp.lt.f32.partialorder %v1996, %v492
      %vm2019 = vcmp.lt.f32.partialorder %v2003, %v492
      %vm2020 = vcmp.lt.f32.partialorder %v2010, %v492
      %vm2021 = vcmp.lt.f32.partialorder %v2017, %v492
      %v2022 = vsub.f32 %v1968, %v198
      %v2023 = vsub.f32 %v1969, %v303
      %v2024 = vsub.f32 %v1970, %v199
      %v2025 = vsub.f32 %v1971, %v304
      %v2026 = vsel %vm2018, 1, 0
      %v2027 = vsel %vm2019, 1, 0
      %v2028 = vsel %vm2020, 1, 0
      %v2029 = vsel %vm2021, 1, 0
      %vm2030 = vcmp.eq.s32.totalorder %v2026, 1
      %vm2031 = vcmp.eq.s32.totalorder %v2027, 1
      %vm2032 = vcmp.eq.s32.totalorder %v2028, 1
      %vm2033 = vcmp.eq.s32.totalorder %v2029, 1
      %v2034 = vsel %vm2030, %v2022, 0.0
      %v2035 = vsel %vm2031, %v2023, 0.0
      %v2036 = vsel %vm2032, %v2024, 0.0
      %v2037 = vsel %vm2033, %v2025, 0.0
      %v2038 = vmax.f32 %v1926, %v2034
      %v2039 = vmax.f32 %v1927, %v2035
      %v2040 = vmax.f32 %v1928, %v2036
      %v2041 = vmax.f32 %v1929, %v2037
      %2042 = vrot.lane.b32.xlu0 %v198, 4
      %v2043 = vpop.permute.xlu0 %2042
      %2044 = vrot.lane.b32.xlu0 %v303, 4
      %v2045 = vpop.permute.xlu0 %2044
      %2046 = vrot.lane.b32.xlu0 %v199, 4
      %v2047 = vpop.permute.xlu0 %2046
      %2048 = vrot.lane.b32.xlu0 %v304, 4
      %v2049 = vpop.permute.xlu0 %2048
      %v2050 = vsel %vm357, %v2047, %v2049
      %v2051 = vsel %vm357, %v2045, %v2047
      %v2052 = vsel %vm357, %v2043, %v2045
      %v2053 = vsel %vm357, %v2049, %v2043
      %2054 = vrot.lane.b32.xlu0 %v198, 124
      %v2055 = vpop.permute.xlu0 %2054
      %2056 = vrot.lane.b32.xlu0 %v303, 124
      %v2057 = vpop.permute.xlu0 %2056
      %2058 = vrot.lane.b32.xlu0 %v199, 124
      %v2059 = vpop.permute.xlu0 %2058
      %2060 = vrot.lane.b32.xlu0 %v304, 124
      %v2061 = vpop.permute.xlu0 %2060
      %v2062 = vsel %vm370, %v2059, %v2061
      %v2063 = vsel %vm370, %v2057, %v2059
      %v2064 = vsel %vm370, %v2055, %v2057
      %v2065 = vsel %vm370, %v2061, %v2055
      %v2066 = vsel %vm383, %v2053, %v2064
      %v2067 = vsel %vm384, %v2052, %v2063
      %v2068 = vsel %vm385, %v2051, %v2062
      %v2069 = vsel %vm386, %v2050, %v2065
      %v2074 = vcombine.low %v2066, %v2067
      %v2075 = vcombine.low %v2068, %v2069
      %v2078 = vsub.f32 %v198, %v2074
      %v2079 = vsub.f32 %v199, %v2075
      %v2080 = vand.u32 2147483647, %v2078
      %v2081 = vand.u32 2147483647, %v2079
      %v2084 = vcombine.high %v2080, %v2080
      %v2085 = vcombine.high %v2081, %v2081
      %v2088 = vsel %vm409, %v2080, 0.0
      %v2089 = vrot.slane %v2088, 4
      %v2090 = vadd.f32 %v2088, %v2089
      %v2091 = vrot.slane %v2090, 2
      %v2092 = vadd.f32 %v2090, %v2091
      %v2093 = vrot.slane %v2092, 1
      %v2094 = vadd.f32 %v2092, %v2093
      %v2095 = vsel %vm409, %v2084, 0.0
      %v2096 = vrot.slane %v2095, 4
      %v2097 = vadd.f32 %v2095, %v2096
      %v2098 = vrot.slane %v2097, 2
      %v2099 = vadd.f32 %v2097, %v2098
      %v2100 = vrot.slane %v2099, 1
      %v2101 = vadd.f32 %v2099, %v2100
      %v2102 = vsel %vm409, %v2081, 0.0
      %v2103 = vrot.slane %v2102, 4
      %v2104 = vadd.f32 %v2102, %v2103
      %v2105 = vrot.slane %v2104, 2
      %v2106 = vadd.f32 %v2104, %v2105
      %v2107 = vrot.slane %v2106, 1
      %v2108 = vadd.f32 %v2106, %v2107
      %v2109 = vsel %vm409, %v2085, 0.0
      %v2110 = vrot.slane %v2109, 4
      %v2111 = vadd.f32 %v2109, %v2110
      %v2112 = vrot.slane %v2111, 2
      %v2113 = vadd.f32 %v2111, %v2112
      %v2114 = vrot.slane %v2113, 1
      %v2115 = vadd.f32 %v2113, %v2114
      %vm2116 = vcmp.lt.f32.partialorder %v2094, %v492
      %vm2117 = vcmp.lt.f32.partialorder %v2101, %v492
      %vm2118 = vcmp.lt.f32.partialorder %v2108, %v492
      %vm2119 = vcmp.lt.f32.partialorder %v2115, %v492
      %v2120 = vsub.f32 %v2066, %v198
      %v2121 = vsub.f32 %v2067, %v303
      %v2122 = vsub.f32 %v2068, %v199
      %v2123 = vsub.f32 %v2069, %v304
      %v2124 = vsel %vm2116, 1, 0
      %v2125 = vsel %vm2117, 1, 0
      %v2126 = vsel %vm2118, 1, 0
      %v2127 = vsel %vm2119, 1, 0
      %vm2128 = vcmp.eq.s32.totalorder %v2124, 1
      %vm2129 = vcmp.eq.s32.totalorder %v2125, 1
      %vm2130 = vcmp.eq.s32.totalorder %v2126, 1
      %vm2131 = vcmp.eq.s32.totalorder %v2127, 1
      %v2132 = vsel %vm2128, %v2120, 0.0
      %v2133 = vsel %vm2129, %v2121, 0.0
      %v2134 = vsel %vm2130, %v2122, 0.0
      %v2135 = vsel %vm2131, %v2123, 0.0
      %v2136 = vmax.f32 %v2038, %v2132
      %v2137 = vmax.f32 %v2039, %v2133
      %v2138 = vmax.f32 %v2040, %v2134
      %v2139 = vmax.f32 %v2041, %v2135
      %2140 = vrot.lane.b32.xlu0 %v198, 5
      %v2141 = vpop.permute.xlu0 %2140
      %2142 = vrot.lane.b32.xlu0 %v303, 5
      %v2143 = vpop.permute.xlu0 %2142
      %2144 = vrot.lane.b32.xlu0 %v199, 5
      %v2145 = vpop.permute.xlu0 %2144
      %2146 = vrot.lane.b32.xlu0 %v304, 5
      %v2147 = vpop.permute.xlu0 %2146
      %vm2148 = vcmp.lt.s32.totalorder %v201, 5
      %v2149 = vsel %vm2148, %v2145, %v2147
      %v2150 = vsel %vm2148, %v2143, %v2145
      %v2151 = vsel %vm2148, %v2141, %v2143
      %v2152 = vsel %vm2148, %v2147, %v2141
      %2153 = vrot.lane.b32.xlu0 %v198, 125
      %v2154 = vpop.permute.xlu0 %2153
      %2155 = vrot.lane.b32.xlu0 %v303, 125
      %v2156 = vpop.permute.xlu0 %2155
      %2157 = vrot.lane.b32.xlu0 %v199, 125
      %v2158 = vpop.permute.xlu0 %2157
      %2159 = vrot.lane.b32.xlu0 %v304, 125
      %v2160 = vpop.permute.xlu0 %2159
      %vm2161 = vcmp.lt.s32.totalorder %v201, 125
      %v2162 = vsel %vm2161, %v2158, %v2160
      %v2163 = vsel %vm2161, %v2156, %v2158
      %v2164 = vsel %vm2161, %v2154, %v2156
      %v2165 = vsel %vm2161, %v2160, %v2154
      %vm2166 = vcmp.ge.s32.totalorder %v297, 5
      %vm2167 = vcmp.ge.s32.totalorder %v298, 5
      %vm2168 = vcmp.ge.s32.totalorder %v299, 5
      %vm2169 = vcmp.ge.s32.totalorder %v300, 5
      %v2170 = vsel %vm2166, 1, 0
      %v2171 = vsel %vm2167, 1, 0
      %v2172 = vsel %vm2168, 1, 0
      %v2173 = vsel %vm2169, 1, 0
      %vm2174 = vcmp.eq.s32.totalorder %v2170, 1
      %vm2175 = vcmp.eq.s32.totalorder %v2171, 1
      %vm2176 = vcmp.eq.s32.totalorder %v2172, 1
      %vm2177 = vcmp.eq.s32.totalorder %v2173, 1
      %v2178 = vsel %vm2174, %v2152, %v2164
      %v2179 = vsel %vm2175, %v2151, %v2163
      %v2180 = vsel %vm2176, %v2150, %v2162
      %v2181 = vsel %vm2177, %v2149, %v2165
      %v2186 = vcombine.low %v2178, %v2179
      %v2187 = vcombine.low %v2180, %v2181
      %v2190 = vsub.f32 %v198, %v2186
      %v2191 = vsub.f32 %v199, %v2187
      %v2192 = vand.u32 2147483647, %v2190
      %v2193 = vand.u32 2147483647, %v2191
      %v2196 = vcombine.high %v2192, %v2192
      %v2197 = vcombine.high %v2193, %v2193
      %v2200 = vsel %vm409, %v2192, 0.0
      %v2201 = vrot.slane %v2200, 4
      %v2202 = vadd.f32 %v2200, %v2201
      %v2203 = vrot.slane %v2202, 2
      %v2204 = vadd.f32 %v2202, %v2203
      %v2205 = vrot.slane %v2204, 1
      %v2206 = vadd.f32 %v2204, %v2205
      %v2207 = vsel %vm409, %v2196, 0.0
      %v2208 = vrot.slane %v2207, 4
      %v2209 = vadd.f32 %v2207, %v2208
      %v2210 = vrot.slane %v2209, 2
      %v2211 = vadd.f32 %v2209, %v2210
      %v2212 = vrot.slane %v2211, 1
      %v2213 = vadd.f32 %v2211, %v2212
      %v2214 = vsel %vm409, %v2193, 0.0
      %v2215 = vrot.slane %v2214, 4
      %v2216 = vadd.f32 %v2214, %v2215
      %v2217 = vrot.slane %v2216, 2
      %v2218 = vadd.f32 %v2216, %v2217
      %v2219 = vrot.slane %v2218, 1
      %v2220 = vadd.f32 %v2218, %v2219
      %v2221 = vsel %vm409, %v2197, 0.0
      %v2222 = vrot.slane %v2221, 4
      %v2223 = vadd.f32 %v2221, %v2222
      %v2224 = vrot.slane %v2223, 2
      %v2225 = vadd.f32 %v2223, %v2224
      %v2226 = vrot.slane %v2225, 1
      %v2227 = vadd.f32 %v2225, %v2226
      %vm2228 = vcmp.lt.f32.partialorder %v2206, %v492
      %vm2229 = vcmp.lt.f32.partialorder %v2213, %v492
      %vm2230 = vcmp.lt.f32.partialorder %v2220, %v492
      %vm2231 = vcmp.lt.f32.partialorder %v2227, %v492
      %v2232 = vsub.f32 %v2178, %v198
      %v2233 = vsub.f32 %v2179, %v303
      %v2234 = vsub.f32 %v2180, %v199
      %v2235 = vsub.f32 %v2181, %v304
      %v2236 = vsel %vm2228, 1, 0
      %v2237 = vsel %vm2229, 1, 0
      %v2238 = vsel %vm2230, 1, 0
      %v2239 = vsel %vm2231, 1, 0
      %vm2240 = vcmp.eq.s32.totalorder %v2236, 1
      %vm2241 = vcmp.eq.s32.totalorder %v2237, 1
      %vm2242 = vcmp.eq.s32.totalorder %v2238, 1
      %vm2243 = vcmp.eq.s32.totalorder %v2239, 1
      %v2244 = vsel %vm2240, %v2232, 0.0
      %v2245 = vsel %vm2241, %v2233, 0.0
      %v2246 = vsel %vm2242, %v2234, 0.0
      %v2247 = vsel %vm2243, %v2235, 0.0
      %v2248 = vmax.f32 %v2136, %v2244
      %v2249 = vmax.f32 %v2137, %v2245
      %v2250 = vmax.f32 %v2138, %v2246
      %v2251 = vmax.f32 %v2139, %v2247
      %2252 = vrot.lane.b32.xlu0 %v198, 6
      %v2253 = vpop.permute.xlu0 %2252
      %2254 = vrot.lane.b32.xlu0 %v303, 6
      %v2255 = vpop.permute.xlu0 %2254
      %2256 = vrot.lane.b32.xlu0 %v199, 6
      %v2257 = vpop.permute.xlu0 %2256
      %2258 = vrot.lane.b32.xlu0 %v304, 6
      %v2259 = vpop.permute.xlu0 %2258
      %vm2260 = vcmp.lt.s32.totalorder %v201, 6
      %v2261 = vsel %vm2260, %v2257, %v2259
      %v2262 = vsel %vm2260, %v2255, %v2257
      %v2263 = vsel %vm2260, %v2253, %v2255
      %v2264 = vsel %vm2260, %v2259, %v2253
      %2265 = vrot.lane.b32.xlu0 %v198, 126
      %v2266 = vpop.permute.xlu0 %2265
      %2267 = vrot.lane.b32.xlu0 %v303, 126
      %v2268 = vpop.permute.xlu0 %2267
      %2269 = vrot.lane.b32.xlu0 %v199, 126
      %v2270 = vpop.permute.xlu0 %2269
      %2271 = vrot.lane.b32.xlu0 %v304, 126
      %v2272 = vpop.permute.xlu0 %2271
      %vm2273 = vcmp.lt.s32.totalorder %v201, 126
      %v2274 = vsel %vm2273, %v2270, %v2272
      %v2275 = vsel %vm2273, %v2268, %v2270
      %v2276 = vsel %vm2273, %v2266, %v2268
      %v2277 = vsel %vm2273, %v2272, %v2266
      %vm2278 = vcmp.ge.s32.totalorder %v297, 6
      %vm2279 = vcmp.ge.s32.totalorder %v298, 6
      %vm2280 = vcmp.ge.s32.totalorder %v299, 6
      %vm2281 = vcmp.ge.s32.totalorder %v300, 6
      %v2282 = vsel %vm2278, 1, 0
      %v2283 = vsel %vm2279, 1, 0
      %v2284 = vsel %vm2280, 1, 0
      %v2285 = vsel %vm2281, 1, 0
      %vm2286 = vcmp.eq.s32.totalorder %v2282, 1
      %vm2287 = vcmp.eq.s32.totalorder %v2283, 1
      %vm2288 = vcmp.eq.s32.totalorder %v2284, 1
      %vm2289 = vcmp.eq.s32.totalorder %v2285, 1
      %v2290 = vsel %vm2286, %v2264, %v2276
      %v2291 = vsel %vm2287, %v2263, %v2275
      %v2292 = vsel %vm2288, %v2262, %v2274
      %v2293 = vsel %vm2289, %v2261, %v2277
      %v2298 = vcombine.low %v2290, %v2291
      %v2299 = vcombine.low %v2292, %v2293
      %v2302 = vsub.f32 %v198, %v2298
      %v2303 = vsub.f32 %v199, %v2299
      %v2304 = vand.u32 2147483647, %v2302
      %v2305 = vand.u32 2147483647, %v2303
      %v2308 = vcombine.high %v2304, %v2304
      %v2309 = vcombine.high %v2305, %v2305
      %v2312 = vsel %vm409, %v2304, 0.0
      %v2313 = vrot.slane %v2312, 4
      %v2314 = vadd.f32 %v2312, %v2313
      %v2315 = vrot.slane %v2314, 2
      %v2316 = vadd.f32 %v2314, %v2315
      %v2317 = vrot.slane %v2316, 1
      %v2318 = vadd.f32 %v2316, %v2317
      %v2319 = vsel %vm409, %v2308, 0.0
      %v2320 = vrot.slane %v2319, 4
      %v2321 = vadd.f32 %v2319, %v2320
      %v2322 = vrot.slane %v2321, 2
      %v2323 = vadd.f32 %v2321, %v2322
      %v2324 = vrot.slane %v2323, 1
      %v2325 = vadd.f32 %v2323, %v2324
      %v2326 = vsel %vm409, %v2305, 0.0
      %v2327 = vrot.slane %v2326, 4
      %v2328 = vadd.f32 %v2326, %v2327
      %v2329 = vrot.slane %v2328, 2
      %v2330 = vadd.f32 %v2328, %v2329
      %v2331 = vrot.slane %v2330, 1
      %v2332 = vadd.f32 %v2330, %v2331
      %v2333 = vsel %vm409, %v2309, 0.0
      %v2334 = vrot.slane %v2333, 4
      %v2335 = vadd.f32 %v2333, %v2334
      %v2336 = vrot.slane %v2335, 2
      %v2337 = vadd.f32 %v2335, %v2336
      %v2338 = vrot.slane %v2337, 1
      %v2339 = vadd.f32 %v2337, %v2338
      %vm2340 = vcmp.lt.f32.partialorder %v2318, %v492
      %vm2341 = vcmp.lt.f32.partialorder %v2325, %v492
      %vm2342 = vcmp.lt.f32.partialorder %v2332, %v492
      %vm2343 = vcmp.lt.f32.partialorder %v2339, %v492
      %v2344 = vsub.f32 %v2290, %v198
      %v2345 = vsub.f32 %v2291, %v303
      %v2346 = vsub.f32 %v2292, %v199
      %v2347 = vsub.f32 %v2293, %v304
      %v2348 = vsel %vm2340, 1, 0
      %v2349 = vsel %vm2341, 1, 0
      %v2350 = vsel %vm2342, 1, 0
      %v2351 = vsel %vm2343, 1, 0
      %vm2352 = vcmp.eq.s32.totalorder %v2348, 1
      %vm2353 = vcmp.eq.s32.totalorder %v2349, 1
      %vm2354 = vcmp.eq.s32.totalorder %v2350, 1
      %vm2355 = vcmp.eq.s32.totalorder %v2351, 1
      %v2356 = vsel %vm2352, %v2344, 0.0
      %v2357 = vsel %vm2353, %v2345, 0.0
      %v2358 = vsel %vm2354, %v2346, 0.0
      %v2359 = vsel %vm2355, %v2347, 0.0
      %v2360 = vmax.f32 %v2248, %v2356
      %v2361 = vmax.f32 %v2249, %v2357
      %v2362 = vmax.f32 %v2250, %v2358
      %v2363 = vmax.f32 %v2251, %v2359
      %2364 = vrot.lane.b32.xlu0 %v198, 7
      %v2365 = vpop.permute.xlu0 %2364
      %2366 = vrot.lane.b32.xlu0 %v303, 7
      %v2367 = vpop.permute.xlu0 %2366
      %2368 = vrot.lane.b32.xlu0 %v199, 7
      %v2369 = vpop.permute.xlu0 %2368
      %2370 = vrot.lane.b32.xlu0 %v304, 7
      %v2371 = vpop.permute.xlu0 %2370
      %vm2372 = vcmp.lt.s32.totalorder %v201, 7
      %v2373 = vsel %vm2372, %v2369, %v2371
      %v2374 = vsel %vm2372, %v2367, %v2369
      %v2375 = vsel %vm2372, %v2365, %v2367
      %v2376 = vsel %vm2372, %v2371, %v2365
      %2377 = vrot.lane.b32.xlu0 %v198, 127
      %v2378 = vpop.permute.xlu0 %2377
      %2379 = vrot.lane.b32.xlu0 %v303, 127
      %v2380 = vpop.permute.xlu0 %2379
      %2381 = vrot.lane.b32.xlu0 %v199, 127
      %v2382 = vpop.permute.xlu0 %2381
      %2383 = vrot.lane.b32.xlu0 %v304, 127
      %v2384 = vpop.permute.xlu0 %2383
      %vm2385 = vcmp.lt.s32.totalorder %v201, 127
      %v2386 = vsel %vm2385, %v2382, %v2384
      %v2387 = vsel %vm2385, %v2380, %v2382
      %v2388 = vsel %vm2385, %v2378, %v2380
      %v2389 = vsel %vm2385, %v2384, %v2378
      %vm2390 = vcmp.ge.s32.totalorder %v297, 7
      %vm2391 = vcmp.ge.s32.totalorder %v298, 7
      %vm2392 = vcmp.ge.s32.totalorder %v299, 7
      %vm2393 = vcmp.ge.s32.totalorder %v300, 7
      %v2394 = vsel %vm2390, 1, 0
      %v2395 = vsel %vm2391, 1, 0
      %v2396 = vsel %vm2392, 1, 0
      %v2397 = vsel %vm2393, 1, 0
      %vm2398 = vcmp.eq.s32.totalorder %v2394, 1
      %vm2399 = vcmp.eq.s32.totalorder %v2395, 1
      %vm2400 = vcmp.eq.s32.totalorder %v2396, 1
      %vm2401 = vcmp.eq.s32.totalorder %v2397, 1
      %v2402 = vsel %vm2398, %v2376, %v2388
      %v2403 = vsel %vm2399, %v2375, %v2387
      %v2404 = vsel %vm2400, %v2374, %v2386
      %v2405 = vsel %vm2401, %v2373, %v2389
      %v2410 = vcombine.low %v2402, %v2403
      %v2411 = vcombine.low %v2404, %v2405
      %v2414 = vsub.f32 %v198, %v2410
      %v2415 = vsub.f32 %v199, %v2411
      %v2416 = vand.u32 2147483647, %v2414
      %v2417 = vand.u32 2147483647, %v2415
      %v2420 = vcombine.high %v2416, %v2416
      %v2421 = vcombine.high %v2417, %v2417
      %v2424 = vsel %vm409, %v2416, 0.0
      %v2425 = vrot.slane %v2424, 4
      %v2426 = vadd.f32 %v2424, %v2425
      %v2427 = vrot.slane %v2426, 2
      %v2428 = vadd.f32 %v2426, %v2427
      %v2429 = vrot.slane %v2428, 1
      %v2430 = vadd.f32 %v2428, %v2429
      %v2431 = vsel %vm409, %v2420, 0.0
      %v2432 = vrot.slane %v2431, 4
      %v2433 = vadd.f32 %v2431, %v2432
      %v2434 = vrot.slane %v2433, 2
      %v2435 = vadd.f32 %v2433, %v2434
      %v2436 = vrot.slane %v2435, 1
      %v2437 = vadd.f32 %v2435, %v2436
      %v2438 = vsel %vm409, %v2417, 0.0
      %v2439 = vrot.slane %v2438, 4
      %v2440 = vadd.f32 %v2438, %v2439
      %v2441 = vrot.slane %v2440, 2
      %v2442 = vadd.f32 %v2440, %v2441
      %v2443 = vrot.slane %v2442, 1
      %v2444 = vadd.f32 %v2442, %v2443
      %v2445 = vsel %vm409, %v2421, 0.0
      %v2446 = vrot.slane %v2445, 4
      %v2447 = vadd.f32 %v2445, %v2446
      %v2448 = vrot.slane %v2447, 2
      %v2449 = vadd.f32 %v2447, %v2448
      %v2450 = vrot.slane %v2449, 1
      %v2451 = vadd.f32 %v2449, %v2450
      %vm2452 = vcmp.lt.f32.partialorder %v2430, %v492
      %vm2453 = vcmp.lt.f32.partialorder %v2437, %v492
      %vm2454 = vcmp.lt.f32.partialorder %v2444, %v492
      %vm2455 = vcmp.lt.f32.partialorder %v2451, %v492
      %v2456 = vsub.f32 %v2402, %v198
      %v2457 = vsub.f32 %v2403, %v303
      %v2458 = vsub.f32 %v2404, %v199
      %v2459 = vsub.f32 %v2405, %v304
      %v2460 = vsel %vm2452, 1, 0
      %v2461 = vsel %vm2453, 1, 0
      %v2462 = vsel %vm2454, 1, 0
      %v2463 = vsel %vm2455, 1, 0
      %vm2464 = vcmp.eq.s32.totalorder %v2460, 1
      %vm2465 = vcmp.eq.s32.totalorder %v2461, 1
      %vm2466 = vcmp.eq.s32.totalorder %v2462, 1
      %vm2467 = vcmp.eq.s32.totalorder %v2463, 1
      %v2468 = vsel %vm2464, %v2456, 0.0
      %v2469 = vsel %vm2465, %v2457, 0.0
      %v2470 = vsel %vm2466, %v2458, 0.0
      %v2471 = vsel %vm2467, %v2459, 0.0
      %v2472 = vmax.f32 %v2360, %v2468
      %v2473 = vmax.f32 %v2361, %v2469
      %v2474 = vmax.f32 %v2362, %v2470
      %v2475 = vmax.f32 %v2363, %v2471
      %v2476 = vld [vmem:[%s1] sm:$0xff]
      %v2477 = vld [vmem:[%s2] sm:$0xff]
      %vm2478 = vcmask 31744
      %v2480 = vsel %vm2478, %v2477, 0
      %v2483 = vsel %vm409, %v2472, 0
      %v2486 = vsel %vm409, %v2473, 0
      %v2489 = vsel %vm409, %v2474, 0
      %v2492 = vsel %vm409, %v2475, 0
      %2494 = vmatprep.subr.mxu0 %v2486
      %2495 = vmatpush1.msra.mxu0 %v2483
      %2496 = vmatprep.subr.mxu0 0.0
      %2497 = vmatpush1.msra.mxu0 0.0
      %2498 = vmatprep.subr.mxu0 0.0
      %2499 = vmatpush1.msra.mxu0 0.0
      %2500 = vmatprep.subr.mxu0 0.0
      %2501 = vmatpush1.msra.mxu0 0.0
      %2502 = vmatprep.subr.mxu0 0.0
      %2503 = vmatpush1.msra.mxu0 0.0
      %2504 = vmatprep.subr.mxu0 0.0
      %2505 = vmatpush1.msra.mxu0 0.0
      %2506 = vmatprep.subr.mxu0 0.0
      %2507 = vmatpush1.msra.mxu0 0.0
      %2508 = vmatprep.subr.mxu0 0.0
      %2509 = vmatpush1.msra.mxu0 0.0
      %2510 = vmatprep.subr.mxu0 0.0
      %2511 = vmatpush1.msra.mxu0 0.0
      %2512 = vmatprep.subr.mxu0 0.0
      %2513 = vmatpush1.msra.mxu0 0.0
      %2514 = vmatprep.subr.mxu0 0.0
      %2515 = vmatpush1.msra.mxu0 0.0
      %2516 = vmatprep.subr.mxu0 0.0
      %2517 = vmatpush1.msra.mxu0 0.0
      %2518 = vmatprep.subr.mxu0 0.0
      %2519 = vmatpush1.msra.mxu0 0.0
      %2520 = vmatprep.subr.mxu0 0.0
      %2521 = vmatpush1.msra.mxu0 0.0
      %2522 = vmatprep.subr.mxu0 0.0
      %2523 = vmatpush1.msra.mxu0 0.0
      %2524 = vmatprep.subr.mxu0 0.0
      %2525 = vmatpush1.msra.mxu0 0.0
      %2526 = vmatprep.subr.mxu0 0.0
      %2527 = vmatpush1.msra.mxu0 0.0
      %2528 = vmatprep.subr.mxu0 0.0
      %2529 = vmatpush1.msra.mxu0 0.0
      %2530 = vmatprep.subr.mxu0 0.0
      %2531 = vmatpush1.msra.mxu0 0.0
      %2532 = vmatprep.subr.mxu0 0.0
      %2533 = vmatpush1.msra.mxu0 0.0
      %2534 = vmatprep.subr.mxu0 0.0
      %2535 = vmatpush1.msra.mxu0 0.0
      %2536 = vmatprep.subr.mxu0 0.0
      %2537 = vmatpush1.msra.mxu0 0.0
      %2538 = vmatprep.subr.mxu0 0.0
      %2539 = vmatpush1.msra.mxu0 0.0
      %2540 = vmatprep.subr.mxu0 0.0
      %2541 = vmatpush1.msra.mxu0 0.0
      %2542 = vmatprep.subr.mxu0 0.0
      %2543 = vmatpush1.msra.mxu0 0.0
      %2544 = vmatprep.subr.mxu0 0.0
      %2545 = vmatpush1.msra.mxu0 0.0
      %2546 = vmatprep.subr.mxu0 0.0
      %2547 = vmatpush1.msra.mxu0 0.0
      %2548 = vmatprep.subr.mxu0 0.0
      %2549 = vmatpush1.msra.mxu0 0.0
      %2550 = vmatprep.subr.mxu0 0.0
      %2551 = vmatpush1.msra.mxu0 0.0
      %2552 = vmatprep.subr.mxu0 0.0
      %2553 = vmatpush1.msra.mxu0 0.0
      %2554 = vmatprep.subr.mxu0 0.0
      %2555 = vmatpush1.msra.mxu0 0.0
      %2556 = vmatprep.subr.mxu0 0.0
      %2557 = vmatpush1.msra.mxu0 0.0
      %2558 = vmatprep.mubr.f32.mxu0 0.0
      %2559 = vmatmul.mubr.f32.gmra.mrb[0].mxu0 %v2480
      %v2560 = vpop.f32.mrb[0].mxu0
      %v2561 = vadd.f32 0.0, %v2560
      %v2562 = vpop.f32.mrb[0].mxu0
      %v2563 = vadd.f32 0.0, %v2562
      %2564 = vdwg.mxu0
      %2565 = vmatprep.subr.mxu0 %v2492
      %2566 = vmatpush1.msra.mxu0 %v2489
      %2567 = vmatprep.subr.mxu0 0.0
      %2568 = vmatpush1.msra.mxu0 0.0
      %2569 = vmatprep.subr.mxu0 0.0
      %2570 = vmatpush1.msra.mxu0 0.0
      %2571 = vmatprep.subr.mxu0 0.0
      %2572 = vmatpush1.msra.mxu0 0.0
      %2573 = vmatprep.subr.mxu0 0.0
      %2574 = vmatpush1.msra.mxu0 0.0
      %2575 = vmatprep.subr.mxu0 0.0
      %2576 = vmatpush1.msra.mxu0 0.0
      %2577 = vmatprep.subr.mxu0 0.0
      %2578 = vmatpush1.msra.mxu0 0.0
      %2579 = vmatprep.subr.mxu0 0.0
      %2580 = vmatpush1.msra.mxu0 0.0
      %2581 = vmatprep.subr.mxu0 0.0
      %2582 = vmatpush1.msra.mxu0 0.0
      %2583 = vmatprep.subr.mxu0 0.0
      %2584 = vmatpush1.msra.mxu0 0.0
      %2585 = vmatprep.subr.mxu0 0.0
      %2586 = vmatpush1.msra.mxu0 0.0
      %2587 = vmatprep.subr.mxu0 0.0
      %2588 = vmatpush1.msra.mxu0 0.0
      %2589 = vmatprep.subr.mxu0 0.0
      %2590 = vmatpush1.msra.mxu0 0.0
      %2591 = vmatprep.subr.mxu0 0.0
      %2592 = vmatpush1.msra.mxu0 0.0
      %2593 = vmatprep.subr.mxu0 0.0
      %2594 = vmatpush1.msra.mxu0 0.0
      %2595 = vmatprep.subr.mxu0 0.0
      %2596 = vmatpush1.msra.mxu0 0.0
      %2597 = vmatprep.subr.mxu0 0.0
      %2598 = vmatpush1.msra.mxu0 0.0
      %2599 = vmatprep.subr.mxu0 0.0
      %2600 = vmatpush1.msra.mxu0 0.0
      %2601 = vmatprep.subr.mxu0 0.0
      %2602 = vmatpush1.msra.mxu0 0.0
      %2603 = vmatprep.subr.mxu0 0.0
      %2604 = vmatpush1.msra.mxu0 0.0
      %2605 = vmatprep.subr.mxu0 0.0
      %2606 = vmatpush1.msra.mxu0 0.0
      %2607 = vmatprep.subr.mxu0 0.0
      %2608 = vmatpush1.msra.mxu0 0.0
      %2609 = vmatprep.subr.mxu0 0.0
      %2610 = vmatpush1.msra.mxu0 0.0
      %2611 = vmatprep.subr.mxu0 0.0
      %2612 = vmatpush1.msra.mxu0 0.0
      %2613 = vmatprep.subr.mxu0 0.0
      %2614 = vmatpush1.msra.mxu0 0.0
      %2615 = vmatprep.subr.mxu0 0.0
      %2616 = vmatpush1.msra.mxu0 0.0
      %2617 = vmatprep.subr.mxu0 0.0
      %2618 = vmatpush1.msra.mxu0 0.0
      %2619 = vmatprep.subr.mxu0 0.0
      %2620 = vmatpush1.msra.mxu0 0.0
      %2621 = vmatprep.subr.mxu0 0.0
      %2622 = vmatpush1.msra.mxu0 0.0
      %2623 = vmatprep.subr.mxu0 0.0
      %2624 = vmatpush1.msra.mxu0 0.0
      %2625 = vmatprep.subr.mxu0 0.0
      %2626 = vmatpush1.msra.mxu0 0.0
      %2627 = vmatprep.subr.mxu0 0.0
      %2628 = vmatpush1.msra.mxu0 0.0
      %2629 = vmatprep.mubr.f32.mxu0 0.0
      %2630 = vmatmul.mubr.f32.gmra.mrb[0].mxu0 %v2480
      %v2631 = vpop.f32.mrb[0].mxu0
      %v2632 = vadd.f32 0.0, %v2631
      %v2633 = vpop.f32.mrb[0].mxu0
      %v2634 = vadd.f32 0.0, %v2633
      %2635 = vdwg.mxu0
      %v2637 = vsel %vm2478, %v2476, 0
      %v2639 = vsel %vm409, %v198, 0
      %v2641 = vsel %vm409, %v303, 0
      %v2643 = vsel %vm409, %v199, 0
      %v2645 = vsel %vm409, %v304, 0
      %2647 = vmatprep.subr.mxu0 %v2641
      %2648 = vmatpush1.msra.mxu0 %v2639
      %2649 = vmatprep.subr.mxu0 0.0
      %2650 = vmatpush1.msra.mxu0 0.0
      %2651 = vmatprep.subr.mxu0 0.0
      %2652 = vmatpush1.msra.mxu0 0.0
      %2653 = vmatprep.subr.mxu0 0.0
      %2654 = vmatpush1.msra.mxu0 0.0
      %2655 = vmatprep.subr.mxu0 0.0
      %2656 = vmatpush1.msra.mxu0 0.0
      %2657 = vmatprep.subr.mxu0 0.0
      %2658 = vmatpush1.msra.mxu0 0.0
      %2659 = vmatprep.subr.mxu0 0.0
      %2660 = vmatpush1.msra.mxu0 0.0
      %2661 = vmatprep.subr.mxu0 0.0
      %2662 = vmatpush1.msra.mxu0 0.0
      %2663 = vmatprep.subr.mxu0 0.0
      %2664 = vmatpush1.msra.mxu0 0.0
      %2665 = vmatprep.subr.mxu0 0.0
      %2666 = vmatpush1.msra.mxu0 0.0
      %2667 = vmatprep.subr.mxu0 0.0
      %2668 = vmatpush1.msra.mxu0 0.0
      %2669 = vmatprep.subr.mxu0 0.0
      %2670 = vmatpush1.msra.mxu0 0.0
      %2671 = vmatprep.subr.mxu0 0.0
      %2672 = vmatpush1.msra.mxu0 0.0
      %2673 = vmatprep.subr.mxu0 0.0
      %2674 = vmatpush1.msra.mxu0 0.0
      %2675 = vmatprep.subr.mxu0 0.0
      %2676 = vmatpush1.msra.mxu0 0.0
      %2677 = vmatprep.subr.mxu0 0.0
      %2678 = vmatpush1.msra.mxu0 0.0
      %2679 = vmatprep.subr.mxu0 0.0
      %2680 = vmatpush1.msra.mxu0 0.0
      %2681 = vmatprep.subr.mxu0 0.0
      %2682 = vmatpush1.msra.mxu0 0.0
      %2683 = vmatprep.subr.mxu0 0.0
      %2684 = vmatpush1.msra.mxu0 0.0
      %2685 = vmatprep.subr.mxu0 0.0
      %2686 = vmatpush1.msra.mxu0 0.0
      %2687 = vmatprep.subr.mxu0 0.0
      %2688 = vmatpush1.msra.mxu0 0.0
      %2689 = vmatprep.subr.mxu0 0.0
      %2690 = vmatpush1.msra.mxu0 0.0
      %2691 = vmatprep.subr.mxu0 0.0
      %2692 = vmatpush1.msra.mxu0 0.0
      %2693 = vmatprep.subr.mxu0 0.0
      %2694 = vmatpush1.msra.mxu0 0.0
      %2695 = vmatprep.subr.mxu0 0.0
      %2696 = vmatpush1.msra.mxu0 0.0
      %2697 = vmatprep.subr.mxu0 0.0
      %2698 = vmatpush1.msra.mxu0 0.0
      %2699 = vmatprep.subr.mxu0 0.0
      %2700 = vmatpush1.msra.mxu0 0.0
      %2701 = vmatprep.subr.mxu0 0.0
      %2702 = vmatpush1.msra.mxu0 0.0
      %2703 = vmatprep.subr.mxu0 0.0
      %2704 = vmatpush1.msra.mxu0 0.0
      %2705 = vmatprep.subr.mxu0 0.0
      %2706 = vmatpush1.msra.mxu0 0.0
      %2707 = vmatprep.subr.mxu0 0.0
      %2708 = vmatpush1.msra.mxu0 0.0
      %2709 = vmatprep.subr.mxu0 0.0
      %2710 = vmatpush1.msra.mxu0 0.0
      %2711 = vmatprep.mubr.f32.mxu0 0.0
      %2712 = vmatmul.mubr.f32.gmra.mrb[0].mxu0 %v2637
      %v2713 = vpop.f32.mrb[0].mxu0
      %v2714 = vadd.f32 %v2561, %v2713
      %v2715 = vpop.f32.mrb[0].mxu0
      %v2716 = vadd.f32 %v2563, %v2715
      %2717 = vdwg.mxu0
      %2718 = vmatprep.subr.mxu0 %v2645
      %2719 = vmatpush1.msra.mxu0 %v2643
      %2720 = vmatprep.subr.mxu0 0.0
      %2721 = vmatpush1.msra.mxu0 0.0
      %2722 = vmatprep.subr.mxu0 0.0
      %2723 = vmatpush1.msra.mxu0 0.0
      %2724 = vmatprep.subr.mxu0 0.0
      %2725 = vmatpush1.msra.mxu0 0.0
      %2726 = vmatprep.subr.mxu0 0.0
      %2727 = vmatpush1.msra.mxu0 0.0
      %2728 = vmatprep.subr.mxu0 0.0
      %2729 = vmatpush1.msra.mxu0 0.0
      %2730 = vmatprep.subr.mxu0 0.0
      %2731 = vmatpush1.msra.mxu0 0.0
      %2732 = vmatprep.subr.mxu0 0.0
      %2733 = vmatpush1.msra.mxu0 0.0
      %2734 = vmatprep.subr.mxu0 0.0
      %2735 = vmatpush1.msra.mxu0 0.0
      %2736 = vmatprep.subr.mxu0 0.0
      %2737 = vmatpush1.msra.mxu0 0.0
      %2738 = vmatprep.subr.mxu0 0.0
      %2739 = vmatpush1.msra.mxu0 0.0
      %2740 = vmatprep.subr.mxu0 0.0
      %2741 = vmatpush1.msra.mxu0 0.0
      %2742 = vmatprep.subr.mxu0 0.0
      %2743 = vmatpush1.msra.mxu0 0.0
      %2744 = vmatprep.subr.mxu0 0.0
      %2745 = vmatpush1.msra.mxu0 0.0
      %2746 = vmatprep.subr.mxu0 0.0
      %2747 = vmatpush1.msra.mxu0 0.0
      %2748 = vmatprep.subr.mxu0 0.0
      %2749 = vmatpush1.msra.mxu0 0.0
      %2750 = vmatprep.subr.mxu0 0.0
      %2751 = vmatpush1.msra.mxu0 0.0
      %2752 = vmatprep.subr.mxu0 0.0
      %2753 = vmatpush1.msra.mxu0 0.0
      %2754 = vmatprep.subr.mxu0 0.0
      %2755 = vmatpush1.msra.mxu0 0.0
      %2756 = vmatprep.subr.mxu0 0.0
      %2757 = vmatpush1.msra.mxu0 0.0
      %2758 = vmatprep.subr.mxu0 0.0
      %2759 = vmatpush1.msra.mxu0 0.0
      %2760 = vmatprep.subr.mxu0 0.0
      %2761 = vmatpush1.msra.mxu0 0.0
      %2762 = vmatprep.subr.mxu0 0.0
      %2763 = vmatpush1.msra.mxu0 0.0
      %2764 = vmatprep.subr.mxu0 0.0
      %2765 = vmatpush1.msra.mxu0 0.0
      %2766 = vmatprep.subr.mxu0 0.0
      %2767 = vmatpush1.msra.mxu0 0.0
      %2768 = vmatprep.subr.mxu0 0.0
      %2769 = vmatpush1.msra.mxu0 0.0
      %2770 = vmatprep.subr.mxu0 0.0
      %2771 = vmatpush1.msra.mxu0 0.0
      %2772 = vmatprep.subr.mxu0 0.0
      %2773 = vmatpush1.msra.mxu0 0.0
      %2774 = vmatprep.subr.mxu0 0.0
      %2775 = vmatpush1.msra.mxu0 0.0
      %2776 = vmatprep.subr.mxu0 0.0
      %2777 = vmatpush1.msra.mxu0 0.0
      %2778 = vmatprep.subr.mxu0 0.0
      %2779 = vmatpush1.msra.mxu0 0.0
      %2780 = vmatprep.subr.mxu0 0.0
      %2781 = vmatpush1.msra.mxu0 0.0
      %2782 = vmatprep.mubr.f32.mxu0 0.0
      %2783 = vmatmul.mubr.f32.gmra.mrb[0].mxu0 %v2637
      %v2784 = vpop.f32.mrb[0].mxu0
      %v2785 = vadd.f32 %v2632, %v2784
      %v2786 = vpop.f32.mrb[0].mxu0
      %v2787 = vadd.f32 %v2634, %v2786
      %2788 = vdwg.mxu0
      %v2789 = vld [vmem:[%s3] sm:$0xff]
      %2791 = vset.pattern.permute.xlu0 0
      %2792 = vperm.xlu0 %2791, %v2789
      %v2793 = vpop.permute.xlu0 %2792
      %v2795 = vadd.f32 %v2714, %v2793
      %v2796 = vadd.f32 %v2716, %v2793
      %v2797 = vadd.f32 %v2785, %v2793
      %v2798 = vadd.f32 %v2787, %v2793
      %v2799 = vmul.f32 %v2795, 0.70710677
      %v2800 = vmul.f32 %v2796, 0.70710677
      %v2801 = vmul.f32 %v2797, 0.70710677
      %v2802 = vmul.f32 %v2798, 0.70710677
      %v2803 = vand.u32 2147483647, %v2799
      %v2804 = vand.u32 2147483647, %v2800
      %v2805 = vand.u32 2147483647, %v2801
      %v2806 = vand.u32 2147483647, %v2802
      %v2807 = vmul.f32 %v2803, 0.3275911
      %v2808 = vmul.f32 %v2804, 0.3275911
      %v2809 = vmul.f32 %v2805, 0.3275911
      %v2810 = vmul.f32 %v2806, 0.3275911
      %v2811 = vadd.f32 %v2807, 1.0
      %v2812 = vadd.f32 %v2808, 1.0
      %v2813 = vadd.f32 %v2809, 1.0
      %v2814 = vadd.f32 %v2810, 1.0
      %v2815 = vrcp.pop %v2811
      %v2816 = vmul.f32 1.0, %v2815
      %v2817 = vrcp.pop %v2812
      %v2818 = vmul.f32 1.0, %v2817
      %v2819 = vrcp.pop %v2813
      %v2820 = vmul.f32 1.0, %v2819
      %v2821 = vrcp.pop %v2814
      %v2822 = vmul.f32 1.0, %v2821
      %v2823 = vmul.f32 %v2816, 1.0614054
      %v2824 = vmul.f32 %v2818, 1.0614054
      %v2825 = vmul.f32 %v2820, 1.0614054
      %v2826 = vmul.f32 %v2822, 1.0614054
      %v2827 = vadd.f32 %v2823, -1.4531521
      %v2828 = vadd.f32 %v2824, -1.4531521
      %v2829 = vadd.f32 %v2825, -1.4531521
      %v2830 = vadd.f32 %v2826, -1.4531521
      %v2831 = vmul.f32 %v2816, %v2827
      %v2832 = vmul.f32 %v2818, %v2828
      %v2833 = vmul.f32 %v2820, %v2829
      %v2834 = vmul.f32 %v2822, %v2830
      %v2835 = vadd.f32 %v2831, 1.4214138
      %v2836 = vadd.f32 %v2832, 1.4214138
      %v2837 = vadd.f32 %v2833, 1.4214138
      %v2838 = vadd.f32 %v2834, 1.4214138
      %v2839 = vmul.f32 %v2816, %v2835
      %v2840 = vmul.f32 %v2818, %v2836
      %v2841 = vmul.f32 %v2820, %v2837
      %v2842 = vmul.f32 %v2822, %v2838
      %v2843 = vadd.f32 %v2839, -0.28449672
      %v2844 = vadd.f32 %v2840, -0.28449672
      %v2845 = vadd.f32 %v2841, -0.28449672
      %v2846 = vadd.f32 %v2842, -0.28449672
      %v2847 = vmul.f32 %v2816, %v2843
      %v2848 = vmul.f32 %v2818, %v2844
      %v2849 = vmul.f32 %v2820, %v2845
      %v2850 = vmul.f32 %v2822, %v2846
      %v2851 = vadd.f32 %v2847, 0.2548296
      %v2852 = vadd.f32 %v2848, 0.2548296
      %v2853 = vadd.f32 %v2849, 0.2548296
      %v2854 = vadd.f32 %v2850, 0.2548296
      %v2855 = vmul.f32 %v2816, %v2851
      %v2856 = vmul.f32 %v2818, %v2852
      %v2857 = vmul.f32 %v2820, %v2853
      %v2858 = vmul.f32 %v2822, %v2854
      %v2859 = vsub.f32 0.0, %v2803
      %v2860 = vsub.f32 0.0, %v2804
      %v2861 = vsub.f32 0.0, %v2805
      %v2862 = vsub.f32 0.0, %v2806
      %v2863 = vmul.f32 %v2859, %v2803
      %v2864 = vmul.f32 %v2860, %v2804
      %v2865 = vmul.f32 %v2861, %v2805
      %v2866 = vmul.f32 %v2862, %v2806
      %v2867 = vmul.f32 %v2863, 1.442695
      %v2868 = vpow.pop %v2867
      %v2869 = vmul.f32 %v2864, 1.442695
      %v2870 = vpow.pop %v2869
      %v2871 = vmul.f32 %v2865, 1.442695
      %v2872 = vpow.pop %v2871
      %v2873 = vmul.f32 %v2866, 1.442695
      %v2874 = vpow.pop %v2873
      %v2875 = vmul.f32 %v2855, %v2868
      %v2876 = vmul.f32 %v2856, %v2870
      %v2877 = vmul.f32 %v2857, %v2872
      %v2878 = vmul.f32 %v2858, %v2874
      %v2879 = vsub.f32 1.0, %v2875
      %v2880 = vsub.f32 1.0, %v2876
      %v2881 = vsub.f32 1.0, %v2877
      %v2882 = vsub.f32 1.0, %v2878
      %vm2883 = vcmp.lt.f32.partialorder %v2799, 0.0
      %vm2884 = vcmp.lt.f32.partialorder %v2800, 0.0
      %vm2885 = vcmp.lt.f32.partialorder %v2801, 0.0
      %vm2886 = vcmp.lt.f32.partialorder %v2802, 0.0
      %v2887 = vsub.f32 0.0, %v2879
      %v2888 = vsub.f32 0.0, %v2880
      %v2889 = vsub.f32 0.0, %v2881
      %v2890 = vsub.f32 0.0, %v2882
      %v2891 = vsel %vm2883, %v2887, %v2879
      %v2892 = vsel %vm2884, %v2888, %v2880
      %v2893 = vsel %vm2885, %v2889, %v2881
      %v2894 = vsel %vm2886, %v2890, %v2882
      %v2895 = vmul.f32 %v2795, 0.5
      %v2896 = vmul.f32 %v2796, 0.5
      %v2897 = vmul.f32 %v2797, 0.5
      %v2898 = vmul.f32 %v2798, 0.5
      %v2899 = vadd.f32 %v2891, 1.0
      %v2900 = vadd.f32 %v2892, 1.0
      %v2901 = vadd.f32 %v2893, 1.0
      %v2902 = vadd.f32 %v2894, 1.0
      %v2903 = vmul.f32 %v2895, %v2899
      %v2904 = vmul.f32 %v2896, %v2900
      %v2905 = vmul.f32 %v2897, %v2901
      %v2906 = vmul.f32 %v2898, %v2902
      %2907 = vst [vmem:[%s197] sm:$0xff] %v2903
      %2908 = vst [vmem:[%s197 + $0x8] sm:$0xff] %v2904
      %2909 = vst [vmem:[%s197 + $0x10] sm:$0xff] %v2905
      %2910 = vst [vmem:[%s197 + $0x18] sm:$0xff] %v2906
      %p2911 = scmp.lt.s32.totalorder %s15, 1
      %s2912 = scalar_select %p2911, %s15, 1
      %s2913 = smul.addr %s2912, 4
      %s2914 = smul.addr %s2913, 8
      %s2915 = scalar_lea.vmem %s4, %s2914
      // Predicated region
      $region37: #{mrconv4d_forward.1} parent=35 // pred_check
        %p2916 = pneg %p122
      $region38: #{mrconv4d_forward.1} parent=35 // pred_check_branch
        %2918 = sbr.rel (%p2916) target = $region40
      $region39: #{mrconv4d_forward.1} parent=35 // pred_region
        _
      $region40: #{mrconv4d_forward.1} parent=35 // pred_fallthru
        _
    $region36: #{mrconv4d_forward.1} parent=5 // pred_fallthru
      _
    %p2919 = scmp.le.s32.totalorder 2, %s10
    // Predicated region
    $region41: #{mrconv4d_forward.1} parent=5 // pred_check
      %p2920 = pneg %p2919
    $region42: #{mrconv4d_forward.1} parent=5 // pred_check_branch
      %2922 = sbr.rel (%p2920) target = $region44
    $region43: #{mrconv4d_forward.1} parent=5 // pred_region
      %s2923 = ssub.s32 %s10, 2
      // Predicated region
      $region45: #{mrconv4d_forward.1} parent=43 // pred_check
        %p2924 = pneg %p128
      $region46: #{mrconv4d_forward.1} parent=43 // pred_check_branch
        %2926 = sbr.rel (%p2924) target = $region48
      $region47: #{mrconv4d_forward.1} parent=43 // pred_region
        %p2927 = scmp.lt.s32.totalorder %s16, 1
        %s2928 = scalar_select %p2927, %s16, 1
        %s2929 = smul.addr %s2928, 4
        %s2930 = smul.addr %s2929, 8
        %s2931 = scalar_lea.vmem %s4, %s2930
      $region48: #{mrconv4d_forward.1} parent=43 // pred_fallthru
        _
    $region44: #{mrconv4d_forward.1} parent=5 // pred_fallthru
      _
  $region6: #{mrconv4d_forward.1} parent=0 // loop_footer
    %s14 = sadd.s32 1, %s10
  $region7: #{mrconv4d_forward.1} parent=0 // loop_footer_branch
    %9 = sbr.rel target = $region3
  $region8: #{mrconv4d_forward.1} parent=0 // loop_exit
    _

</llo_original>
